<compile_context>
chip_gen: v6e
topology: v6e:2x2x1
jax: 0.10.0
libtpu: 0.0.40
codegen_flags: <defaults>
</compile_context>

<pallas_src>
import numpy as np
import jax
import jax.numpy as jnp
from jax import lax
from jax.experimental import pallas as pl
from jax.experimental.pallas import tpu as pltpu


# ----------------------------------------------------------------------------
# helpers
# ----------------------------------------------------------------------------
def _split_channels(c2, groups):
    # equal_ch=True split used by MixConv2d.__init__
    i = np.floor(np.linspace(0, groups - 1e-6, c2))
    return [int((i == g).sum()) for g in range(groups)]


def _pick_row_tile(H, W, C, target_bytes=1 << 20):
    # rows per tile so one halo'd input tile is ~1 MB (good pipelining,
    # comfortably inside every chip's scoped-VMEM budget incl. v7x's 64 MiB),
    # while exactly dividing H so output blocks are unmasked.
    rows = max(8, target_bytes // max(1, (W + 2) * C * 4))
    rows = int(min(H, rows))
    for th in range(rows, 0, -1):
        if H % th == 0:
            return th
    return H


# ----------------------------------------------------------------------------
# fused MixConv2d kernel (one (batch, row-tile) block per grid step)
# ----------------------------------------------------------------------------
def _mixconv_kernel(x_ref, w1_ref, w2_ref, s1_ref, b1_ref, s2_ref, b2_ref,
                    o_ref):
    # x_ref : (TH+2, W+2, Cin)  halo'd NHWC input tile (spatially padded)
    # w1_ref: (Cin, C1)         1x1 conv weights
    # w2_ref: (9, Cin, C2)      3x3 conv weights, tap-major (kh*3+kw)
    # s*/b* : (1, C*)           folded BN scale / shift per branch
    # o_ref : (TH, W, C1+C2)    x + LeakyReLU(BN(concat(conv1x1, conv3x3)))
    TH, W, C = o_ref.shape
    Cin = x_ref.shape[2]
    C2 = w2_ref.shape[2]

    x_halo = x_ref[...]                              # (TH+2, W+2, Cin)
    x_c = x_halo[1:1 + TH, 1:1 + W, :]               # center window
    xm = x_c.reshape(TH * W, Cin)

    # 1x1 branch: single MXU matmul + folded BN.
    y1 = jnp.dot(xm, w1_ref[...], preferred_element_type=jnp.float32)
    y1 = y1 * s1_ref[...] + b1_ref[...]

    # 3x3 branch: 9 shifted matmuls accumulated in f32 + folded BN.
    acc = jnp.zeros((TH * W, C2), jnp.float32)
    for kh in range(3):
        for kw in range(3):
            xs = x_halo[kh:kh + TH, kw:kw + W, :].reshape(TH * W, Cin)
            acc = acc + jnp.dot(xs, w2_ref[kh * 3 + kw],
                                preferred_element_type=jnp.float32)
    y2 = acc * s2_ref[...] + b2_ref[...]

    # LeakyReLU(0.1), channel concat, residual add (requires Cin == C1 + C2).
    y1 = jnp.where(y1 > 0, y1, 0.1 * y1)
    y2 = jnp.where(y2 > 0, y2, 0.1 * y2)
    y = jnp.concatenate([y1, y2], axis=-1) + xm.astype(jnp.float32)
    o_ref[...] = y.reshape(TH, W, C).astype(o_ref.dtype)


# ----------------------------------------------------------------------------
# wrapper: NCHW public interface (matches PyTorch), NHWC kernel internals
# ----------------------------------------------------------------------------
def mixconv2d_forward(x, params, k=(1, 3), stride=1, eps=1e-5,
                      compute_dtype=jnp.float32):
    if tuple(k) != (1, 3):
        # TODO(synk): only the default MixConv2d kernel mix k=(1,3) is implemented.
        raise NotImplementedError("only k=(1, 3) is supported")
    if stride != 1:
        # The residual `x + ...` in MixConv2d.forward requires stride == 1.
        raise NotImplementedError("MixConv2d residual requires stride == 1")

    w1, w2 = params['w1'], params['w2']            # (C1,Cin,1,1), (C2,Cin,3,3)
    N, Cin, H, W = x.shape
    C1, C2 = w1.shape[0], w2.shape[0]
    C = C1 + C2
    assert Cin == C, "MixConv2d residual add requires c1 == c2"

    # Fold inference BatchNorm into per-channel scale/shift (convs are bias-free).
    scale = params['gamma'] / jnp.sqrt(params['var'] + eps)
    shift = params['beta'] - params['mean'] * scale
    s1 = scale[:C1].reshape(1, C1).astype(jnp.float32)
    b1 = shift[:C1].reshape(1, C1).astype(jnp.float32)
    s2 = scale[C1:].reshape(1, C2).astype(jnp.float32)
    b2 = shift[C1:].reshape(1, C2).astype(jnp.float32)

    # Kernel-friendly weight layouts.
    w1k = jnp.transpose(w1[:, :, 0, 0]).astype(compute_dtype)           # (Cin, C1)
    w2k = jnp.transpose(w2, (2, 3, 1, 0)).reshape(9, Cin, C2).astype(compute_dtype)

    # NCHW -> NHWC (channels on lanes), pad the 3x3 halo, and build overlapping
    # row-tiles so the grid can pipeline with plain (non-overlapping) BlockSpecs.
    TH = _pick_row_tile(H, W, Cin)
    nT = H // TH
    xh = jnp.transpose(x, (0, 2, 3, 1))                                 # (N,H,W,Cin)
    xp = jnp.pad(xh, ((0, 0), (1, 1), (1, 1), (0, 0)))                  # (N,H+2,W+2,Cin)
    x_tiles = jnp.stack(
        [xp[:, t * TH:t * TH + TH + 2] for t in range(nT)], axis=1
    ).astype(compute_dtype)                                             # (N,nT,TH+2,W+2,Cin)

    out_nhwc = pl.pallas_call(
        _mixconv_kernel,
        out_shape=jax.ShapeDtypeStruct((N, H, W, C), jnp.float32),
        grid=(N, nT),
        in_specs=[
            pl.BlockSpec((None, None, TH + 2, W + 2, Cin),
                         lambda n, t: (n, t, 0, 0, 0)),
            pl.BlockSpec((Cin, C1), lambda n, t: (0, 0)),
            pl.BlockSpec((9, Cin, C2), lambda n, t: (0, 0, 0)),
            pl.BlockSpec((1, C1), lambda n, t: (0, 0)),
            pl.BlockSpec((1, C1), lambda n, t: (0, 0)),
            pl.BlockSpec((1, C2), lambda n, t: (0, 0)),
            pl.BlockSpec((1, C2), lambda n, t: (0, 0)),
        ],
        out_specs=pl.BlockSpec((None, TH, W, C), lambda n, t: (n, t, 0, 0)),
        compiler_params=pltpu.CompilerParams(
            dimension_semantics=("parallel", "parallel")),
    )(x_tiles, w1k, w2k, s1, b1, s2, b2)

    # TODO(synk): when chained inside a larger NHWC-resident network, skip the
    # NCHW<->NHWC transposes at both ends of this wrapper.
    return jnp.transpose(out_nhwc, (0, 3, 1, 2))                        # NCHW


# ----------------------------------------------------------------------------
# parameters + pure-JAX reference (for correctness check only)
# ----------------------------------------------------------------------------
def init_params(key, c1, c2, k=(1, 3)):
    groups = len(k)
    c_ = _split_channels(c2, groups)
    keys = jax.random.split(key, groups + 4)
    ws = []
    for g in range(groups):
        fan_in = c1 * k[g] * k[g]
        w = jax.random.normal(keys[g], (c_[g], c1, k[g], k[g]), jnp.float32)
        ws.append(w / jnp.sqrt(float(fan_in)))
    kg, kb, km, kv = keys[groups:groups + 4]
    gamma = 1.0 + 0.1 * jax.random.normal(kg, (c2,), jnp.float32)
    beta = 0.1 * jax.random.normal(kb, (c2,), jnp.float32)
    mean = 0.1 * jax.random.normal(km, (c2,), jnp.float32)
    var = jnp.abs(jax.random.normal(kv, (c2,), jnp.float32)) + 0.5
    return dict(w1=ws[0], w2=ws[1], gamma=gamma, beta=beta, mean=mean, var=var)


def reference_forward(x, params, eps=1e-5):
    hp = lax.Precision.HIGHEST
    y1 = lax.conv_general_dilated(
        x, params['w1'], (1, 1), [(0, 0), (0, 0)],
        dimension_numbers=('NCHW', 'OIHW', 'NCHW'), precision=hp)
    y2 = lax.conv_general_dilated(
        x, params['w2'], (1, 1), [(1, 1), (1, 1)],
        dimension_numbers=('NCHW', 'OIHW', 'NCHW'), precision=hp)
    y = jnp.concatenate([y1, y2], axis=1)
    scale = params['gamma'] / jnp.sqrt(params['var'] + eps)
    y = ((y - params['mean'][None, :, None, None])
         * scale[None, :, None, None] + params['beta'][None, :, None, None])
    y = jnp.where(y > 0, y, 0.1 * y)                  # LeakyReLU(0.1)
    return x + y


if __name__ == "__main__":
    key = jax.random.PRNGKey(0)
    kx, kp = jax.random.split(key)
    x = jax.random.normal(kx, (2, 4, 16, 16), jnp.float32)
    params = init_params(kp, c1=4, c2=4, k=(1, 3))

    y = mixconv2d_forward(x, params, k=(1, 3), stride=1)
    jax.block_until_ready(y)

    y_ref = reference_forward(x, params)
    assert y.shape == y_ref.shape
    assert jnp.allclose(y, y_ref, atol=1e-4, rtol=1e-4), \
        float(jnp.max(jnp.abs(y - y_ref)))
    print("KERNEL_OK")
</pallas_src>

<mosaic_0001>
module attributes {stable_mosaic.version = 11 : i64} {
  func.func @_mixconv_kernel(%arg0: i32, %arg1: i32, %arg2: memref<1x1x18x18x4xf32, #tpu.memory_space<vmem>>, %arg3: memref<4x2xf32, #tpu.memory_space<vmem>>, %arg4: memref<9x4x2xf32, #tpu.memory_space<vmem>>, %arg5: memref<1x2xf32, #tpu.memory_space<vmem>>, %arg6: memref<1x2xf32, #tpu.memory_space<vmem>>, %arg7: memref<1x2xf32, #tpu.memory_space<vmem>>, %arg8: memref<1x2xf32, #tpu.memory_space<vmem>>, %arg9: memref<1x16x16x4xf32, #tpu.memory_space<vmem>>) attributes {dimension_semantics = [#tpu.dimension_semantics<parallel>, #tpu.dimension_semantics<parallel>], iteration_bounds = array<i64: 2, 1>, scalar_prefetch = 0 : i64, scratch_operands = 0 : i64, tpu.core_type = #tpu.core_type<tc>, window_params = [{transform_indices = @transform_0, window_bounds = array<i64: 1, 1, 18, 18, 4>}, {pipeline_mode = #tpu.pipeline_mode<synchronous>, transform_indices = @transform_1, window_bounds = array<i64: 4, 2>}, {pipeline_mode = #tpu.pipeline_mode<synchronous>, transform_indices = @transform_2, window_bounds = array<i64: 9, 4, 2>}, {pipeline_mode = #tpu.pipeline_mode<synchronous>, transform_indices = @transform_3, window_bounds = array<i64: 1, 2>}, {pipeline_mode = #tpu.pipeline_mode<synchronous>, transform_indices = @transform_4, window_bounds = array<i64: 1, 2>}, {pipeline_mode = #tpu.pipeline_mode<synchronous>, transform_indices = @transform_5, window_bounds = array<i64: 1, 2>}, {pipeline_mode = #tpu.pipeline_mode<synchronous>, transform_indices = @transform_6, window_bounds = array<i64: 1, 2>}, {transform_indices = @transform_7, window_bounds = array<i64: 1, 16, 16, 4>}]} {
    %c0 = arith.constant 0 : index
    %c0_0 = arith.constant 0 : index
    %c0_1 = arith.constant 0 : index
    %c0_2 = arith.constant 0 : index
    %c0_3 = arith.constant 0 : index
    %0 = vector.load %arg2[%c0, %c0_0, %c0_1, %c0_2, %c0_3] : memref<1x1x18x18x4xf32, #tpu.memory_space<vmem>>, vector<1x1x18x18x4xf32>
    %1 = vector.shape_cast %0 : vector<1x1x18x18x4xf32> to vector<18x18x4xf32>
    %2 = vector.extract_strided_slice %1 {offsets = [1, 1, 0], sizes = [16, 16, 4], strides = [1, 1, 1]} : vector<18x18x4xf32> to vector<16x16x4xf32>
    %3 = vector.shape_cast %2 : vector<16x16x4xf32> to vector<256x4xf32>
    %c0_4 = arith.constant 0 : index
    %c0_5 = arith.constant 0 : index
    %4 = vector.load %arg3[%c0_4, %c0_5] : memref<4x2xf32, #tpu.memory_space<vmem>>, vector<4x2xf32>
    %cst = arith.constant dense<0.000000e+00> : vector<256x2xf32>
    %5 = tpu.matmul %3, %4, %cst {dimension_numbers = #tpu.dot_dimension_numbers<[1], [0], [0], [1], [0, 0, 1, 1], [], []>} : vector<256x4xf32>, vector<4x2xf32>, vector<256x2xf32> -> vector<256x2xf32>
    %c0_6 = arith.constant 0 : index
    %c0_7 = arith.constant 0 : index
    %6 = vector.load %arg5[%c0_6, %c0_7] : memref<1x2xf32, #tpu.memory_space<vmem>>, vector<1x2xf32>
    %7 = vector.broadcast %6 : vector<1x2xf32> to vector<256x2xf32>
    %8 = arith.mulf %5, %7 : vector<256x2xf32>
    %c0_8 = arith.constant 0 : index
    %c0_9 = arith.constant 0 : index
    %9 = vector.load %arg6[%c0_8, %c0_9] : memref<1x2xf32, #tpu.memory_space<vmem>>, vector<1x2xf32>
    %10 = vector.broadcast %9 : vector<1x2xf32> to vector<256x2xf32>
    %11 = arith.addf %8, %10 : vector<256x2xf32>
    %cst_10 = arith.constant 0.000000e+00 : f32
    %12 = vector.broadcast %cst_10 : f32 to vector<256x2xf32>
    %13 = vector.extract_strided_slice %1 {offsets = [0, 0, 0], sizes = [16, 16, 4], strides = [1, 1, 1]} : vector<18x18x4xf32> to vector<16x16x4xf32>
    %14 = vector.shape_cast %13 : vector<16x16x4xf32> to vector<256x4xf32>
    %c0_11 = arith.constant 0 : index
    %c0_12 = arith.constant 0 : index
    %c0_13 = arith.constant 0 : index
    %15 = vector.load %arg4[%c0_11, %c0_12, %c0_13] : memref<9x4x2xf32, #tpu.memory_space<vmem>>, vector<1x4x2xf32>
    %16 = vector.shape_cast %15 : vector<1x4x2xf32> to vector<4x2xf32>
    %cst_14 = arith.constant dense<0.000000e+00> : vector<256x2xf32>
    %17 = tpu.matmul %14, %16, %cst_14 {dimension_numbers = #tpu.dot_dimension_numbers<[1], [0], [0], [1], [0, 0, 1, 1], [], []>} : vector<256x4xf32>, vector<4x2xf32>, vector<256x2xf32> -> vector<256x2xf32>
    %18 = arith.addf %12, %17 : vector<256x2xf32>
    %19 = vector.extract_strided_slice %1 {offsets = [0, 1, 0], sizes = [16, 16, 4], strides = [1, 1, 1]} : vector<18x18x4xf32> to vector<16x16x4xf32>
    %20 = vector.shape_cast %19 : vector<16x16x4xf32> to vector<256x4xf32>
    %c1 = arith.constant 1 : index
    %c0_15 = arith.constant 0 : index
    %c0_16 = arith.constant 0 : index
    %21 = vector.load %arg4[%c1, %c0_15, %c0_16] : memref<9x4x2xf32, #tpu.memory_space<vmem>>, vector<1x4x2xf32>
    %22 = vector.shape_cast %21 : vector<1x4x2xf32> to vector<4x2xf32>
    %cst_17 = arith.constant dense<0.000000e+00> : vector<256x2xf32>
    %23 = tpu.matmul %20, %22, %cst_17 {dimension_numbers = #tpu.dot_dimension_numbers<[1], [0], [0], [1], [0, 0, 1, 1], [], []>} : vector<256x4xf32>, vector<4x2xf32>, vector<256x2xf32> -> vector<256x2xf32>
    %24 = arith.addf %18, %23 : vector<256x2xf32>
    %25 = vector.extract_strided_slice %1 {offsets = [0, 2, 0], sizes = [16, 16, 4], strides = [1, 1, 1]} : vector<18x18x4xf32> to vector<16x16x4xf32>
    %26 = vector.shape_cast %25 : vector<16x16x4xf32> to vector<256x4xf32>
    %c2 = arith.constant 2 : index
    %c0_18 = arith.constant 0 : index
    %c0_19 = arith.constant 0 : index
    %27 = vector.load %arg4[%c2, %c0_18, %c0_19] : memref<9x4x2xf32, #tpu.memory_space<vmem>>, vector<1x4x2xf32>
    %28 = vector.shape_cast %27 : vector<1x4x2xf32> to vector<4x2xf32>
    %cst_20 = arith.constant dense<0.000000e+00> : vector<256x2xf32>
    %29 = tpu.matmul %26, %28, %cst_20 {dimension_numbers = #tpu.dot_dimension_numbers<[1], [0], [0], [1], [0, 0, 1, 1], [], []>} : vector<256x4xf32>, vector<4x2xf32>, vector<256x2xf32> -> vector<256x2xf32>
    %30 = arith.addf %24, %29 : vector<256x2xf32>
    %31 = vector.extract_strided_slice %1 {offsets = [1, 0, 0], sizes = [16, 16, 4], strides = [1, 1, 1]} : vector<18x18x4xf32> to vector<16x16x4xf32>
    %32 = vector.shape_cast %31 : vector<16x16x4xf32> to vector<256x4xf32>
    %c3 = arith.constant 3 : index
    %c0_21 = arith.constant 0 : index
    %c0_22 = arith.constant 0 : index
    %33 = vector.load %arg4[%c3, %c0_21, %c0_22] : memref<9x4x2xf32, #tpu.memory_space<vmem>>, vector<1x4x2xf32>
    %34 = vector.shape_cast %33 : vector<1x4x2xf32> to vector<4x2xf32>
    %cst_23 = arith.constant dense<0.000000e+00> : vector<256x2xf32>
    %35 = tpu.matmul %32, %34, %cst_23 {dimension_numbers = #tpu.dot_dimension_numbers<[1], [0], [0], [1], [0, 0, 1, 1], [], []>} : vector<256x4xf32>, vector<4x2xf32>, vector<256x2xf32> -> vector<256x2xf32>
    %36 = arith.addf %30, %35 : vector<256x2xf32>
    %37 = vector.extract_strided_slice %1 {offsets = [1, 1, 0], sizes = [16, 16, 4], strides = [1, 1, 1]} : vector<18x18x4xf32> to vector<16x16x4xf32>
    %38 = vector.shape_cast %37 : vector<16x16x4xf32> to vector<256x4xf32>
    %c4 = arith.constant 4 : index
    %c0_24 = arith.constant 0 : index
    %c0_25 = arith.constant 0 : index
    %39 = vector.load %arg4[%c4, %c0_24, %c0_25] : memref<9x4x2xf32, #tpu.memory_space<vmem>>, vector<1x4x2xf32>
    %40 = vector.shape_cast %39 : vector<1x4x2xf32> to vector<4x2xf32>
    %cst_26 = arith.constant dense<0.000000e+00> : vector<256x2xf32>
    %41 = tpu.matmul %38, %40, %cst_26 {dimension_numbers = #tpu.dot_dimension_numbers<[1], [0], [0], [1], [0, 0, 1, 1], [], []>} : vector<256x4xf32>, vector<4x2xf32>, vector<256x2xf32> -> vector<256x2xf32>
    %42 = arith.addf %36, %41 : vector<256x2xf32>
    %43 = vector.extract_strided_slice %1 {offsets = [1, 2, 0], sizes = [16, 16, 4], strides = [1, 1, 1]} : vector<18x18x4xf32> to vector<16x16x4xf32>
    %44 = vector.shape_cast %43 : vector<16x16x4xf32> to vector<256x4xf32>
    %c5 = arith.constant 5 : index
    %c0_27 = arith.constant 0 : index
    %c0_28 = arith.constant 0 : index
    %45 = vector.load %arg4[%c5, %c0_27, %c0_28] : memref<9x4x2xf32, #tpu.memory_space<vmem>>, vector<1x4x2xf32>
    %46 = vector.shape_cast %45 : vector<1x4x2xf32> to vector<4x2xf32>
    %cst_29 = arith.constant dense<0.000000e+00> : vector<256x2xf32>
    %47 = tpu.matmul %44, %46, %cst_29 {dimension_numbers = #tpu.dot_dimension_numbers<[1], [0], [0], [1], [0, 0, 1, 1], [], []>} : vector<256x4xf32>, vector<4x2xf32>, vector<256x2xf32> -> vector<256x2xf32>
    %48 = arith.addf %42, %47 : vector<256x2xf32>
    %49 = vector.extract_strided_slice %1 {offsets = [2, 0, 0], sizes = [16, 16, 4], strides = [1, 1, 1]} : vector<18x18x4xf32> to vector<16x16x4xf32>
    %50 = vector.shape_cast %49 : vector<16x16x4xf32> to vector<256x4xf32>
    %c6 = arith.constant 6 : index
    %c0_30 = arith.constant 0 : index
    %c0_31 = arith.constant 0 : index
    %51 = vector.load %arg4[%c6, %c0_30, %c0_31] : memref<9x4x2xf32, #tpu.memory_space<vmem>>, vector<1x4x2xf32>
    %52 = vector.shape_cast %51 : vector<1x4x2xf32> to vector<4x2xf32>
    %cst_32 = arith.constant dense<0.000000e+00> : vector<256x2xf32>
    %53 = tpu.matmul %50, %52, %cst_32 {dimension_numbers = #tpu.dot_dimension_numbers<[1], [0], [0], [1], [0, 0, 1, 1], [], []>} : vector<256x4xf32>, vector<4x2xf32>, vector<256x2xf32> -> vector<256x2xf32>
    %54 = arith.addf %48, %53 : vector<256x2xf32>
    %55 = vector.extract_strided_slice %1 {offsets = [2, 1, 0], sizes = [16, 16, 4], strides = [1, 1, 1]} : vector<18x18x4xf32> to vector<16x16x4xf32>
    %56 = vector.shape_cast %55 : vector<16x16x4xf32> to vector<256x4xf32>
    %c7 = arith.constant 7 : index
    %c0_33 = arith.constant 0 : index
    %c0_34 = arith.constant 0 : index
    %57 = vector.load %arg4[%c7, %c0_33, %c0_34] : memref<9x4x2xf32, #tpu.memory_space<vmem>>, vector<1x4x2xf32>
    %58 = vector.shape_cast %57 : vector<1x4x2xf32> to vector<4x2xf32>
    %cst_35 = arith.constant dense<0.000000e+00> : vector<256x2xf32>
    %59 = tpu.matmul %56, %58, %cst_35 {dimension_numbers = #tpu.dot_dimension_numbers<[1], [0], [0], [1], [0, 0, 1, 1], [], []>} : vector<256x4xf32>, vector<4x2xf32>, vector<256x2xf32> -> vector<256x2xf32>
    %60 = arith.addf %54, %59 : vector<256x2xf32>
    %61 = vector.extract_strided_slice %1 {offsets = [2, 2, 0], sizes = [16, 16, 4], strides = [1, 1, 1]} : vector<18x18x4xf32> to vector<16x16x4xf32>
    %62 = vector.shape_cast %61 : vector<16x16x4xf32> to vector<256x4xf32>
    %c8 = arith.constant 8 : index
    %c0_36 = arith.constant 0 : index
    %c0_37 = arith.constant 0 : index
    %63 = vector.load %arg4[%c8, %c0_36, %c0_37] : memref<9x4x2xf32, #tpu.memory_space<vmem>>, vector<1x4x2xf32>
    %64 = vector.shape_cast %63 : vector<1x4x2xf32> to vector<4x2xf32>
    %cst_38 = arith.constant dense<0.000000e+00> : vector<256x2xf32>
    %65 = tpu.matmul %62, %64, %cst_38 {dimension_numbers = #tpu.dot_dimension_numbers<[1], [0], [0], [1], [0, 0, 1, 1], [], []>} : vector<256x4xf32>, vector<4x2xf32>, vector<256x2xf32> -> vector<256x2xf32>
    %66 = arith.addf %60, %65 : vector<256x2xf32>
    %c0_39 = arith.constant 0 : index
    %c0_40 = arith.constant 0 : index
    %67 = vector.load %arg7[%c0_39, %c0_40] : memref<1x2xf32, #tpu.memory_space<vmem>>, vector<1x2xf32>
    %68 = vector.broadcast %67 : vector<1x2xf32> to vector<256x2xf32>
    %69 = arith.mulf %66, %68 : vector<256x2xf32>
    %c0_41 = arith.constant 0 : index
    %c0_42 = arith.constant 0 : index
    %70 = vector.load %arg8[%c0_41, %c0_42] : memref<1x2xf32, #tpu.memory_space<vmem>>, vector<1x2xf32>
    %71 = vector.broadcast %70 : vector<1x2xf32> to vector<256x2xf32>
    %72 = arith.addf %69, %71 : vector<256x2xf32>
    %cst_43 = arith.constant 0.000000e+00 : f32
    %73 = vector.broadcast %cst_43 : f32 to vector<256x2xf32>
    %74 = arith.cmpf ogt, %11, %73 : vector<256x2xf32>
    %cst_44 = arith.constant 1.000000e-01 : f32
    %75 = vector.broadcast %cst_44 : f32 to vector<256x2xf32>
    %76 = arith.mulf %75, %11 : vector<256x2xf32>
    %77 = arith.select %74, %11, %76 : vector<256x2xi1>, vector<256x2xf32>
    %cst_45 = arith.constant 0.000000e+00 : f32
    %78 = vector.broadcast %cst_45 : f32 to vector<256x2xf32>
    %79 = arith.cmpf ogt, %72, %78 : vector<256x2xf32>
    %cst_46 = arith.constant 1.000000e-01 : f32
    %80 = vector.broadcast %cst_46 : f32 to vector<256x2xf32>
    %81 = arith.mulf %80, %72 : vector<256x2xf32>
    %82 = arith.select %79, %72, %81 : vector<256x2xi1>, vector<256x2xf32>
    %83 = tpu.concatenate %77, %82 in 1 : vector<256x2xf32>, vector<256x2xf32> -> vector<256x4xf32>
    %84 = arith.addf %83, %3 : vector<256x4xf32>
    %85 = vector.shape_cast %84 : vector<256x4xf32> to vector<16x16x4xf32>
    %c0_47 = arith.constant 0 : index
    %c0_48 = arith.constant 0 : index
    %c0_49 = arith.constant 0 : index
    %c0_50 = arith.constant 0 : index
    %86 = vector.load %arg9[%c0_47, %c0_48, %c0_49, %c0_50] : memref<1x16x16x4xf32, #tpu.memory_space<vmem>>, vector<1x16x16x4xf32>
    %87 = vector.shape_cast %86 : vector<1x16x16x4xf32> to vector<16x16x4xf32>
    %88 = vector.shape_cast %85 : vector<16x16x4xf32> to vector<1x16x16x4xf32>
    tpu.vector_store %arg9[%c0_47, %c0_48, %c0_49, %c0_50], %88 {strides = array<i32>} : memref<1x16x16x4xf32, #tpu.memory_space<vmem>>, vector<1x16x16x4xf32>,
    return
  }
  func.func @transform_0(%arg0: i32, %arg1: i32) -> (i32, i32, i32, i32, i32) {
    %c0_i32 = arith.constant 0 : i32
    %c0_i32_0 = arith.constant 0 : i32
    %c0_i32_1 = arith.constant 0 : i32
    %c0_i32_2 = arith.constant 0 : i32
    return %arg0, %arg1, %c0_i32, %c0_i32_0, %c0_i32_1 : i32, i32, i32, i32, i32
  }
  func.func @transform_1(%arg0: i32, %arg1: i32) -> (i32, i32) {
    %c0_i32 = arith.constant 0 : i32
    %c0_i32_0 = arith.constant 0 : i32
    %c0_i32_1 = arith.constant 0 : i32
    return %c0_i32, %c0_i32_0 : i32, i32
  }
  func.func @transform_2(%arg0: i32, %arg1: i32) -> (i32, i32, i32) {
    %c0_i32 = arith.constant 0 : i32
    %c0_i32_0 = arith.constant 0 : i32
    %c0_i32_1 = arith.constant 0 : i32
    %c0_i32_2 = arith.constant 0 : i32
    return %c0_i32, %c0_i32_0, %c0_i32_1 : i32, i32, i32
  }
  func.func @transform_3(%arg0: i32, %arg1: i32) -> (i32, i32) {
    %c0_i32 = arith.constant 0 : i32
    %c0_i32_0 = arith.constant 0 : i32
    %c0_i32_1 = arith.constant 0 : i32
    return %c0_i32, %c0_i32_0 : i32, i32
  }
  func.func @transform_4(%arg0: i32, %arg1: i32) -> (i32, i32) {
    %c0_i32 = arith.constant 0 : i32
    %c0_i32_0 = arith.constant 0 : i32
    %c0_i32_1 = arith.constant 0 : i32
    return %c0_i32, %c0_i32_0 : i32, i32
  }
  func.func @transform_5(%arg0: i32, %arg1: i32) -> (i32, i32) {
    %c0_i32 = arith.constant 0 : i32
    %c0_i32_0 = arith.constant 0 : i32
    %c0_i32_1 = arith.constant 0 : i32
    return %c0_i32, %c0_i32_0 : i32, i32
  }
  func.func @transform_6(%arg0: i32, %arg1: i32) -> (i32, i32) {
    %c0_i32 = arith.constant 0 : i32
    %c0_i32_0 = arith.constant 0 : i32
    %c0_i32_1 = arith.constant 0 : i32
    return %c0_i32, %c0_i32_0 : i32, i32
  }
  func.func @transform_7(%arg0: i32, %arg1: i32) -> (i32, i32, i32, i32) {
    %c0_i32 = arith.constant 0 : i32
    %c0_i32_0 = arith.constant 0 : i32
    %c0_i32_1 = arith.constant 0 : i32
    return %arg0, %arg1, %c0_i32, %c0_i32_0 : i32, i32, i32, i32
  }
}

</mosaic_0001>

<llo_original>
// kernel: tpu_custom_call.1
$region0: #{tpu_custom_call.1}
  #allocation0 [shape = 'u32[]', space=smem, size = 0x4, offset = 0x4, fixed_abs, tag = 'smem constant byte address 0x4 - core index']
  #allocation1 [shape = 'u32[144,128]{1,0:T(1,128)}', space=vmem, size = 0x12000, scoped, tag = 'internal scratch']
  %s0 = inlined_call_operand.vmem [shape: f32[2,1,18,18,4], index: 0, kind: input, shape index: {}]
  %s1 = inlined_call_operand.vmem [shape: f32[4,2], index: 1, kind: input, shape index: {}]
  %s2 = inlined_call_operand.vmem [shape: f32[9,4,2], index: 2, kind: input, shape index: {}]
  %s3 = inlined_call_operand.vmem [shape: f32[1,2], index: 3, kind: input, shape index: {}]
  %s4 = inlined_call_operand.vmem [shape: f32[1,2], index: 4, kind: input, shape index: {}]
  %s5 = inlined_call_operand.vmem [shape: f32[1,2], index: 5, kind: input, shape index: {}]
  %s6 = inlined_call_operand.vmem [shape: f32[1,2], index: 6, kind: input, shape index: {}]
  %s7 = inlined_call_operand.vmem [shape: f32[2,16,16,4], index: 7, kind: output, shape index: {}]
  %s8 = sld [smem:[#allocation0]]
  $region61: #{tpu_custom_call.1} parent=0
    _
  %s10 = ssub.s32 1, %s8
  %s11 = scalar_select 0, %s10, %s8
  loop: start=0, step=1, limit=4
  $region2: #{tpu_custom_call.1} parent=0 // loop_pre_header
    _
  $region3: #{tpu_custom_call.1} parent=0 // loop_header
    %s13 = sphi 0, %s17
    %p14 = scmp.ge.s32.totalorder %s13, 4
    %s20 = sphi 0, %s32
    %s21 = sphi 0, %s28
    %s22 = sphi 0, %s20
    %s23 = sphi 0, %s21
    %s24 = sphi 0, %s22
    %s25 = sphi 0, %s23
    %s37 = sphi 0, %s39
    %s40 = sphi 0, %s37
    %s41 = sphi 0, %s40
    %s57 = sphi 0, %s41
    %s61 = sphi 0, %s61
    %s63 = sphi 0, %s61
    %s64 = sphi 0, %s63
    %s78 = sphi 0, %s64
    %s82 = sphi 0, %s82
    %s84 = sphi 0, %s82
    %s85 = sphi 0, %s84
    %s99 = sphi 0, %s85
    %s103 = sphi 0, %s103
    %s105 = sphi 0, %s103
    %s106 = sphi 0, %s105
    %s120 = sphi 0, %s106
    %s124 = sphi 0, %s124
    %s126 = sphi 0, %s124
    %s127 = sphi 0, %s126
    %s141 = sphi 0, %s127
    %s145 = sphi 0, %s145
    %s147 = sphi 0, %s145
    %s148 = sphi 0, %s147
    %s162 = sphi 0, %s148
    %s166 = sphi 0, %s166
    %s168 = sphi 0, %s166
    %s169 = sphi 0, %s168
    %s183 = sphi 0, %s169
    %s191 = sphi 0, %s193
    %s194 = sphi 0, %s191
    %s195 = sphi 0, %s194
    %s211 = sphi 0, %s195
  $region4: #{tpu_custom_call.1} parent=0 // loop_header_branch
    %16 = sbr.rel (%p14) target = $region8
  $region5: #{tpu_custom_call.1} parent=0 // loop_body
    %s18 = ssub.s32 %s13, 1
    %s19 = ssub.s32 %s13, 2
    %s26 = sadd.s32 1, %s21
    %p27 = scmp.ge.s32.totalorder %s26, 1
    %s28 = scalar_select %p27, 0, %s26
    %s29 = sadd.s32 1, %s20
    %s30 = scalar_select %p27, %s29, %s20
    %p31 = scmp.ge.s32.totalorder %s30, 2
    %s32 = scalar_select %p31, 0, %s30
    %s33 = ssub.s32 %s20, %s32
    %s34 = ssub.s32 %s21, %s28
    %s35 = sor.u32 %s33, %s34
    %p36 = scmp.eq.s32.totalorder %s35, 0
    %s38 = sadd.s32 %s37, 1
    %s39 = scalar_select %p36, %s37, %s38
    %p42 = pneg %p36
    %p43 = scmp.eq.s32.totalorder %s13, 1
    %p44 = por %p42, %p43
    %p45 = scmp.ne.s32.totalorder %s37, %s40
    %p46 = scmp.eq.s32.totalorder %s13, 0
    %p47 = por %p45, %p46
    %p48 = scmp.ne.s32.totalorder %s37, %s40
    %p49 = scmp.eq.s32.totalorder %s18, 1
    %p50 = por %p48, %p49
    %p51 = scmp.ne.s32.totalorder %s40, %s41
    %p52 = scmp.eq.s32.totalorder %s18, 0
    %p53 = por %p51, %p52
    %p54 = scmp.ne.s32.totalorder %s40, %s41
    %p55 = scmp.eq.s32.totalorder %s19, 1
    %p56 = por %p54, %p55
    %p58 = scmp.ne.s32.totalorder %s41, %s57
    %p59 = scmp.eq.s32.totalorder %s19, 0
    %p60 = por %p58, %p59
    %s62 = sadd.s32 %s61, 1
    %p65 = scmp.eq.s32.totalorder %s13, 1
    %p66 = scmp.ne.s32.totalorder %s61, %s63
    %p67 = scmp.eq.s32.totalorder %s13, 0
    %p68 = por %p66, %p67
    %p69 = scmp.ne.s32.totalorder %s61, %s63
    %p70 = scmp.eq.s32.totalorder %s18, 1
    %p71 = por %p69, %p70
    %p72 = scmp.ne.s32.totalorder %s63, %s64
    %p73 = scmp.eq.s32.totalorder %s18, 0
    %p74 = por %p72, %p73
    %p75 = scmp.ne.s32.totalorder %s63, %s64
    %p76 = scmp.eq.s32.totalorder %s19, 1
    %p77 = por %p75, %p76
    %p79 = scmp.ne.s32.totalorder %s64, %s78
    %p80 = scmp.eq.s32.totalorder %s19, 0
    %p81 = por %p79, %p80
    %s83 = sadd.s32 %s82, 1
    %p86 = scmp.eq.s32.totalorder %s13, 1
    %p87 = scmp.ne.s32.totalorder %s82, %s84
    %p88 = scmp.eq.s32.totalorder %s13, 0
    %p89 = por %p87, %p88
    %p90 = scmp.ne.s32.totalorder %s82, %s84
    %p91 = scmp.eq.s32.totalorder %s18, 1
    %p92 = por %p90, %p91
    %p93 = scmp.ne.s32.totalorder %s84, %s85
    %p94 = scmp.eq.s32.totalorder %s18, 0
    %p95 = por %p93, %p94
    %p96 = scmp.ne.s32.totalorder %s84, %s85
    %p97 = scmp.eq.s32.totalorder %s19, 1
    %p98 = por %p96, %p97
    %p100 = scmp.ne.s32.totalorder %s85, %s99
    %p101 = scmp.eq.s32.totalorder %s19, 0
    %p102 = por %p100, %p101
    %s104 = sadd.s32 %s103, 1
    %p107 = scmp.eq.s32.totalorder %s13, 1
    %p108 = scmp.ne.s32.totalorder %s103, %s105
    %p109 = scmp.eq.s32.totalorder %s13, 0
    %p110 = por %p108, %p109
    %p111 = scmp.ne.s32.totalorder %s103, %s105
    %p112 = scmp.eq.s32.totalorder %s18, 1
    %p113 = por %p111, %p112
    %p114 = scmp.ne.s32.totalorder %s105, %s106
    %p115 = scmp.eq.s32.totalorder %s18, 0
    %p116 = por %p114, %p115
    %p117 = scmp.ne.s32.totalorder %s105, %s106
    %p118 = scmp.eq.s32.totalorder %s19, 1
    %p119 = por %p117, %p118
    %p121 = scmp.ne.s32.totalorder %s106, %s120
    %p122 = scmp.eq.s32.totalorder %s19, 0
    %p123 = por %p121, %p122
    %s125 = sadd.s32 %s124, 1
    %p128 = scmp.eq.s32.totalorder %s13, 1
    %p129 = scmp.ne.s32.totalorder %s124, %s126
    %p130 = scmp.eq.s32.totalorder %s13, 0
    %p131 = por %p129, %p130
    %p132 = scmp.ne.s32.totalorder %s124, %s126
    %p133 = scmp.eq.s32.totalorder %s18, 1
    %p134 = por %p132, %p133
    %p135 = scmp.ne.s32.totalorder %s126, %s127
    %p136 = scmp.eq.s32.totalorder %s18, 0
    %p137 = por %p135, %p136
    %p138 = scmp.ne.s32.totalorder %s126, %s127
    %p139 = scmp.eq.s32.totalorder %s19, 1
    %p140 = por %p138, %p139
    %p142 = scmp.ne.s32.totalorder %s127, %s141
    %p143 = scmp.eq.s32.totalorder %s19, 0
    %p144 = por %p142, %p143
    %s146 = sadd.s32 %s145, 1
    %p149 = scmp.eq.s32.totalorder %s13, 1
    %p150 = scmp.ne.s32.totalorder %s145, %s147
    %p151 = scmp.eq.s32.totalorder %s13, 0
    %p152 = por %p150, %p151
    %p153 = scmp.ne.s32.totalorder %s145, %s147
    %p154 = scmp.eq.s32.totalorder %s18, 1
    %p155 = por %p153, %p154
    %p156 = scmp.ne.s32.totalorder %s147, %s148
    %p157 = scmp.eq.s32.totalorder %s18, 0
    %p158 = por %p156, %p157
    %p159 = scmp.ne.s32.totalorder %s147, %s148
    %p160 = scmp.eq.s32.totalorder %s19, 1
    %p161 = por %p159, %p160
    %p163 = scmp.ne.s32.totalorder %s148, %s162
    %p164 = scmp.eq.s32.totalorder %s19, 0
    %p165 = por %p163, %p164
    %s167 = sadd.s32 %s166, 1
    %p170 = scmp.eq.s32.totalorder %s13, 1
    %p171 = scmp.ne.s32.totalorder %s166, %s168
    %p172 = scmp.eq.s32.totalorder %s13, 0
    %p173 = por %p171, %p172
    %p174 = scmp.ne.s32.totalorder %s166, %s168
    %p175 = scmp.eq.s32.totalorder %s18, 1
    %p176 = por %p174, %p175
    %p177 = scmp.ne.s32.totalorder %s168, %s169
    %p178 = scmp.eq.s32.totalorder %s18, 0
    %p179 = por %p177, %p178
    %p180 = scmp.ne.s32.totalorder %s168, %s169
    %p181 = scmp.eq.s32.totalorder %s19, 1
    %p182 = por %p180, %p181
    %p184 = scmp.ne.s32.totalorder %s169, %s183
    %p185 = scmp.eq.s32.totalorder %s19, 0
    %p186 = por %p184, %p185
    %s187 = ssub.s32 %s20, %s32
    %s188 = ssub.s32 %s21, %s28
    %s189 = sor.u32 %s187, %s188
    %p190 = scmp.eq.s32.totalorder %s189, 0
    %s192 = sadd.s32 %s191, 1
    %s193 = scalar_select %p190, %s191, %s192
    %p196 = pneg %p190
    %p197 = scmp.eq.s32.totalorder %s13, 1
    %p198 = por %p196, %p197
    %p199 = scmp.ne.s32.totalorder %s191, %s194
    %p200 = scmp.eq.s32.totalorder %s13, 0
    %p201 = por %p199, %p200
    %p202 = scmp.ne.s32.totalorder %s191, %s194
    %p203 = scmp.eq.s32.totalorder %s18, 1
    %p204 = por %p202, %p203
    %p205 = scmp.ne.s32.totalorder %s194, %s195
    %p206 = scmp.eq.s32.totalorder %s18, 0
    %p207 = por %p205, %p206
    %p208 = scmp.ne.s32.totalorder %s194, %s195
    %p209 = scmp.eq.s32.totalorder %s19, 1
    %p210 = por %p208, %p209
    %p212 = scmp.ne.s32.totalorder %s195, %s211
    %p213 = scmp.eq.s32.totalorder %s19, 0
    %p214 = por %p212, %p213
    %p215 = scmp.le.s32.totalorder 1, %s13
    %p216 = scmp.lt.s32.totalorder %s13, 3
    %p217 = pnand %p215, %p216
    %p218 = pneg %p217
    // Predicated region
    $region9: #{tpu_custom_call.1} parent=5 // pred_check
      _
    $region10: #{tpu_custom_call.1} parent=5 // pred_check_branch
      %220 = sbr.rel (%p217) target = $region12
    $region11: #{tpu_custom_call.1} parent=5 // pred_region
      %s221 = ssub.s32 %s13, 1
      // Predicated region
      $region13: #{tpu_custom_call.1} parent=11 // pred_check
        %p222 = pneg %p74
      $region14: #{tpu_custom_call.1} parent=11 // pred_check_branch
        %224 = sbr.rel (%p222) target = $region16
      $region15: #{tpu_custom_call.1} parent=11 // pred_region
        _
      $region16: #{tpu_custom_call.1} parent=11 // pred_fallthru
        _
      // Predicated region
      $region17: #{tpu_custom_call.1} parent=11 // pred_check
        %p225 = pneg %p95
      $region18: #{tpu_custom_call.1} parent=11 // pred_check_branch
        %227 = sbr.rel (%p225) target = $region20
      $region19: #{tpu_custom_call.1} parent=11 // pred_region
        _
      $region20: #{tpu_custom_call.1} parent=11 // pred_fallthru
        _
      // Predicated region
      $region21: #{tpu_custom_call.1} parent=11 // pred_check
        %p228 = pneg %p116
      $region22: #{tpu_custom_call.1} parent=11 // pred_check_branch
        %230 = sbr.rel (%p228) target = $region24
      $region23: #{tpu_custom_call.1} parent=11 // pred_region
        _
      $region24: #{tpu_custom_call.1} parent=11 // pred_fallthru
        _
      // Predicated region
      $region25: #{tpu_custom_call.1} parent=11 // pred_check
        %p231 = pneg %p137
      $region26: #{tpu_custom_call.1} parent=11 // pred_check_branch
        %233 = sbr.rel (%p231) target = $region28
      $region27: #{tpu_custom_call.1} parent=11 // pred_region
        _
      $region28: #{tpu_custom_call.1} parent=11 // pred_fallthru
        _
      // Predicated region
      $region29: #{tpu_custom_call.1} parent=11 // pred_check
        %p234 = pneg %p158
      $region30: #{tpu_custom_call.1} parent=11 // pred_check_branch
        %236 = sbr.rel (%p234) target = $region32
      $region31: #{tpu_custom_call.1} parent=11 // pred_region
        _
      $region32: #{tpu_custom_call.1} parent=11 // pred_fallthru
        _
      // Predicated region
      $region33: #{tpu_custom_call.1} parent=11 // pred_check
        %p237 = pneg %p179
      $region34: #{tpu_custom_call.1} parent=11 // pred_check_branch
        %239 = sbr.rel (%p237) target = $region36
      $region35: #{tpu_custom_call.1} parent=11 // pred_region
        _
      $region36: #{tpu_custom_call.1} parent=11 // pred_fallthru
        _
    $region12: #{tpu_custom_call.1} parent=5 // pred_fallthru
      _
    %p240 = scmp.lt.s32.totalorder %s13, 2
    // Predicated region
    $region37: #{tpu_custom_call.1} parent=5 // pred_check
      %p241 = pneg %p240
    $region38: #{tpu_custom_call.1} parent=5 // pred_check_branch
      %243 = sbr.rel (%p241) target = $region40
    $region39: #{tpu_custom_call.1} parent=5 // pred_region
      // Predicated region
      $region41: #{tpu_custom_call.1} parent=39 // pred_check
        %p244 = pneg %p47
      $region42: #{tpu_custom_call.1} parent=39 // pred_check_branch
        %246 = sbr.rel (%p244) target = $region44
      $region43: #{tpu_custom_call.1} parent=39 // pred_region
        %p247 = scmp.lt.s32.totalorder %s20, 1
        %s248 = scalar_select %p247, %s20, 1
        %p249 = scmp.lt.s32.totalorder %s21, 0
        %s250 = scalar_select %p249, %s21, 0
        %s251 = smul.addr %s250, 54
        %s252 = smul.addr %s248, 54
        %s253 = sadd.s32 %s251, %s252
        %s254 = smul.addr %s253, 8
        %s255 = scalar_lea.vmem %s0, %s254
      $region44: #{tpu_custom_call.1} parent=39 // pred_fallthru
        _
    $region40: #{tpu_custom_call.1} parent=5 // pred_fallthru
      _
    %p256 = scmp.le.s32.totalorder 1, %s13
    %p257 = scmp.lt.s32.totalorder %s13, 3
    %p258 = pnand %p256, %p257
    %p259 = pneg %p258
    // Predicated region
    $region45: #{tpu_custom_call.1} parent=5 // pred_check
      _
    $region46: #{tpu_custom_call.1} parent=5 // pred_check_branch
      %261 = sbr.rel (%p258) target = $region48
    $region47: #{tpu_custom_call.1} parent=5 // pred_region
      %s262 = ssub.s32 %s13, 1
      %p263 = scmp.lt.s32.totalorder %s22, 1
      %s264 = scalar_select %p263, %s22, 1
      %p265 = scmp.lt.s32.totalorder %s23, 0
      %s266 = scalar_select %p265, %s23, 0
      %s267 = smul.addr %s266, 54
      %s268 = smul.addr %s264, 54
      %s269 = sadd.s32 %s267, %s268
      %s270 = smul.addr %s269, 8
      %s271 = scalar_lea.vmem %s0, %s270
      %p272 = pneg %p53
      %p273 = pneg %p50
      %p274 = pneg %p74
      %p275 = pneg %p71
      %p276 = pneg %p95
      %p277 = pneg %p92
      %p278 = pneg %p116
      %p279 = pneg %p113
      %p280 = pneg %p137
      %p281 = pneg %p134
      %p282 = pneg %p158
      %p283 = pneg %p155
      %p284 = pneg %p179
      %p285 = pneg %p176
      %p286 = pneg %p207
      %p287 = pneg %p204
      %s288 = smul.u32 16, %s23
      %p289 = scmp.lt.s32.totalorder %s22, 1
      %s290 = scalar_select %p289, %s22, 1
      %p291 = scmp.lt.s32.totalorder %s288, 15
      %s292 = scalar_select %p291, %s288, 15
      %s293 = smul.addr %s292, 2
      %s294 = smul.addr %s290, 32
      %s295 = sadd.s32 %s293, %s294
      %s296 = smul.addr %s295, 8
      %s297 = scalar_lea.vmem %s7, %s296
      %p298 = scmp.lt.s32.totalorder %s22, 1
      %s299 = scalar_select %p298, %s22, 1
      %p300 = scmp.lt.s32.totalorder %s23, 0
      %s301 = scalar_select %p300, %s23, 0
      %s302 = smul.addr %s301, 54
      %s303 = smul.addr %s299, 54
      %s304 = sadd.s32 %s302, %s303
      %s305 = smul.addr %s304, 8
      %s306 = scalar_lea.vmem %s0, %s305
      %s307 = smul.u32 16, %s23
      %p308 = scmp.lt.s32.totalorder %s22, 1
      %s309 = scalar_select %p308, %s22, 1
      %p310 = scmp.lt.s32.totalorder %s307, 15
      %s311 = scalar_select %p310, %s307, 15
      %s312 = smul.addr %s311, 2
      %s313 = smul.addr %s309, 32
      %s314 = sadd.s32 %s312, %s313
      %s315 = smul.addr %s314, 8
      %s316 = scalar_lea.vmem %s7, %s315
      %s317 = smul.u32 16, %s23
      %v318 = vld [vmem:[%s306] sm:$0xff]
      %v319 = vld [vmem:[%s306 + $0x8] sm:$0xff]
      %v320 = vld [vmem:[%s306 + $0x10] sm:$0x3]
      %v321 = vld [vmem:[%s306 + $0x18] sm:$0xff]
      %v322 = vld [vmem:[%s306 + $0x20] sm:$0xff]
      %v323 = vld [vmem:[%s306 + $0x28] sm:$0x3]
      %v324 = vld [vmem:[%s306 + $0x30] sm:$0xff]
      %v325 = vld [vmem:[%s306 + $0x38] sm:$0xff]
      %v326 = vld [vmem:[%s306 + $0x40] sm:$0x3]
      %v327 = vld [vmem:[%s306 + $0x48] sm:$0xff]
      %v328 = vld [vmem:[%s306 + $0x50] sm:$0xff]
      %v329 = vld [vmem:[%s306 + $0x58] sm:$0x3]
      %v330 = vld [vmem:[%s306 + $0x60] sm:$0xff]
      %v331 = vld [vmem:[%s306 + $0x68] sm:$0xff]
      %v332 = vld [vmem:[%s306 + $0x70] sm:$0x3]
      %v333 = vld [vmem:[%s306 + $0x78] sm:$0xff]
      %v334 = vld [vmem:[%s306 + $0x80] sm:$0xff]
      %v335 = vld [vmem:[%s306 + $0x88] sm:$0x3]
      %v336 = vld [vmem:[%s306 + $0x90] sm:$0xff]
      %v337 = vld [vmem:[%s306 + $0x98] sm:$0xff]
      %v338 = vld [vmem:[%s306 + $0xa0] sm:$0x3]
      %v339 = vld [vmem:[%s306 + $0xa8] sm:$0xff]
      %v340 = vld [vmem:[%s306 + $0xb0] sm:$0xff]
      %v341 = vld [vmem:[%s306 + $0xb8] sm:$0x3]
      %v342 = vld [vmem:[%s306 + $0xc0] sm:$0xff]
      %v343 = vld [vmem:[%s306 + $0xc8] sm:$0xff]
      %v344 = vld [vmem:[%s306 + $0xd0] sm:$0x3]
      %v345 = vld [vmem:[%s306 + $0xd8] sm:$0xff]
      %v346 = vld [vmem:[%s306 + $0xe0] sm:$0xff]
      %v347 = vld [vmem:[%s306 + $0xe8] sm:$0x3]
      %v348 = vld [vmem:[%s306 + $0xf0] sm:$0xff]
      %v349 = vld [vmem:[%s306 + $0xf8] sm:$0xff]
      %v350 = vld [vmem:[%s306 + $0x100] sm:$0x3]
      %v351 = vld [vmem:[%s306 + $0x108] sm:$0xff]
      %v352 = vld [vmem:[%s306 + $0x110] sm:$0xff]
      %v353 = vld [vmem:[%s306 + $0x118] sm:$0x3]
      %v354 = vld [vmem:[%s306 + $0x120] sm:$0xff]
      %v355 = vld [vmem:[%s306 + $0x128] sm:$0xff]
      %v356 = vld [vmem:[%s306 + $0x130] sm:$0x3]
      %v357 = vld [vmem:[%s306 + $0x138] sm:$0xff]
      %v358 = vld [vmem:[%s306 + $0x140] sm:$0xff]
      %v359 = vld [vmem:[%s306 + $0x148] sm:$0x3]
      %v360 = vld [vmem:[%s306 + $0x150] sm:$0xff]
      %v361 = vld [vmem:[%s306 + $0x158] sm:$0xff]
      %v362 = vld [vmem:[%s306 + $0x160] sm:$0x3]
      %v363 = vld [vmem:[%s306 + $0x168] sm:$0xff]
      %v364 = vld [vmem:[%s306 + $0x170] sm:$0xff]
      %v365 = vld [vmem:[%s306 + $0x178] sm:$0x3]
      %v366 = vld [vmem:[%s306 + $0x180] sm:$0xff]
      %v367 = vld [vmem:[%s306 + $0x188] sm:$0xff]
      %v368 = vld [vmem:[%s306 + $0x190] sm:$0x3]
      %v369 = vld [vmem:[%s306 + $0x198] sm:$0xff]
      %v370 = vld [vmem:[%s306 + $0x1a0] sm:$0xff]
      %v371 = vld [vmem:[%s306 + $0x1a8] sm:$0x3]
      %vm420 = vcmask 1046528
      %v421 = vrot.slane %v321, 1
      %v422 = vrot.slane %v322, 1
      %v423 = vsel %vm420, %v421, %v422
      %v424 = vrot.slane %v323, 1
      %v425 = vsel %vm420, %v422, %v424
      %v426 = vrot.slane %v324, 1
      %v427 = vrot.slane %v325, 1
      %v428 = vsel %vm420, %v426, %v427
      %v429 = vrot.slane %v326, 1
      %v430 = vsel %vm420, %v427, %v429
      %v431 = vrot.slane %v327, 1
      %v432 = vrot.slane %v328, 1
      %v433 = vsel %vm420, %v431, %v432
      %v434 = vrot.slane %v329, 1
      %v435 = vsel %vm420, %v432, %v434
      %v436 = vrot.slane %v330, 1
      %v437 = vrot.slane %v331, 1
      %v438 = vsel %vm420, %v436, %v437
      %v439 = vrot.slane %v332, 1
      %v440 = vsel %vm420, %v437, %v439
      %v441 = vrot.slane %v333, 1
      %v442 = vrot.slane %v334, 1
      %v443 = vsel %vm420, %v441, %v442
      %v444 = vrot.slane %v335, 1
      %v445 = vsel %vm420, %v442, %v444
      %v446 = vrot.slane %v336, 1
      %v447 = vrot.slane %v337, 1
      %v448 = vsel %vm420, %v446, %v447
      %v449 = vrot.slane %v338, 1
      %v450 = vsel %vm420, %v447, %v449
      %v451 = vrot.slane %v339, 1
      %v452 = vrot.slane %v340, 1
      %v453 = vsel %vm420, %v451, %v452
      %v454 = vrot.slane %v341, 1
      %v455 = vsel %vm420, %v452, %v454
      %v456 = vrot.slane %v342, 1
      %v457 = vrot.slane %v343, 1
      %v458 = vsel %vm420, %v456, %v457
      %v459 = vrot.slane %v344, 1
      %v460 = vsel %vm420, %v457, %v459
      %v461 = vrot.slane %v345, 1
      %v462 = vrot.slane %v346, 1
      %v463 = vsel %vm420, %v461, %v462
      %v464 = vrot.slane %v347, 1
      %v465 = vsel %vm420, %v462, %v464
      %v466 = vrot.slane %v348, 1
      %v467 = vrot.slane %v349, 1
      %v468 = vsel %vm420, %v466, %v467
      %v469 = vrot.slane %v350, 1
      %v470 = vsel %vm420, %v467, %v469
      %v471 = vrot.slane %v351, 1
      %v472 = vrot.slane %v352, 1
      %v473 = vsel %vm420, %v471, %v472
      %v474 = vrot.slane %v353, 1
      %v475 = vsel %vm420, %v472, %v474
      %v476 = vrot.slane %v354, 1
      %v477 = vrot.slane %v355, 1
      %v478 = vsel %vm420, %v476, %v477
      %v479 = vrot.slane %v356, 1
      %v480 = vsel %vm420, %v477, %v479
      %v481 = vrot.slane %v357, 1
      %v482 = vrot.slane %v358, 1
      %v483 = vsel %vm420, %v481, %v482
      %v484 = vrot.slane %v359, 1
      %v485 = vsel %vm420, %v482, %v484
      %v486 = vrot.slane %v360, 1
      %v487 = vrot.slane %v361, 1
      %v488 = vsel %vm420, %v486, %v487
      %v489 = vrot.slane %v362, 1
      %v490 = vsel %vm420, %v487, %v489
      %v491 = vrot.slane %v363, 1
      %v492 = vrot.slane %v364, 1
      %v493 = vsel %vm420, %v491, %v492
      %v494 = vrot.slane %v365, 1
      %v495 = vsel %vm420, %v492, %v494
      %v496 = vrot.slane %v366, 1
      %v497 = vrot.slane %v367, 1
      %v498 = vsel %vm420, %v496, %v497
      %v499 = vrot.slane %v368, 1
      %v500 = vsel %vm420, %v497, %v499
      %v533 = vld [vmem:[%s1] sm:$0xf]
      %vm534 = vcmask 31744
      %v535 = vsel %vm534, %v423, 0
      %v537 = vsel %vm534, %v425, 0
      %v539 = vsel %vm534, %v428, 0
      %v541 = vsel %vm534, %v430, 0
      %v543 = vsel %vm534, %v433, 0
      %v545 = vsel %vm534, %v435, 0
      %v547 = vsel %vm534, %v438, 0
      %v549 = vsel %vm534, %v440, 0
      %v551 = vsel %vm534, %v443, 0
      %v553 = vsel %vm534, %v445, 0
      %v555 = vsel %vm534, %v448, 0
      %v557 = vsel %vm534, %v450, 0
      %v559 = vsel %vm534, %v453, 0
      %v561 = vsel %vm534, %v455, 0
      %v563 = vsel %vm534, %v458, 0
      %v565 = vsel %vm534, %v460, 0
      %v567 = vsel %vm534, %v463, 0
      %v569 = vsel %vm534, %v465, 0
      %v571 = vsel %vm534, %v468, 0
      %v573 = vsel %vm534, %v470, 0
      %v575 = vsel %vm534, %v473, 0
      %v577 = vsel %vm534, %v475, 0
      %v579 = vsel %vm534, %v478, 0
      %v581 = vsel %vm534, %v480, 0
      %v583 = vsel %vm534, %v483, 0
      %v585 = vsel %vm534, %v485, 0
      %v587 = vsel %vm534, %v488, 0
      %v589 = vsel %vm534, %v490, 0
      %v591 = vsel %vm534, %v493, 0
      %v593 = vsel %vm534, %v495, 0
      %v595 = vsel %vm534, %v498, 0
      %v597 = vsel %vm534, %v500, 0
      %vm599 = vcmask 1043456
      %v601 = vsel %vm599, %v533, 0
      %603 = vmatprep.subr.mxu0 0.0
      %604 = vmatpush1.msra.mxu0 0.0
      %605 = vmatprep.subr.mxu0 0.0
      %606 = vmatpush1.msra.mxu0 0.0
      %607 = vmatprep.subr.mxu0 0.0
      %608 = vmatpush1.msra.mxu0 0.0
      %609 = vmatprep.subr.mxu0 0.0
      %610 = vmatpush1.msra.mxu0 0.0
      %611 = vmatprep.subr.mxu0 0.0
      %612 = vmatpush1.msra.mxu0 0.0
      %613 = vmatprep.subr.mxu0 0.0
      %614 = vmatpush1.msra.mxu0 0.0
      %615 = vmatprep.subr.mxu0 0.0
      %616 = vmatpush1.msra.mxu0 0.0
      %617 = vmatprep.subr.mxu0 0.0
      %618 = vmatpush1.msra.mxu0 0.0
      %619 = vmatprep.subr.mxu0 0.0
      %620 = vmatpush1.msra.mxu0 0.0
      %621 = vmatprep.subr.mxu0 0.0
      %622 = vmatpush1.msra.mxu0 0.0
      %623 = vmatprep.subr.mxu0 0.0
      %624 = vmatpush1.msra.mxu0 0.0
      %625 = vmatprep.subr.mxu0 0.0
      %626 = vmatpush1.msra.mxu0 0.0
      %627 = vmatprep.subr.mxu0 0.0
      %628 = vmatpush1.msra.mxu0 0.0
      %629 = vmatprep.subr.mxu0 0.0
      %630 = vmatpush1.msra.mxu0 0.0
      %631 = vmatprep.subr.mxu0 0.0
      %632 = vmatpush1.msra.mxu0 0.0
      %633 = vmatprep.subr.mxu0 0.0
      %634 = vmatpush1.msra.mxu0 %v601
      %635 = vmatprep.subr.mxu0 0.0
      %636 = vmatpush2.msra.mxu0 0.0
      %637 = vmatprep.subr.mxu0 0.0
      %638 = vmatpush2.msra.mxu0 0.0
      %639 = vmatprep.subr.mxu0 0.0
      %640 = vmatpush2.msra.mxu0 0.0
      %641 = vmatprep.subr.mxu0 0.0
      %642 = vmatpush2.msra.mxu0 0.0
      %643 = vmatprep.subr.mxu0 0.0
      %644 = vmatpush2.msra.mxu0 0.0
      %645 = vmatprep.subr.mxu0 0.0
      %646 = vmatpush2.msra.mxu0 0.0
      %647 = vmatprep.subr.mxu0 0.0
      %648 = vmatpush2.msra.mxu0 0.0
      %649 = vmatprep.subr.mxu0 0.0
      %650 = vmatpush2.msra.mxu0 0.0
      %651 = vmatprep.subr.mxu0 0.0
      %652 = vmatpush2.msra.mxu0 0.0
      %653 = vmatprep.subr.mxu0 0.0
      %654 = vmatpush2.msra.mxu0 0.0
      %655 = vmatprep.subr.mxu0 0.0
      %656 = vmatpush2.msra.mxu0 0.0
      %657 = vmatprep.subr.mxu0 0.0
      %658 = vmatpush2.msra.mxu0 0.0
      %659 = vmatprep.subr.mxu0 0.0
      %660 = vmatpush2.msra.mxu0 0.0
      %661 = vmatprep.subr.mxu0 0.0
      %662 = vmatpush2.msra.mxu0 0.0
      %663 = vmatprep.subr.mxu0 0.0
      %664 = vmatpush2.msra.mxu0 0.0
      %665 = vmatprep.subr.mxu0 0.0
      %666 = vmatpush2.msra.mxu0 0.0
      %667 = vmatprep.mubr.f32.mxu0 0.0
      %668 = vmatmul.mubr.f32.gmra.mxu0 %v535
      %v669 = vpop.f32.mrf.mxu0
      %v670 = vadd.f32 0.0, %v669
      %v671 = vpop.f32.mrf.mxu0
      %672 = vmatprep.mubr.f32.mxu0 0.0
      %673 = vmatmul.mubr.f32.gmra.mxu0 %v537
      %v674 = vpop.f32.mrf.mxu0
      %v675 = vadd.f32 0.0, %v674
      %v676 = vpop.f32.mrf.mxu0
      %677 = vmatprep.mubr.f32.mxu0 0.0
      %678 = vmatmul.mubr.f32.gmra.mxu0 %v539
      %v679 = vpop.f32.mrf.mxu0
      %v680 = vadd.f32 0.0, %v679
      %v681 = vpop.f32.mrf.mxu0
      %682 = vmatprep.mubr.f32.mxu0 0.0
      %683 = vmatmul.mubr.f32.gmra.mxu0 %v541
      %v684 = vpop.f32.mrf.mxu0
      %v685 = vadd.f32 0.0, %v684
      %v686 = vpop.f32.mrf.mxu0
      %687 = vmatprep.mubr.f32.mxu0 0.0
      %688 = vmatmul.mubr.f32.gmra.mxu0 %v543
      %v689 = vpop.f32.mrf.mxu0
      %v690 = vadd.f32 0.0, %v689
      %v691 = vpop.f32.mrf.mxu0
      %692 = vmatprep.mubr.f32.mxu0 0.0
      %693 = vmatmul.mubr.f32.gmra.mxu0 %v545
      %v694 = vpop.f32.mrf.mxu0
      %v695 = vadd.f32 0.0, %v694
      %v696 = vpop.f32.mrf.mxu0
      %697 = vmatprep.mubr.f32.mxu0 0.0
      %698 = vmatmul.mubr.f32.gmra.mxu0 %v547
      %v699 = vpop.f32.mrf.mxu0
      %v700 = vadd.f32 0.0, %v699
      %v701 = vpop.f32.mrf.mxu0
      %702 = vmatprep.mubr.f32.mxu0 0.0
      %703 = vmatmul.mubr.f32.gmra.mxu0 %v549
      %v704 = vpop.f32.mrf.mxu0
      %v705 = vadd.f32 0.0, %v704
      %v706 = vpop.f32.mrf.mxu0
      %707 = vmatprep.mubr.f32.mxu0 0.0
      %708 = vmatmul.mubr.f32.gmra.mxu0 %v551
      %v709 = vpop.f32.mrf.mxu0
      %v710 = vadd.f32 0.0, %v709
      %v711 = vpop.f32.mrf.mxu0
      %712 = vmatprep.mubr.f32.mxu0 0.0
      %713 = vmatmul.mubr.f32.gmra.mxu0 %v553
      %v714 = vpop.f32.mrf.mxu0
      %v715 = vadd.f32 0.0, %v714
      %v716 = vpop.f32.mrf.mxu0
      %717 = vmatprep.mubr.f32.mxu0 0.0
      %718 = vmatmul.mubr.f32.gmra.mxu0 %v555
      %v719 = vpop.f32.mrf.mxu0
      %v720 = vadd.f32 0.0, %v719
      %v721 = vpop.f32.mrf.mxu0
      %722 = vmatprep.mubr.f32.mxu0 0.0
      %723 = vmatmul.mubr.f32.gmra.mxu0 %v557
      %v724 = vpop.f32.mrf.mxu0
      %v725 = vadd.f32 0.0, %v724
      %v726 = vpop.f32.mrf.mxu0
      %727 = vmatprep.mubr.f32.mxu0 0.0
      %728 = vmatmul.mubr.f32.gmra.mxu0 %v559
      %v729 = vpop.f32.mrf.mxu0
      %v730 = vadd.f32 0.0, %v729
      %v731 = vpop.f32.mrf.mxu0
      %732 = vmatprep.mubr.f32.mxu0 0.0
      %733 = vmatmul.mubr.f32.gmra.mxu0 %v561
      %v734 = vpop.f32.mrf.mxu0
      %v735 = vadd.f32 0.0, %v734
      %v736 = vpop.f32.mrf.mxu0
      %737 = vmatprep.mubr.f32.mxu0 0.0
      %738 = vmatmul.mubr.f32.gmra.mxu0 %v563
      %v739 = vpop.f32.mrf.mxu0
      %v740 = vadd.f32 0.0, %v739
      %v741 = vpop.f32.mrf.mxu0
      %742 = vmatprep.mubr.f32.mxu0 0.0
      %743 = vmatmul.mubr.f32.gmra.mxu0 %v565
      %v744 = vpop.f32.mrf.mxu0
      %v745 = vadd.f32 0.0, %v744
      %v746 = vpop.f32.mrf.mxu0
      %747 = vmatprep.mubr.f32.mxu0 0.0
      %748 = vmatmul.mubr.f32.gmra.mxu0 %v567
      %v749 = vpop.f32.mrf.mxu0
      %v750 = vadd.f32 0.0, %v749
      %v751 = vpop.f32.mrf.mxu0
      %752 = vmatprep.mubr.f32.mxu0 0.0
      %753 = vmatmul.mubr.f32.gmra.mxu0 %v569
      %v754 = vpop.f32.mrf.mxu0
      %v755 = vadd.f32 0.0, %v754
      %v756 = vpop.f32.mrf.mxu0
      %757 = vmatprep.mubr.f32.mxu0 0.0
      %758 = vmatmul.mubr.f32.gmra.mxu0 %v571
      %v759 = vpop.f32.mrf.mxu0
      %v760 = vadd.f32 0.0, %v759
      %v761 = vpop.f32.mrf.mxu0
      %762 = vmatprep.mubr.f32.mxu0 0.0
      %763 = vmatmul.mubr.f32.gmra.mxu0 %v573
      %v764 = vpop.f32.mrf.mxu0
      %v765 = vadd.f32 0.0, %v764
      %v766 = vpop.f32.mrf.mxu0
      %767 = vmatprep.mubr.f32.mxu0 0.0
      %768 = vmatmul.mubr.f32.gmra.mxu0 %v575
      %v769 = vpop.f32.mrf.mxu0
      %v770 = vadd.f32 0.0, %v769
      %v771 = vpop.f32.mrf.mxu0
      %772 = vmatprep.mubr.f32.mxu0 0.0
      %773 = vmatmul.mubr.f32.gmra.mxu0 %v577
      %v774 = vpop.f32.mrf.mxu0
      %v775 = vadd.f32 0.0, %v774
      %v776 = vpop.f32.mrf.mxu0
      %777 = vmatprep.mubr.f32.mxu0 0.0
      %778 = vmatmul.mubr.f32.gmra.mxu0 %v579
      %v779 = vpop.f32.mrf.mxu0
      %v780 = vadd.f32 0.0, %v779
      %v781 = vpop.f32.mrf.mxu0
      %782 = vmatprep.mubr.f32.mxu0 0.0
      %783 = vmatmul.mubr.f32.gmra.mxu0 %v581
      %v784 = vpop.f32.mrf.mxu0
      %v785 = vadd.f32 0.0, %v784
      %v786 = vpop.f32.mrf.mxu0
      %787 = vmatprep.mubr.f32.mxu0 0.0
      %788 = vmatmul.mubr.f32.gmra.mxu0 %v583
      %v789 = vpop.f32.mrf.mxu0
      %v790 = vadd.f32 0.0, %v789
      %v791 = vpop.f32.mrf.mxu0
      %792 = vmatprep.mubr.f32.mxu0 0.0
      %793 = vmatmul.mubr.f32.gmra.mxu0 %v585
      %v794 = vpop.f32.mrf.mxu0
      %v795 = vadd.f32 0.0, %v794
      %v796 = vpop.f32.mrf.mxu0
      %797 = vmatprep.mubr.f32.mxu0 0.0
      %798 = vmatmul.mubr.f32.gmra.mxu0 %v587
      %v799 = vpop.f32.mrf.mxu0
      %v800 = vadd.f32 0.0, %v799
      %v801 = vpop.f32.mrf.mxu0
      %802 = vmatprep.mubr.f32.mxu0 0.0
      %803 = vmatmul.mubr.f32.gmra.mxu0 %v589
      %v804 = vpop.f32.mrf.mxu0
      %v805 = vadd.f32 0.0, %v804
      %v806 = vpop.f32.mrf.mxu0
      %807 = vmatprep.mubr.f32.mxu0 0.0
      %808 = vmatmul.mubr.f32.gmra.mxu0 %v591
      %v809 = vpop.f32.mrf.mxu0
      %v810 = vadd.f32 0.0, %v809
      %v811 = vpop.f32.mrf.mxu0
      %812 = vmatprep.mubr.f32.mxu0 0.0
      %813 = vmatmul.mubr.f32.gmra.mxu0 %v593
      %v814 = vpop.f32.mrf.mxu0
      %v815 = vadd.f32 0.0, %v814
      %v816 = vpop.f32.mrf.mxu0
      %817 = vmatprep.mubr.f32.mxu0 0.0
      %818 = vmatmul.mubr.f32.gmra.mxu0 %v595
      %v819 = vpop.f32.mrf.mxu0
      %v820 = vadd.f32 0.0, %v819
      %v821 = vpop.f32.mrf.mxu0
      %822 = vmatprep.mubr.f32.mxu0 0.0
      %823 = vmatmul.mubr.f32.gmra.mxu0 %v597
      %v824 = vpop.f32.mrf.mxu0
      %v825 = vadd.f32 0.0, %v824
      %v826 = vpop.f32.mrf.mxu0
      %827 = vdwg.mxu0
      %v828 = vld [vmem:[%s3] sm:$0x1]
      %v830 = vlaneseq
      %v831 = vshrl.u32 %v830, 7
      %v832 = vsub.s32 0, %v831
      %v833 = vrot.slane %v828, %v832
      %v835 = vmul.f32 %v670, %v833
      %v836 = vmul.f32 %v675, %v833
      %v837 = vmul.f32 %v680, %v833
      %v838 = vmul.f32 %v685, %v833
      %v839 = vmul.f32 %v690, %v833
      %v840 = vmul.f32 %v695, %v833
      %v841 = vmul.f32 %v700, %v833
      %v842 = vmul.f32 %v705, %v833
      %v843 = vmul.f32 %v710, %v833
      %v844 = vmul.f32 %v715, %v833
      %v845 = vmul.f32 %v720, %v833
      %v846 = vmul.f32 %v725, %v833
      %v847 = vmul.f32 %v730, %v833
      %v848 = vmul.f32 %v735, %v833
      %v849 = vmul.f32 %v740, %v833
      %v850 = vmul.f32 %v745, %v833
      %v851 = vmul.f32 %v750, %v833
      %v852 = vmul.f32 %v755, %v833
      %v853 = vmul.f32 %v760, %v833
      %v854 = vmul.f32 %v765, %v833
      %v855 = vmul.f32 %v770, %v833
      %v856 = vmul.f32 %v775, %v833
      %v857 = vmul.f32 %v780, %v833
      %v858 = vmul.f32 %v785, %v833
      %v859 = vmul.f32 %v790, %v833
      %v860 = vmul.f32 %v795, %v833
      %v861 = vmul.f32 %v800, %v833
      %v862 = vmul.f32 %v805, %v833
      %v863 = vmul.f32 %v810, %v833
      %v864 = vmul.f32 %v815, %v833
      %v865 = vmul.f32 %v820, %v833
      %v866 = vmul.f32 %v825, %v833
      %v867 = vld [vmem:[%s4] sm:$0x1]
      %v869 = vlaneseq
      %v870 = vshrl.u32 %v869, 7
      %v871 = vsub.s32 0, %v870
      %v872 = vrot.slane %v867, %v871
      %v874 = vadd.f32 %v835, %v872
      %v875 = vadd.f32 %v836, %v872
      %v876 = vadd.f32 %v837, %v872
      %v877 = vadd.f32 %v838, %v872
      %v878 = vadd.f32 %v839, %v872
      %v879 = vadd.f32 %v840, %v872
      %v880 = vadd.f32 %v841, %v872
      %v881 = vadd.f32 %v842, %v872
      %v882 = vadd.f32 %v843, %v872
      %v883 = vadd.f32 %v844, %v872
      %v884 = vadd.f32 %v845, %v872
      %v885 = vadd.f32 %v846, %v872
      %v886 = vadd.f32 %v847, %v872
      %v887 = vadd.f32 %v848, %v872
      %v888 = vadd.f32 %v849, %v872
      %v889 = vadd.f32 %v850, %v872
      %v890 = vadd.f32 %v851, %v872
      %v891 = vadd.f32 %v852, %v872
      %v892 = vadd.f32 %v853, %v872
      %v893 = vadd.f32 %v854, %v872
      %v894 = vadd.f32 %v855, %v872
      %v895 = vadd.f32 %v856, %v872
      %v896 = vadd.f32 %v857, %v872
      %v897 = vadd.f32 %v858, %v872
      %v898 = vadd.f32 %v859, %v872
      %v899 = vadd.f32 %v860, %v872
      %v900 = vadd.f32 %v861, %v872
      %v901 = vadd.f32 %v862, %v872
      %v902 = vadd.f32 %v863, %v872
      %v903 = vadd.f32 %v864, %v872
      %v904 = vadd.f32 %v865, %v872
      %v905 = vadd.f32 %v866, %v872
      %v906 = vld [vmem:[%s2] sm:$0xf]
      %v910 = vrot.slane %v318, 1
      %v911 = vrot.slane %v319, 1
      %v912 = vsel %vm420, %v910, %v911
      %v913 = vrot.slane %v320, 1
      %v914 = vsel %vm420, %v911, %v913
      %s915 = scalar_lea.vmem %s2, 4
      %v916 = vld [vmem:[%s915] sm:$0xf]
      %v917 = vsel %vm534, %v912, 0
      %v919 = vsel %vm534, %v914, 0
      %v922 = vsel %vm599, %v916, 0
      %924 = vmatprep.subr.mxu0 0.0
      %925 = vmatpush1.msra.mxu0 0.0
      %926 = vmatprep.subr.mxu0 0.0
      %927 = vmatpush1.msra.mxu0 0.0
      %928 = vmatprep.subr.mxu0 0.0
      %929 = vmatpush1.msra.mxu0 0.0
      %930 = vmatprep.subr.mxu0 0.0
      %931 = vmatpush1.msra.mxu0 0.0
      %932 = vmatprep.subr.mxu0 0.0
      %933 = vmatpush1.msra.mxu0 0.0
      %934 = vmatprep.subr.mxu0 0.0
      %935 = vmatpush1.msra.mxu0 0.0
      %936 = vmatprep.subr.mxu0 0.0
      %937 = vmatpush1.msra.mxu0 0.0
      %938 = vmatprep.subr.mxu0 0.0
      %939 = vmatpush1.msra.mxu0 0.0
      %940 = vmatprep.subr.mxu0 0.0
      %941 = vmatpush1.msra.mxu0 0.0
      %942 = vmatprep.subr.mxu0 0.0
      %943 = vmatpush1.msra.mxu0 0.0
      %944 = vmatprep.subr.mxu0 0.0
      %945 = vmatpush1.msra.mxu0 0.0
      %946 = vmatprep.subr.mxu0 0.0
      %947 = vmatpush1.msra.mxu0 0.0
      %948 = vmatprep.subr.mxu0 0.0
      %949 = vmatpush1.msra.mxu0 0.0
      %950 = vmatprep.subr.mxu0 0.0
      %951 = vmatpush1.msra.mxu0 0.0
      %952 = vmatprep.subr.mxu0 0.0
      %953 = vmatpush1.msra.mxu0 0.0
      %954 = vmatprep.subr.mxu0 0.0
      %955 = vmatpush1.msra.mxu0 %v922
      %956 = vmatprep.subr.mxu0 0.0
      %957 = vmatpush2.msra.mxu0 0.0
      %958 = vmatprep.subr.mxu0 0.0
      %959 = vmatpush2.msra.mxu0 0.0
      %960 = vmatprep.subr.mxu0 0.0
      %961 = vmatpush2.msra.mxu0 0.0
      %962 = vmatprep.subr.mxu0 0.0
      %963 = vmatpush2.msra.mxu0 0.0
      %964 = vmatprep.subr.mxu0 0.0
      %965 = vmatpush2.msra.mxu0 0.0
      %966 = vmatprep.subr.mxu0 0.0
      %967 = vmatpush2.msra.mxu0 0.0
      %968 = vmatprep.subr.mxu0 0.0
      %969 = vmatpush2.msra.mxu0 0.0
      %970 = vmatprep.subr.mxu0 0.0
      %971 = vmatpush2.msra.mxu0 0.0
      %972 = vmatprep.subr.mxu0 0.0
      %973 = vmatpush2.msra.mxu0 0.0
      %974 = vmatprep.subr.mxu0 0.0
      %975 = vmatpush2.msra.mxu0 0.0
      %976 = vmatprep.subr.mxu0 0.0
      %977 = vmatpush2.msra.mxu0 0.0
      %978 = vmatprep.subr.mxu0 0.0
      %979 = vmatpush2.msra.mxu0 0.0
      %980 = vmatprep.subr.mxu0 0.0
      %981 = vmatpush2.msra.mxu0 0.0
      %982 = vmatprep.subr.mxu0 0.0
      %983 = vmatpush2.msra.mxu0 0.0
      %984 = vmatprep.subr.mxu0 0.0
      %985 = vmatpush2.msra.mxu0 0.0
      %986 = vmatprep.subr.mxu0 0.0
      %987 = vmatpush2.msra.mxu0 0.0
      %988 = vmatprep.mubr.f32.mxu0 0.0
      %989 = vmatmul.mubr.f32.gmra.mxu0 %v917
      %v990 = vpop.f32.mrf.mxu0
      %v991 = vadd.f32 0.0, %v990
      %v992 = vpop.f32.mrf.mxu0
      %993 = vmatprep.mubr.f32.mxu0 0.0
      %994 = vmatmul.mubr.f32.gmra.mxu0 %v919
      %v995 = vpop.f32.mrf.mxu0
      %v996 = vadd.f32 0.0, %v995
      %v997 = vpop.f32.mrf.mxu0
      %998 = vmatprep.mubr.f32.mxu0 0.0
      %999 = vmatmul.mubr.f32.gmra.mxu0 %v535
      %v1000 = vpop.f32.mrf.mxu0
      %v1001 = vadd.f32 0.0, %v1000
      %v1002 = vpop.f32.mrf.mxu0
      %1003 = vmatprep.mubr.f32.mxu0 0.0
      %1004 = vmatmul.mubr.f32.gmra.mxu0 %v537
      %v1005 = vpop.f32.mrf.mxu0
      %v1006 = vadd.f32 0.0, %v1005
      %v1007 = vpop.f32.mrf.mxu0
      %1008 = vmatprep.mubr.f32.mxu0 0.0
      %1009 = vmatmul.mubr.f32.gmra.mxu0 %v539
      %v1010 = vpop.f32.mrf.mxu0
      %v1011 = vadd.f32 0.0, %v1010
      %v1012 = vpop.f32.mrf.mxu0
      %1013 = vmatprep.mubr.f32.mxu0 0.0
      %1014 = vmatmul.mubr.f32.gmra.mxu0 %v541
      %v1015 = vpop.f32.mrf.mxu0
      %v1016 = vadd.f32 0.0, %v1015
      %v1017 = vpop.f32.mrf.mxu0
      %1018 = vmatprep.mubr.f32.mxu0 0.0
      %1019 = vmatmul.mubr.f32.gmra.mxu0 %v543
      %v1020 = vpop.f32.mrf.mxu0
      %v1021 = vadd.f32 0.0, %v1020
      %v1022 = vpop.f32.mrf.mxu0
      %1023 = vmatprep.mubr.f32.mxu0 0.0
      %1024 = vmatmul.mubr.f32.gmra.mxu0 %v545
      %v1025 = vpop.f32.mrf.mxu0
      %v1026 = vadd.f32 0.0, %v1025
      %v1027 = vpop.f32.mrf.mxu0
      %1028 = vmatprep.mubr.f32.mxu0 0.0
      %1029 = vmatmul.mubr.f32.gmra.mxu0 %v547
      %v1030 = vpop.f32.mrf.mxu0
      %v1031 = vadd.f32 0.0, %v1030
      %v1032 = vpop.f32.mrf.mxu0
      %1033 = vmatprep.mubr.f32.mxu0 0.0
      %1034 = vmatmul.mubr.f32.gmra.mxu0 %v549
      %v1035 = vpop.f32.mrf.mxu0
      %v1036 = vadd.f32 0.0, %v1035
      %v1037 = vpop.f32.mrf.mxu0
      %1038 = vmatprep.mubr.f32.mxu0 0.0
      %1039 = vmatmul.mubr.f32.gmra.mxu0 %v551
      %v1040 = vpop.f32.mrf.mxu0
      %v1041 = vadd.f32 0.0, %v1040
      %v1042 = vpop.f32.mrf.mxu0
      %1043 = vmatprep.mubr.f32.mxu0 0.0
      %1044 = vmatmul.mubr.f32.gmra.mxu0 %v553
      %v1045 = vpop.f32.mrf.mxu0
      %v1046 = vadd.f32 0.0, %v1045
      %v1047 = vpop.f32.mrf.mxu0
      %1048 = vmatprep.mubr.f32.mxu0 0.0
      %1049 = vmatmul.mubr.f32.gmra.mxu0 %v555
      %v1050 = vpop.f32.mrf.mxu0
      %v1051 = vadd.f32 0.0, %v1050
      %v1052 = vpop.f32.mrf.mxu0
      %1053 = vmatprep.mubr.f32.mxu0 0.0
      %1054 = vmatmul.mubr.f32.gmra.mxu0 %v557
      %v1055 = vpop.f32.mrf.mxu0
      %v1056 = vadd.f32 0.0, %v1055
      %v1057 = vpop.f32.mrf.mxu0
      %1058 = vmatprep.mubr.f32.mxu0 0.0
      %1059 = vmatmul.mubr.f32.gmra.mxu0 %v559
      %v1060 = vpop.f32.mrf.mxu0
      %v1061 = vadd.f32 0.0, %v1060
      %v1062 = vpop.f32.mrf.mxu0
      %1063 = vmatprep.mubr.f32.mxu0 0.0
      %1064 = vmatmul.mubr.f32.gmra.mxu0 %v561
      %v1065 = vpop.f32.mrf.mxu0
      %v1066 = vadd.f32 0.0, %v1065
      %v1067 = vpop.f32.mrf.mxu0
      %1068 = vmatprep.mubr.f32.mxu0 0.0
      %1069 = vmatmul.mubr.f32.gmra.mxu0 %v563
      %v1070 = vpop.f32.mrf.mxu0
      %v1071 = vadd.f32 0.0, %v1070
      %v1072 = vpop.f32.mrf.mxu0
      %1073 = vmatprep.mubr.f32.mxu0 0.0
      %1074 = vmatmul.mubr.f32.gmra.mxu0 %v565
      %v1075 = vpop.f32.mrf.mxu0
      %v1076 = vadd.f32 0.0, %v1075
      %v1077 = vpop.f32.mrf.mxu0
      %1078 = vmatprep.mubr.f32.mxu0 0.0
      %1079 = vmatmul.mubr.f32.gmra.mxu0 %v567
      %v1080 = vpop.f32.mrf.mxu0
      %v1081 = vadd.f32 0.0, %v1080
      %v1082 = vpop.f32.mrf.mxu0
      %1083 = vmatprep.mubr.f32.mxu0 0.0
      %1084 = vmatmul.mubr.f32.gmra.mxu0 %v569
      %v1085 = vpop.f32.mrf.mxu0
      %v1086 = vadd.f32 0.0, %v1085
      %v1087 = vpop.f32.mrf.mxu0
      %1088 = vmatprep.mubr.f32.mxu0 0.0
      %1089 = vmatmul.mubr.f32.gmra.mxu0 %v571
      %v1090 = vpop.f32.mrf.mxu0
      %v1091 = vadd.f32 0.0, %v1090
      %v1092 = vpop.f32.mrf.mxu0
      %1093 = vmatprep.mubr.f32.mxu0 0.0
      %1094 = vmatmul.mubr.f32.gmra.mxu0 %v573
      %v1095 = vpop.f32.mrf.mxu0
      %v1096 = vadd.f32 0.0, %v1095
      %v1097 = vpop.f32.mrf.mxu0
      %1098 = vmatprep.mubr.f32.mxu0 0.0
      %1099 = vmatmul.mubr.f32.gmra.mxu0 %v575
      %v1100 = vpop.f32.mrf.mxu0
      %v1101 = vadd.f32 0.0, %v1100
      %v1102 = vpop.f32.mrf.mxu0
      %1103 = vmatprep.mubr.f32.mxu0 0.0
      %1104 = vmatmul.mubr.f32.gmra.mxu0 %v577
      %v1105 = vpop.f32.mrf.mxu0
      %v1106 = vadd.f32 0.0, %v1105
      %v1107 = vpop.f32.mrf.mxu0
      %1108 = vmatprep.mubr.f32.mxu0 0.0
      %1109 = vmatmul.mubr.f32.gmra.mxu0 %v579
      %v1110 = vpop.f32.mrf.mxu0
      %v1111 = vadd.f32 0.0, %v1110
      %v1112 = vpop.f32.mrf.mxu0
      %1113 = vmatprep.mubr.f32.mxu0 0.0
      %1114 = vmatmul.mubr.f32.gmra.mxu0 %v581
      %v1115 = vpop.f32.mrf.mxu0
      %v1116 = vadd.f32 0.0, %v1115
      %v1117 = vpop.f32.mrf.mxu0
      %1118 = vmatprep.mubr.f32.mxu0 0.0
      %1119 = vmatmul.mubr.f32.gmra.mxu0 %v583
      %v1120 = vpop.f32.mrf.mxu0
      %v1121 = vadd.f32 0.0, %v1120
      %v1122 = vpop.f32.mrf.mxu0
      %1123 = vmatprep.mubr.f32.mxu0 0.0
      %1124 = vmatmul.mubr.f32.gmra.mxu0 %v585
      %v1125 = vpop.f32.mrf.mxu0
      %v1126 = vadd.f32 0.0, %v1125
      %v1127 = vpop.f32.mrf.mxu0
      %1128 = vmatprep.mubr.f32.mxu0 0.0
      %1129 = vmatmul.mubr.f32.gmra.mxu0 %v587
      %v1130 = vpop.f32.mrf.mxu0
      %v1131 = vadd.f32 0.0, %v1130
      %v1132 = vpop.f32.mrf.mxu0
      %1133 = vmatprep.mubr.f32.mxu0 0.0
      %1134 = vmatmul.mubr.f32.gmra.mxu0 %v589
      %v1135 = vpop.f32.mrf.mxu0
      %v1136 = vadd.f32 0.0, %v1135
      %v1137 = vpop.f32.mrf.mxu0
      %1138 = vmatprep.mubr.f32.mxu0 0.0
      %1139 = vmatmul.mubr.f32.gmra.mxu0 %v591
      %v1140 = vpop.f32.mrf.mxu0
      %v1141 = vadd.f32 0.0, %v1140
      %v1142 = vpop.f32.mrf.mxu0
      %1143 = vmatprep.mubr.f32.mxu0 0.0
      %1144 = vmatmul.mubr.f32.gmra.mxu0 %v593
      %v1145 = vpop.f32.mrf.mxu0
      %v1146 = vadd.f32 0.0, %v1145
      %v1147 = vpop.f32.mrf.mxu0
      %1148 = vdwg.mxu0
      %v1149 = vsel %vm534, %v318, 0
      %v1151 = vsel %vm534, %v319, 0
      %v1153 = vsel %vm534, %v321, 0
      %v1155 = vsel %vm534, %v322, 0
      %v1157 = vsel %vm534, %v324, 0
      %v1159 = vsel %vm534, %v325, 0
      %v1161 = vsel %vm534, %v327, 0
      %v1163 = vsel %vm534, %v328, 0
      %v1165 = vsel %vm534, %v330, 0
      %v1167 = vsel %vm534, %v331, 0
      %v1169 = vsel %vm534, %v333, 0
      %v1171 = vsel %vm534, %v334, 0
      %v1173 = vsel %vm534, %v336, 0
      %v1175 = vsel %vm534, %v337, 0
      %v1177 = vsel %vm534, %v339, 0
      %v1179 = vsel %vm534, %v340, 0
      %v1181 = vsel %vm534, %v342, 0
      %v1183 = vsel %vm534, %v343, 0
      %v1185 = vsel %vm534, %v345, 0
      %v1187 = vsel %vm534, %v346, 0
      %v1189 = vsel %vm534, %v348, 0
      %v1191 = vsel %vm534, %v349, 0
      %v1193 = vsel %vm534, %v351, 0
      %v1195 = vsel %vm534, %v352, 0
      %v1197 = vsel %vm534, %v354, 0
      %v1199 = vsel %vm534, %v355, 0
      %v1201 = vsel %vm534, %v357, 0
      %v1203 = vsel %vm534, %v358, 0
      %v1205 = vsel %vm534, %v360, 0
      %v1207 = vsel %vm534, %v361, 0
      %v1209 = vsel %vm534, %v363, 0
      %v1211 = vsel %vm534, %v364, 0
      %v1214 = vsel %vm599, %v906, 0
      %1216 = vmatprep.subr.mxu0 0.0
      %1217 = vmatpush1.msra.mxu0 0.0
      %1218 = vmatprep.subr.mxu0 0.0
      %1219 = vmatpush1.msra.mxu0 0.0
      %1220 = vmatprep.subr.mxu0 0.0
      %1221 = vmatpush1.msra.mxu0 0.0
      %1222 = vmatprep.subr.mxu0 0.0
      %1223 = vmatpush1.msra.mxu0 0.0
      %1224 = vmatprep.subr.mxu0 0.0
      %1225 = vmatpush1.msra.mxu0 0.0
      %1226 = vmatprep.subr.mxu0 0.0
      %1227 = vmatpush1.msra.mxu0 0.0
      %1228 = vmatprep.subr.mxu0 0.0
      %1229 = vmatpush1.msra.mxu0 0.0
      %1230 = vmatprep.subr.mxu0 0.0
      %1231 = vmatpush1.msra.mxu0 0.0
      %1232 = vmatprep.subr.mxu0 0.0
      %1233 = vmatpush1.msra.mxu0 0.0
      %1234 = vmatprep.subr.mxu0 0.0
      %1235 = vmatpush1.msra.mxu0 0.0
      %1236 = vmatprep.subr.mxu0 0.0
      %1237 = vmatpush1.msra.mxu0 0.0
      %1238 = vmatprep.subr.mxu0 0.0
      %1239 = vmatpush1.msra.mxu0 0.0
      %1240 = vmatprep.subr.mxu0 0.0
      %1241 = vmatpush1.msra.mxu0 0.0
      %1242 = vmatprep.subr.mxu0 0.0
      %1243 = vmatpush1.msra.mxu0 0.0
      %1244 = vmatprep.subr.mxu0 0.0
      %1245 = vmatpush1.msra.mxu0 0.0
      %1246 = vmatprep.subr.mxu0 0.0
      %1247 = vmatpush1.msra.mxu0 %v1214
      %1248 = vmatprep.subr.mxu0 0.0
      %1249 = vmatpush2.msra.mxu0 0.0
      %1250 = vmatprep.subr.mxu0 0.0
      %1251 = vmatpush2.msra.mxu0 0.0
      %1252 = vmatprep.subr.mxu0 0.0
      %1253 = vmatpush2.msra.mxu0 0.0
      %1254 = vmatprep.subr.mxu0 0.0
      %1255 = vmatpush2.msra.mxu0 0.0
      %1256 = vmatprep.subr.mxu0 0.0
      %1257 = vmatpush2.msra.mxu0 0.0
      %1258 = vmatprep.subr.mxu0 0.0
      %1259 = vmatpush2.msra.mxu0 0.0
      %1260 = vmatprep.subr.mxu0 0.0
      %1261 = vmatpush2.msra.mxu0 0.0
      %1262 = vmatprep.subr.mxu0 0.0
      %1263 = vmatpush2.msra.mxu0 0.0
      %1264 = vmatprep.subr.mxu0 0.0
      %1265 = vmatpush2.msra.mxu0 0.0
      %1266 = vmatprep.subr.mxu0 0.0
      %1267 = vmatpush2.msra.mxu0 0.0
      %1268 = vmatprep.subr.mxu0 0.0
      %1269 = vmatpush2.msra.mxu0 0.0
      %1270 = vmatprep.subr.mxu0 0.0
      %1271 = vmatpush2.msra.mxu0 0.0
      %1272 = vmatprep.subr.mxu0 0.0
      %1273 = vmatpush2.msra.mxu0 0.0
      %1274 = vmatprep.subr.mxu0 0.0
      %1275 = vmatpush2.msra.mxu0 0.0
      %1276 = vmatprep.subr.mxu0 0.0
      %1277 = vmatpush2.msra.mxu0 0.0
      %1278 = vmatprep.subr.mxu0 0.0
      %1279 = vmatpush2.msra.mxu0 0.0
      %1280 = vmatprep.mubr.f32.mxu0 0.0
      %1281 = vmatmul.mubr.f32.gmra.mxu0 %v1149
      %v1282 = vpop.f32.mrf.mxu0
      %v1283 = vadd.f32 %v991, %v1282
      %v1284 = vpop.f32.mrf.mxu0
      %1285 = vmatprep.mubr.f32.mxu0 0.0
      %1286 = vmatmul.mubr.f32.gmra.mxu0 %v1151
      %v1287 = vpop.f32.mrf.mxu0
      %v1288 = vadd.f32 %v996, %v1287
      %v1289 = vpop.f32.mrf.mxu0
      %1290 = vmatprep.mubr.f32.mxu0 0.0
      %1291 = vmatmul.mubr.f32.gmra.mxu0 %v1153
      %v1292 = vpop.f32.mrf.mxu0
      %v1293 = vadd.f32 %v1001, %v1292
      %v1294 = vpop.f32.mrf.mxu0
      %1295 = vmatprep.mubr.f32.mxu0 0.0
      %1296 = vmatmul.mubr.f32.gmra.mxu0 %v1155
      %v1297 = vpop.f32.mrf.mxu0
      %v1298 = vadd.f32 %v1006, %v1297
      %v1299 = vpop.f32.mrf.mxu0
      %1300 = vmatprep.mubr.f32.mxu0 0.0
      %1301 = vmatmul.mubr.f32.gmra.mxu0 %v1157
      %v1302 = vpop.f32.mrf.mxu0
      %v1303 = vadd.f32 %v1011, %v1302
      %v1304 = vpop.f32.mrf.mxu0
      %1305 = vmatprep.mubr.f32.mxu0 0.0
      %1306 = vmatmul.mubr.f32.gmra.mxu0 %v1159
      %v1307 = vpop.f32.mrf.mxu0
      %v1308 = vadd.f32 %v1016, %v1307
      %v1309 = vpop.f32.mrf.mxu0
      %1310 = vmatprep.mubr.f32.mxu0 0.0
      %1311 = vmatmul.mubr.f32.gmra.mxu0 %v1161
      %v1312 = vpop.f32.mrf.mxu0
      %v1313 = vadd.f32 %v1021, %v1312
      %v1314 = vpop.f32.mrf.mxu0
      %1315 = vmatprep.mubr.f32.mxu0 0.0
      %1316 = vmatmul.mubr.f32.gmra.mxu0 %v1163
      %v1317 = vpop.f32.mrf.mxu0
      %v1318 = vadd.f32 %v1026, %v1317
      %v1319 = vpop.f32.mrf.mxu0
      %1320 = vmatprep.mubr.f32.mxu0 0.0
      %1321 = vmatmul.mubr.f32.gmra.mxu0 %v1165
      %v1322 = vpop.f32.mrf.mxu0
      %v1323 = vadd.f32 %v1031, %v1322
      %v1324 = vpop.f32.mrf.mxu0
      %1325 = vmatprep.mubr.f32.mxu0 0.0
      %1326 = vmatmul.mubr.f32.gmra.mxu0 %v1167
      %v1327 = vpop.f32.mrf.mxu0
      %v1328 = vadd.f32 %v1036, %v1327
      %v1329 = vpop.f32.mrf.mxu0
      %1330 = vmatprep.mubr.f32.mxu0 0.0
      %1331 = vmatmul.mubr.f32.gmra.mxu0 %v1169
      %v1332 = vpop.f32.mrf.mxu0
      %v1333 = vadd.f32 %v1041, %v1332
      %v1334 = vpop.f32.mrf.mxu0
      %1335 = vmatprep.mubr.f32.mxu0 0.0
      %1336 = vmatmul.mubr.f32.gmra.mxu0 %v1171
      %v1337 = vpop.f32.mrf.mxu0
      %v1338 = vadd.f32 %v1046, %v1337
      %v1339 = vpop.f32.mrf.mxu0
      %1340 = vmatprep.mubr.f32.mxu0 0.0
      %1341 = vmatmul.mubr.f32.gmra.mxu0 %v1173
      %v1342 = vpop.f32.mrf.mxu0
      %v1343 = vadd.f32 %v1051, %v1342
      %v1344 = vpop.f32.mrf.mxu0
      %1345 = vmatprep.mubr.f32.mxu0 0.0
      %1346 = vmatmul.mubr.f32.gmra.mxu0 %v1175
      %v1347 = vpop.f32.mrf.mxu0
      %v1348 = vadd.f32 %v1056, %v1347
      %v1349 = vpop.f32.mrf.mxu0
      %1350 = vmatprep.mubr.f32.mxu0 0.0
      %1351 = vmatmul.mubr.f32.gmra.mxu0 %v1177
      %v1352 = vpop.f32.mrf.mxu0
      %v1353 = vadd.f32 %v1061, %v1352
      %v1354 = vpop.f32.mrf.mxu0
      %1355 = vmatprep.mubr.f32.mxu0 0.0
      %1356 = vmatmul.mubr.f32.gmra.mxu0 %v1179
      %v1357 = vpop.f32.mrf.mxu0
      %v1358 = vadd.f32 %v1066, %v1357
      %v1359 = vpop.f32.mrf.mxu0
      %1360 = vmatprep.mubr.f32.mxu0 0.0
      %1361 = vmatmul.mubr.f32.gmra.mxu0 %v1181
      %v1362 = vpop.f32.mrf.mxu0
      %v1363 = vadd.f32 %v1071, %v1362
      %v1364 = vpop.f32.mrf.mxu0
      %1365 = vmatprep.mubr.f32.mxu0 0.0
      %1366 = vmatmul.mubr.f32.gmra.mxu0 %v1183
      %v1367 = vpop.f32.mrf.mxu0
      %v1368 = vadd.f32 %v1076, %v1367
      %v1369 = vpop.f32.mrf.mxu0
      %1370 = vmatprep.mubr.f32.mxu0 0.0
      %1371 = vmatmul.mubr.f32.gmra.mxu0 %v1185
      %v1372 = vpop.f32.mrf.mxu0
      %v1373 = vadd.f32 %v1081, %v1372
      %v1374 = vpop.f32.mrf.mxu0
      %1375 = vmatprep.mubr.f32.mxu0 0.0
      %1376 = vmatmul.mubr.f32.gmra.mxu0 %v1187
      %v1377 = vpop.f32.mrf.mxu0
      %v1378 = vadd.f32 %v1086, %v1377
      %v1379 = vpop.f32.mrf.mxu0
      %1380 = vmatprep.mubr.f32.mxu0 0.0
      %1381 = vmatmul.mubr.f32.gmra.mxu0 %v1189
      %v1382 = vpop.f32.mrf.mxu0
      %v1383 = vadd.f32 %v1091, %v1382
      %v1384 = vpop.f32.mrf.mxu0
      %1385 = vmatprep.mubr.f32.mxu0 0.0
      %1386 = vmatmul.mubr.f32.gmra.mxu0 %v1191
      %v1387 = vpop.f32.mrf.mxu0
      %v1388 = vadd.f32 %v1096, %v1387
      %v1389 = vpop.f32.mrf.mxu0
      %1390 = vmatprep.mubr.f32.mxu0 0.0
      %1391 = vmatmul.mubr.f32.gmra.mxu0 %v1193
      %v1392 = vpop.f32.mrf.mxu0
      %v1393 = vadd.f32 %v1101, %v1392
      %v1394 = vpop.f32.mrf.mxu0
      %1395 = vmatprep.mubr.f32.mxu0 0.0
      %1396 = vmatmul.mubr.f32.gmra.mxu0 %v1195
      %v1397 = vpop.f32.mrf.mxu0
      %v1398 = vadd.f32 %v1106, %v1397
      %v1399 = vpop.f32.mrf.mxu0
      %1400 = vmatprep.mubr.f32.mxu0 0.0
      %1401 = vmatmul.mubr.f32.gmra.mxu0 %v1197
      %v1402 = vpop.f32.mrf.mxu0
      %v1403 = vadd.f32 %v1111, %v1402
      %v1404 = vpop.f32.mrf.mxu0
      %1405 = vmatprep.mubr.f32.mxu0 0.0
      %1406 = vmatmul.mubr.f32.gmra.mxu0 %v1199
      %v1407 = vpop.f32.mrf.mxu0
      %v1408 = vadd.f32 %v1116, %v1407
      %v1409 = vpop.f32.mrf.mxu0
      %1410 = vmatprep.mubr.f32.mxu0 0.0
      %1411 = vmatmul.mubr.f32.gmra.mxu0 %v1201
      %v1412 = vpop.f32.mrf.mxu0
      %v1413 = vadd.f32 %v1121, %v1412
      %v1414 = vpop.f32.mrf.mxu0
      %1415 = vmatprep.mubr.f32.mxu0 0.0
      %1416 = vmatmul.mubr.f32.gmra.mxu0 %v1203
      %v1417 = vpop.f32.mrf.mxu0
      %v1418 = vadd.f32 %v1126, %v1417
      %v1419 = vpop.f32.mrf.mxu0
      %1420 = vmatprep.mubr.f32.mxu0 0.0
      %1421 = vmatmul.mubr.f32.gmra.mxu0 %v1205
      %v1422 = vpop.f32.mrf.mxu0
      %v1423 = vadd.f32 %v1131, %v1422
      %v1424 = vpop.f32.mrf.mxu0
      %1425 = vmatprep.mubr.f32.mxu0 0.0
      %1426 = vmatmul.mubr.f32.gmra.mxu0 %v1207
      %v1427 = vpop.f32.mrf.mxu0
      %v1428 = vadd.f32 %v1136, %v1427
      %v1429 = vpop.f32.mrf.mxu0
      %1430 = vmatprep.mubr.f32.mxu0 0.0
      %1431 = vmatmul.mubr.f32.gmra.mxu0 %v1209
      %v1432 = vpop.f32.mrf.mxu0
      %v1433 = vadd.f32 %v1141, %v1432
      %v1434 = vpop.f32.mrf.mxu0
      %1435 = vmatprep.mubr.f32.mxu0 0.0
      %1436 = vmatmul.mubr.f32.gmra.mxu0 %v1211
      %v1437 = vpop.f32.mrf.mxu0
      %v1438 = vadd.f32 %v1146, %v1437
      %v1439 = vpop.f32.mrf.mxu0
      %1440 = vdwg.mxu0
      %vm1441 = vcmask 1045504
      %v1442 = vrot.slane %v318, 2
      %v1443 = vrot.slane %v319, 2
      %v1444 = vsel %vm1441, %v1442, %v1443
      %v1445 = vrot.slane %v320, 2
      %v1446 = vsel %vm1441, %v1443, %v1445
      %v1447 = vrot.slane %v321, 2
      %v1448 = vrot.slane %v322, 2
      %v1449 = vsel %vm1441, %v1447, %v1448
      %v1450 = vrot.slane %v323, 2
      %v1451 = vsel %vm1441, %v1448, %v1450
      %v1452 = vrot.slane %v324, 2
      %v1453 = vrot.slane %v325, 2
      %v1454 = vsel %vm1441, %v1452, %v1453
      %v1455 = vrot.slane %v326, 2
      %v1456 = vsel %vm1441, %v1453, %v1455
      %v1457 = vrot.slane %v327, 2
      %v1458 = vrot.slane %v328, 2
      %v1459 = vsel %vm1441, %v1457, %v1458
      %v1460 = vrot.slane %v329, 2
      %v1461 = vsel %vm1441, %v1458, %v1460
      %v1462 = vrot.slane %v330, 2
      %v1463 = vrot.slane %v331, 2
      %v1464 = vsel %vm1441, %v1462, %v1463
      %v1465 = vrot.slane %v332, 2
      %v1466 = vsel %vm1441, %v1463, %v1465
      %v1467 = vrot.slane %v333, 2
      %v1468 = vrot.slane %v334, 2
      %v1469 = vsel %vm1441, %v1467, %v1468
      %v1470 = vrot.slane %v335, 2
      %v1471 = vsel %vm1441, %v1468, %v1470
      %v1472 = vrot.slane %v336, 2
      %v1473 = vrot.slane %v337, 2
      %v1474 = vsel %vm1441, %v1472, %v1473
      %v1475 = vrot.slane %v338, 2
      %v1476 = vsel %vm1441, %v1473, %v1475
      %v1477 = vrot.slane %v339, 2
      %v1478 = vrot.slane %v340, 2
      %v1479 = vsel %vm1441, %v1477, %v1478
      %v1480 = vrot.slane %v341, 2
      %v1481 = vsel %vm1441, %v1478, %v1480
      %v1482 = vrot.slane %v342, 2
      %v1483 = vrot.slane %v343, 2
      %v1484 = vsel %vm1441, %v1482, %v1483
      %v1485 = vrot.slane %v344, 2
      %v1486 = vsel %vm1441, %v1483, %v1485
      %v1487 = vrot.slane %v345, 2
      %v1488 = vrot.slane %v346, 2
      %v1489 = vsel %vm1441, %v1487, %v1488
      %v1490 = vrot.slane %v347, 2
      %v1491 = vsel %vm1441, %v1488, %v1490
      %v1492 = vrot.slane %v348, 2
      %v1493 = vrot.slane %v349, 2
      %v1494 = vsel %vm1441, %v1492, %v1493
      %v1495 = vrot.slane %v350, 2
      %v1496 = vsel %vm1441, %v1493, %v1495
      %v1497 = vrot.slane %v351, 2
      %v1498 = vrot.slane %v352, 2
      %v1499 = vsel %vm1441, %v1497, %v1498
      %v1500 = vrot.slane %v353, 2
      %v1501 = vsel %vm1441, %v1498, %v1500
      %v1502 = vrot.slane %v354, 2
      %v1503 = vrot.slane %v355, 2
      %v1504 = vsel %vm1441, %v1502, %v1503
      %v1505 = vrot.slane %v356, 2
      %v1506 = vsel %vm1441, %v1503, %v1505
      %v1507 = vrot.slane %v357, 2
      %v1508 = vrot.slane %v358, 2
      %v1509 = vsel %vm1441, %v1507, %v1508
      %v1510 = vrot.slane %v359, 2
      %v1511 = vsel %vm1441, %v1508, %v1510
      %v1512 = vrot.slane %v360, 2
      %v1513 = vrot.slane %v361, 2
      %v1514 = vsel %vm1441, %v1512, %v1513
      %v1515 = vrot.slane %v362, 2
      %v1516 = vsel %vm1441, %v1513, %v1515
      %v1517 = vrot.slane %v363, 2
      %v1518 = vrot.slane %v364, 2
      %v1519 = vsel %vm1441, %v1517, %v1518
      %v1520 = vrot.slane %v365, 2
      %v1521 = vsel %vm1441, %v1518, %v1520
      %s1522 = scalar_lea.vmem %s2, 8
      %v1523 = vld [vmem:[%s1522] sm:$0xf]
      %v1524 = vsel %vm534, %v1444, 0
      %v1526 = vsel %vm534, %v1446, 0
      %v1528 = vsel %vm534, %v1449, 0
      %v1530 = vsel %vm534, %v1451, 0
      %v1532 = vsel %vm534, %v1454, 0
      %v1534 = vsel %vm534, %v1456, 0
      %v1536 = vsel %vm534, %v1459, 0
      %v1538 = vsel %vm534, %v1461, 0
      %v1540 = vsel %vm534, %v1464, 0
      %v1542 = vsel %vm534, %v1466, 0
      %v1544 = vsel %vm534, %v1469, 0
      %v1546 = vsel %vm534, %v1471, 0
      %v1548 = vsel %vm534, %v1474, 0
      %v1550 = vsel %vm534, %v1476, 0
      %v1552 = vsel %vm534, %v1479, 0
      %v1554 = vsel %vm534, %v1481, 0
      %v1556 = vsel %vm534, %v1484, 0
      %v1558 = vsel %vm534, %v1486, 0
      %v1560 = vsel %vm534, %v1489, 0
      %v1562 = vsel %vm534, %v1491, 0
      %v1564 = vsel %vm534, %v1494, 0
      %v1566 = vsel %vm534, %v1496, 0
      %v1568 = vsel %vm534, %v1499, 0
      %v1570 = vsel %vm534, %v1501, 0
      %v1572 = vsel %vm534, %v1504, 0
      %v1574 = vsel %vm534, %v1506, 0
      %v1576 = vsel %vm534, %v1509, 0
      %v1578 = vsel %vm534, %v1511, 0
      %v1580 = vsel %vm534, %v1514, 0
      %v1582 = vsel %vm534, %v1516, 0
      %v1584 = vsel %vm534, %v1519, 0
      %v1586 = vsel %vm534, %v1521, 0
      %v1589 = vsel %vm599, %v1523, 0
      %1591 = vmatprep.subr.mxu0 0.0
      %1592 = vmatpush1.msra.mxu0 0.0
      %1593 = vmatprep.subr.mxu0 0.0
      %1594 = vmatpush1.msra.mxu0 0.0
      %1595 = vmatprep.subr.mxu0 0.0
      %1596 = vmatpush1.msra.mxu0 0.0
      %1597 = vmatprep.subr.mxu0 0.0
      %1598 = vmatpush1.msra.mxu0 0.0
      %1599 = vmatprep.subr.mxu0 0.0
      %1600 = vmatpush1.msra.mxu0 0.0
      %1601 = vmatprep.subr.mxu0 0.0
      %1602 = vmatpush1.msra.mxu0 0.0
      %1603 = vmatprep.subr.mxu0 0.0
      %1604 = vmatpush1.msra.mxu0 0.0
      %1605 = vmatprep.subr.mxu0 0.0
      %1606 = vmatpush1.msra.mxu0 0.0
      %1607 = vmatprep.subr.mxu0 0.0
      %1608 = vmatpush1.msra.mxu0 0.0
      %1609 = vmatprep.subr.mxu0 0.0
      %1610 = vmatpush1.msra.mxu0 0.0
      %1611 = vmatprep.subr.mxu0 0.0
      %1612 = vmatpush1.msra.mxu0 0.0
      %1613 = vmatprep.subr.mxu0 0.0
      %1614 = vmatpush1.msra.mxu0 0.0
      %1615 = vmatprep.subr.mxu0 0.0
      %1616 = vmatpush1.msra.mxu0 0.0
      %1617 = vmatprep.subr.mxu0 0.0
      %1618 = vmatpush1.msra.mxu0 0.0
      %1619 = vmatprep.subr.mxu0 0.0
      %1620 = vmatpush1.msra.mxu0 0.0
      %1621 = vmatprep.subr.mxu0 0.0
      %1622 = vmatpush1.msra.mxu0 %v1589
      %1623 = vmatprep.subr.mxu0 0.0
      %1624 = vmatpush2.msra.mxu0 0.0
      %1625 = vmatprep.subr.mxu0 0.0
      %1626 = vmatpush2.msra.mxu0 0.0
      %1627 = vmatprep.subr.mxu0 0.0
      %1628 = vmatpush2.msra.mxu0 0.0
      %1629 = vmatprep.subr.mxu0 0.0
      %1630 = vmatpush2.msra.mxu0 0.0
      %1631 = vmatprep.subr.mxu0 0.0
      %1632 = vmatpush2.msra.mxu0 0.0
      %1633 = vmatprep.subr.mxu0 0.0
      %1634 = vmatpush2.msra.mxu0 0.0
      %1635 = vmatprep.subr.mxu0 0.0
      %1636 = vmatpush2.msra.mxu0 0.0
      %1637 = vmatprep.subr.mxu0 0.0
      %1638 = vmatpush2.msra.mxu0 0.0
      %1639 = vmatprep.subr.mxu0 0.0
      %1640 = vmatpush2.msra.mxu0 0.0
      %1641 = vmatprep.subr.mxu0 0.0
      %1642 = vmatpush2.msra.mxu0 0.0
      %1643 = vmatprep.subr.mxu0 0.0
      %1644 = vmatpush2.msra.mxu0 0.0
      %1645 = vmatprep.subr.mxu0 0.0
      %1646 = vmatpush2.msra.mxu0 0.0
      %1647 = vmatprep.subr.mxu0 0.0
      %1648 = vmatpush2.msra.mxu0 0.0
      %1649 = vmatprep.subr.mxu0 0.0
      %1650 = vmatpush2.msra.mxu0 0.0
      %1651 = vmatprep.subr.mxu0 0.0
      %1652 = vmatpush2.msra.mxu0 0.0
      %1653 = vmatprep.subr.mxu0 0.0
      %1654 = vmatpush2.msra.mxu0 0.0
      %1655 = vmatprep.mubr.f32.mxu0 0.0
      %1656 = vmatmul.mubr.f32.gmra.mxu0 %v1524
      %v1657 = vpop.f32.mrf.mxu0
      %v1658 = vadd.f32 0.0, %v1657
      %v1659 = vpop.f32.mrf.mxu0
      %1660 = vmatprep.mubr.f32.mxu0 0.0
      %1661 = vmatmul.mubr.f32.gmra.mxu0 %v1526
      %v1662 = vpop.f32.mrf.mxu0
      %v1663 = vadd.f32 0.0, %v1662
      %v1664 = vpop.f32.mrf.mxu0
      %1665 = vmatprep.mubr.f32.mxu0 0.0
      %1666 = vmatmul.mubr.f32.gmra.mxu0 %v1528
      %v1667 = vpop.f32.mrf.mxu0
      %v1668 = vadd.f32 0.0, %v1667
      %v1669 = vpop.f32.mrf.mxu0
      %1670 = vmatprep.mubr.f32.mxu0 0.0
      %1671 = vmatmul.mubr.f32.gmra.mxu0 %v1530
      %v1672 = vpop.f32.mrf.mxu0
      %v1673 = vadd.f32 0.0, %v1672
      %v1674 = vpop.f32.mrf.mxu0
      %1675 = vmatprep.mubr.f32.mxu0 0.0
      %1676 = vmatmul.mubr.f32.gmra.mxu0 %v1532
      %v1677 = vpop.f32.mrf.mxu0
      %v1678 = vadd.f32 0.0, %v1677
      %v1679 = vpop.f32.mrf.mxu0
      %1680 = vmatprep.mubr.f32.mxu0 0.0
      %1681 = vmatmul.mubr.f32.gmra.mxu0 %v1534
      %v1682 = vpop.f32.mrf.mxu0
      %v1683 = vadd.f32 0.0, %v1682
      %v1684 = vpop.f32.mrf.mxu0
      %1685 = vmatprep.mubr.f32.mxu0 0.0
      %1686 = vmatmul.mubr.f32.gmra.mxu0 %v1536
      %v1687 = vpop.f32.mrf.mxu0
      %v1688 = vadd.f32 0.0, %v1687
      %v1689 = vpop.f32.mrf.mxu0
      %1690 = vmatprep.mubr.f32.mxu0 0.0
      %1691 = vmatmul.mubr.f32.gmra.mxu0 %v1538
      %v1692 = vpop.f32.mrf.mxu0
      %v1693 = vadd.f32 0.0, %v1692
      %v1694 = vpop.f32.mrf.mxu0
      %1695 = vmatprep.mubr.f32.mxu0 0.0
      %1696 = vmatmul.mubr.f32.gmra.mxu0 %v1540
      %v1697 = vpop.f32.mrf.mxu0
      %v1698 = vadd.f32 0.0, %v1697
      %v1699 = vpop.f32.mrf.mxu0
      %1700 = vmatprep.mubr.f32.mxu0 0.0
      %1701 = vmatmul.mubr.f32.gmra.mxu0 %v1542
      %v1702 = vpop.f32.mrf.mxu0
      %v1703 = vadd.f32 0.0, %v1702
      %v1704 = vpop.f32.mrf.mxu0
      %1705 = vmatprep.mubr.f32.mxu0 0.0
      %1706 = vmatmul.mubr.f32.gmra.mxu0 %v1544
      %v1707 = vpop.f32.mrf.mxu0
      %v1708 = vadd.f32 0.0, %v1707
      %v1709 = vpop.f32.mrf.mxu0
      %1710 = vmatprep.mubr.f32.mxu0 0.0
      %1711 = vmatmul.mubr.f32.gmra.mxu0 %v1546
      %v1712 = vpop.f32.mrf.mxu0
      %v1713 = vadd.f32 0.0, %v1712
      %v1714 = vpop.f32.mrf.mxu0
      %1715 = vmatprep.mubr.f32.mxu0 0.0
      %1716 = vmatmul.mubr.f32.gmra.mxu0 %v1548
      %v1717 = vpop.f32.mrf.mxu0
      %v1718 = vadd.f32 0.0, %v1717
      %v1719 = vpop.f32.mrf.mxu0
      %1720 = vmatprep.mubr.f32.mxu0 0.0
      %1721 = vmatmul.mubr.f32.gmra.mxu0 %v1550
      %v1722 = vpop.f32.mrf.mxu0
      %v1723 = vadd.f32 0.0, %v1722
      %v1724 = vpop.f32.mrf.mxu0
      %1725 = vmatprep.mubr.f32.mxu0 0.0
      %1726 = vmatmul.mubr.f32.gmra.mxu0 %v1552
      %v1727 = vpop.f32.mrf.mxu0
      %v1728 = vadd.f32 0.0, %v1727
      %v1729 = vpop.f32.mrf.mxu0
      %1730 = vmatprep.mubr.f32.mxu0 0.0
      %1731 = vmatmul.mubr.f32.gmra.mxu0 %v1554
      %v1732 = vpop.f32.mrf.mxu0
      %v1733 = vadd.f32 0.0, %v1732
      %v1734 = vpop.f32.mrf.mxu0
      %1735 = vmatprep.mubr.f32.mxu0 0.0
      %1736 = vmatmul.mubr.f32.gmra.mxu0 %v1556
      %v1737 = vpop.f32.mrf.mxu0
      %v1738 = vadd.f32 0.0, %v1737
      %v1739 = vpop.f32.mrf.mxu0
      %1740 = vmatprep.mubr.f32.mxu0 0.0
      %1741 = vmatmul.mubr.f32.gmra.mxu0 %v1558
      %v1742 = vpop.f32.mrf.mxu0
      %v1743 = vadd.f32 0.0, %v1742
      %v1744 = vpop.f32.mrf.mxu0
      %1745 = vmatprep.mubr.f32.mxu0 0.0
      %1746 = vmatmul.mubr.f32.gmra.mxu0 %v1560
      %v1747 = vpop.f32.mrf.mxu0
      %v1748 = vadd.f32 0.0, %v1747
      %v1749 = vpop.f32.mrf.mxu0
      %1750 = vmatprep.mubr.f32.mxu0 0.0
      %1751 = vmatmul.mubr.f32.gmra.mxu0 %v1562
      %v1752 = vpop.f32.mrf.mxu0
      %v1753 = vadd.f32 0.0, %v1752
      %v1754 = vpop.f32.mrf.mxu0
      %1755 = vmatprep.mubr.f32.mxu0 0.0
      %1756 = vmatmul.mubr.f32.gmra.mxu0 %v1564
      %v1757 = vpop.f32.mrf.mxu0
      %v1758 = vadd.f32 0.0, %v1757
      %v1759 = vpop.f32.mrf.mxu0
      %1760 = vmatprep.mubr.f32.mxu0 0.0
      %1761 = vmatmul.mubr.f32.gmra.mxu0 %v1566
      %v1762 = vpop.f32.mrf.mxu0
      %v1763 = vadd.f32 0.0, %v1762
      %v1764 = vpop.f32.mrf.mxu0
      %1765 = vmatprep.mubr.f32.mxu0 0.0
      %1766 = vmatmul.mubr.f32.gmra.mxu0 %v1568
      %v1767 = vpop.f32.mrf.mxu0
      %v1768 = vadd.f32 0.0, %v1767
      %v1769 = vpop.f32.mrf.mxu0
      %1770 = vmatprep.mubr.f32.mxu0 0.0
      %1771 = vmatmul.mubr.f32.gmra.mxu0 %v1570
      %v1772 = vpop.f32.mrf.mxu0
      %v1773 = vadd.f32 0.0, %v1772
      %v1774 = vpop.f32.mrf.mxu0
      %1775 = vmatprep.mubr.f32.mxu0 0.0
      %1776 = vmatmul.mubr.f32.gmra.mxu0 %v1572
      %v1777 = vpop.f32.mrf.mxu0
      %v1778 = vadd.f32 0.0, %v1777
      %v1779 = vpop.f32.mrf.mxu0
      %1780 = vmatprep.mubr.f32.mxu0 0.0
      %1781 = vmatmul.mubr.f32.gmra.mxu0 %v1574
      %v1782 = vpop.f32.mrf.mxu0
      %v1783 = vadd.f32 0.0, %v1782
      %v1784 = vpop.f32.mrf.mxu0
      %1785 = vmatprep.mubr.f32.mxu0 0.0
      %1786 = vmatmul.mubr.f32.gmra.mxu0 %v1576
      %v1787 = vpop.f32.mrf.mxu0
      %v1788 = vadd.f32 0.0, %v1787
      %v1789 = vpop.f32.mrf.mxu0
      %1790 = vmatprep.mubr.f32.mxu0 0.0
      %1791 = vmatmul.mubr.f32.gmra.mxu0 %v1578
      %v1792 = vpop.f32.mrf.mxu0
      %v1793 = vadd.f32 0.0, %v1792
      %v1794 = vpop.f32.mrf.mxu0
      %1795 = vmatprep.mubr.f32.mxu0 0.0
      %1796 = vmatmul.mubr.f32.gmra.mxu0 %v1580
      %v1797 = vpop.f32.mrf.mxu0
      %v1798 = vadd.f32 0.0, %v1797
      %v1799 = vpop.f32.mrf.mxu0
      %1800 = vmatprep.mubr.f32.mxu0 0.0
      %1801 = vmatmul.mubr.f32.gmra.mxu0 %v1582
      %v1802 = vpop.f32.mrf.mxu0
      %v1803 = vadd.f32 0.0, %v1802
      %v1804 = vpop.f32.mrf.mxu0
      %1805 = vmatprep.mubr.f32.mxu0 0.0
      %1806 = vmatmul.mubr.f32.gmra.mxu0 %v1584
      %v1807 = vpop.f32.mrf.mxu0
      %v1808 = vadd.f32 0.0, %v1807
      %v1809 = vpop.f32.mrf.mxu0
      %1810 = vmatprep.mubr.f32.mxu0 0.0
      %1811 = vmatmul.mubr.f32.gmra.mxu0 %v1586
      %v1812 = vpop.f32.mrf.mxu0
      %v1813 = vadd.f32 0.0, %v1812
      %v1814 = vpop.f32.mrf.mxu0
      %1815 = vdwg.mxu0
      %v1816 = vadd.f32 %v1283, %v1658
      %v1817 = vadd.f32 %v1288, %v1663
      %v1818 = vadd.f32 %v1293, %v1668
      %v1819 = vadd.f32 %v1298, %v1673
      %v1820 = vadd.f32 %v1303, %v1678
      %v1821 = vadd.f32 %v1308, %v1683
      %v1822 = vadd.f32 %v1313, %v1688
      %v1823 = vadd.f32 %v1318, %v1693
      %v1824 = vadd.f32 %v1323, %v1698
      %v1825 = vadd.f32 %v1328, %v1703
      %v1826 = vadd.f32 %v1333, %v1708
      %v1827 = vadd.f32 %v1338, %v1713
      %v1828 = vadd.f32 %v1343, %v1718
      %v1829 = vadd.f32 %v1348, %v1723
      %v1830 = vadd.f32 %v1353, %v1728
      %v1831 = vadd.f32 %v1358, %v1733
      %v1832 = vadd.f32 %v1363, %v1738
      %v1833 = vadd.f32 %v1368, %v1743
      %v1834 = vadd.f32 %v1373, %v1748
      %v1835 = vadd.f32 %v1378, %v1753
      %v1836 = vadd.f32 %v1383, %v1758
      %v1837 = vadd.f32 %v1388, %v1763
      %v1838 = vadd.f32 %v1393, %v1768
      %v1839 = vadd.f32 %v1398, %v1773
      %v1840 = vadd.f32 %v1403, %v1778
      %v1841 = vadd.f32 %v1408, %v1783
      %v1842 = vadd.f32 %v1413, %v1788
      %v1843 = vadd.f32 %v1418, %v1793
      %v1844 = vadd.f32 %v1423, %v1798
      %v1845 = vadd.f32 %v1428, %v1803
      %v1846 = vadd.f32 %v1433, %v1808
      %v1847 = vadd.f32 %v1438, %v1813
      %s1848 = scalar_lea.vmem %s2, 12
      %v1849 = vld [vmem:[%s1848] sm:$0xf]
      %v1850 = vsel %vm534, %v366, 0
      %v1852 = vsel %vm534, %v367, 0
      %v1855 = vsel %vm599, %v1849, 0
      %1857 = vmatprep.subr.mxu0 0.0
      %1858 = vmatpush1.msra.mxu0 0.0
      %1859 = vmatprep.subr.mxu0 0.0
      %1860 = vmatpush1.msra.mxu0 0.0
      %1861 = vmatprep.subr.mxu0 0.0
      %1862 = vmatpush1.msra.mxu0 0.0
      %1863 = vmatprep.subr.mxu0 0.0
      %1864 = vmatpush1.msra.mxu0 0.0
      %1865 = vmatprep.subr.mxu0 0.0
      %1866 = vmatpush1.msra.mxu0 0.0
      %1867 = vmatprep.subr.mxu0 0.0
      %1868 = vmatpush1.msra.mxu0 0.0
      %1869 = vmatprep.subr.mxu0 0.0
      %1870 = vmatpush1.msra.mxu0 0.0
      %1871 = vmatprep.subr.mxu0 0.0
      %1872 = vmatpush1.msra.mxu0 0.0
      %1873 = vmatprep.subr.mxu0 0.0
      %1874 = vmatpush1.msra.mxu0 0.0
      %1875 = vmatprep.subr.mxu0 0.0
      %1876 = vmatpush1.msra.mxu0 0.0
      %1877 = vmatprep.subr.mxu0 0.0
      %1878 = vmatpush1.msra.mxu0 0.0
      %1879 = vmatprep.subr.mxu0 0.0
      %1880 = vmatpush1.msra.mxu0 0.0
      %1881 = vmatprep.subr.mxu0 0.0
      %1882 = vmatpush1.msra.mxu0 0.0
      %1883 = vmatprep.subr.mxu0 0.0
      %1884 = vmatpush1.msra.mxu0 0.0
      %1885 = vmatprep.subr.mxu0 0.0
      %1886 = vmatpush1.msra.mxu0 0.0
      %1887 = vmatprep.subr.mxu0 0.0
      %1888 = vmatpush1.msra.mxu0 %v1855
      %1889 = vmatprep.subr.mxu0 0.0
      %1890 = vmatpush2.msra.mxu0 0.0
      %1891 = vmatprep.subr.mxu0 0.0
      %1892 = vmatpush2.msra.mxu0 0.0
      %1893 = vmatprep.subr.mxu0 0.0
      %1894 = vmatpush2.msra.mxu0 0.0
      %1895 = vmatprep.subr.mxu0 0.0
      %1896 = vmatpush2.msra.mxu0 0.0
      %1897 = vmatprep.subr.mxu0 0.0
      %1898 = vmatpush2.msra.mxu0 0.0
      %1899 = vmatprep.subr.mxu0 0.0
      %1900 = vmatpush2.msra.mxu0 0.0
      %1901 = vmatprep.subr.mxu0 0.0
      %1902 = vmatpush2.msra.mxu0 0.0
      %1903 = vmatprep.subr.mxu0 0.0
      %1904 = vmatpush2.msra.mxu0 0.0
      %1905 = vmatprep.subr.mxu0 0.0
      %1906 = vmatpush2.msra.mxu0 0.0
      %1907 = vmatprep.subr.mxu0 0.0
      %1908 = vmatpush2.msra.mxu0 0.0
      %1909 = vmatprep.subr.mxu0 0.0
      %1910 = vmatpush2.msra.mxu0 0.0
      %1911 = vmatprep.subr.mxu0 0.0
      %1912 = vmatpush2.msra.mxu0 0.0
      %1913 = vmatprep.subr.mxu0 0.0
      %1914 = vmatpush2.msra.mxu0 0.0
      %1915 = vmatprep.subr.mxu0 0.0
      %1916 = vmatpush2.msra.mxu0 0.0
      %1917 = vmatprep.subr.mxu0 0.0
      %1918 = vmatpush2.msra.mxu0 0.0
      %1919 = vmatprep.subr.mxu0 0.0
      %1920 = vmatpush2.msra.mxu0 0.0
      %1921 = vmatprep.mubr.f32.mxu0 0.0
      %1922 = vmatmul.mubr.f32.gmra.mxu0 %v1153
      %v1923 = vpop.f32.mrf.mxu0
      %v1924 = vadd.f32 0.0, %v1923
      %v1925 = vpop.f32.mrf.mxu0
      %1926 = vmatprep.mubr.f32.mxu0 0.0
      %1927 = vmatmul.mubr.f32.gmra.mxu0 %v1155
      %v1928 = vpop.f32.mrf.mxu0
      %v1929 = vadd.f32 0.0, %v1928
      %v1930 = vpop.f32.mrf.mxu0
      %1931 = vmatprep.mubr.f32.mxu0 0.0
      %1932 = vmatmul.mubr.f32.gmra.mxu0 %v1157
      %v1933 = vpop.f32.mrf.mxu0
      %v1934 = vadd.f32 0.0, %v1933
      %v1935 = vpop.f32.mrf.mxu0
      %1936 = vmatprep.mubr.f32.mxu0 0.0
      %1937 = vmatmul.mubr.f32.gmra.mxu0 %v1159
      %v1938 = vpop.f32.mrf.mxu0
      %v1939 = vadd.f32 0.0, %v1938
      %v1940 = vpop.f32.mrf.mxu0
      %1941 = vmatprep.mubr.f32.mxu0 0.0
      %1942 = vmatmul.mubr.f32.gmra.mxu0 %v1161
      %v1943 = vpop.f32.mrf.mxu0
      %v1944 = vadd.f32 0.0, %v1943
      %v1945 = vpop.f32.mrf.mxu0
      %1946 = vmatprep.mubr.f32.mxu0 0.0
      %1947 = vmatmul.mubr.f32.gmra.mxu0 %v1163
      %v1948 = vpop.f32.mrf.mxu0
      %v1949 = vadd.f32 0.0, %v1948
      %v1950 = vpop.f32.mrf.mxu0
      %1951 = vmatprep.mubr.f32.mxu0 0.0
      %1952 = vmatmul.mubr.f32.gmra.mxu0 %v1165
      %v1953 = vpop.f32.mrf.mxu0
      %v1954 = vadd.f32 0.0, %v1953
      %v1955 = vpop.f32.mrf.mxu0
      %1956 = vmatprep.mubr.f32.mxu0 0.0
      %1957 = vmatmul.mubr.f32.gmra.mxu0 %v1167
      %v1958 = vpop.f32.mrf.mxu0
      %v1959 = vadd.f32 0.0, %v1958
      %v1960 = vpop.f32.mrf.mxu0
      %1961 = vmatprep.mubr.f32.mxu0 0.0
      %1962 = vmatmul.mubr.f32.gmra.mxu0 %v1169
      %v1963 = vpop.f32.mrf.mxu0
      %v1964 = vadd.f32 0.0, %v1963
      %v1965 = vpop.f32.mrf.mxu0
      %1966 = vmatprep.mubr.f32.mxu0 0.0
      %1967 = vmatmul.mubr.f32.gmra.mxu0 %v1171
      %v1968 = vpop.f32.mrf.mxu0
      %v1969 = vadd.f32 0.0, %v1968
      %v1970 = vpop.f32.mrf.mxu0
      %1971 = vmatprep.mubr.f32.mxu0 0.0
      %1972 = vmatmul.mubr.f32.gmra.mxu0 %v1173
      %v1973 = vpop.f32.mrf.mxu0
      %v1974 = vadd.f32 0.0, %v1973
      %v1975 = vpop.f32.mrf.mxu0
      %1976 = vmatprep.mubr.f32.mxu0 0.0
      %1977 = vmatmul.mubr.f32.gmra.mxu0 %v1175
      %v1978 = vpop.f32.mrf.mxu0
      %v1979 = vadd.f32 0.0, %v1978
      %v1980 = vpop.f32.mrf.mxu0
      %1981 = vmatprep.mubr.f32.mxu0 0.0
      %1982 = vmatmul.mubr.f32.gmra.mxu0 %v1177
      %v1983 = vpop.f32.mrf.mxu0
      %v1984 = vadd.f32 0.0, %v1983
      %v1985 = vpop.f32.mrf.mxu0
      %1986 = vmatprep.mubr.f32.mxu0 0.0
      %1987 = vmatmul.mubr.f32.gmra.mxu0 %v1179
      %v1988 = vpop.f32.mrf.mxu0
      %v1989 = vadd.f32 0.0, %v1988
      %v1990 = vpop.f32.mrf.mxu0
      %1991 = vmatprep.mubr.f32.mxu0 0.0
      %1992 = vmatmul.mubr.f32.gmra.mxu0 %v1181
      %v1993 = vpop.f32.mrf.mxu0
      %v1994 = vadd.f32 0.0, %v1993
      %v1995 = vpop.f32.mrf.mxu0
      %1996 = vmatprep.mubr.f32.mxu0 0.0
      %1997 = vmatmul.mubr.f32.gmra.mxu0 %v1183
      %v1998 = vpop.f32.mrf.mxu0
      %v1999 = vadd.f32 0.0, %v1998
      %v2000 = vpop.f32.mrf.mxu0
      %2001 = vmatprep.mubr.f32.mxu0 0.0
      %2002 = vmatmul.mubr.f32.gmra.mxu0 %v1185
      %v2003 = vpop.f32.mrf.mxu0
      %v2004 = vadd.f32 0.0, %v2003
      %v2005 = vpop.f32.mrf.mxu0
      %2006 = vmatprep.mubr.f32.mxu0 0.0
      %2007 = vmatmul.mubr.f32.gmra.mxu0 %v1187
      %v2008 = vpop.f32.mrf.mxu0
      %v2009 = vadd.f32 0.0, %v2008
      %v2010 = vpop.f32.mrf.mxu0
      %2011 = vmatprep.mubr.f32.mxu0 0.0
      %2012 = vmatmul.mubr.f32.gmra.mxu0 %v1189
      %v2013 = vpop.f32.mrf.mxu0
      %v2014 = vadd.f32 0.0, %v2013
      %v2015 = vpop.f32.mrf.mxu0
      %2016 = vmatprep.mubr.f32.mxu0 0.0
      %2017 = vmatmul.mubr.f32.gmra.mxu0 %v1191
      %v2018 = vpop.f32.mrf.mxu0
      %v2019 = vadd.f32 0.0, %v2018
      %v2020 = vpop.f32.mrf.mxu0
      %2021 = vmatprep.mubr.f32.mxu0 0.0
      %2022 = vmatmul.mubr.f32.gmra.mxu0 %v1193
      %v2023 = vpop.f32.mrf.mxu0
      %v2024 = vadd.f32 0.0, %v2023
      %v2025 = vpop.f32.mrf.mxu0
      %2026 = vmatprep.mubr.f32.mxu0 0.0
      %2027 = vmatmul.mubr.f32.gmra.mxu0 %v1195
      %v2028 = vpop.f32.mrf.mxu0
      %v2029 = vadd.f32 0.0, %v2028
      %v2030 = vpop.f32.mrf.mxu0
      %2031 = vmatprep.mubr.f32.mxu0 0.0
      %2032 = vmatmul.mubr.f32.gmra.mxu0 %v1197
      %v2033 = vpop.f32.mrf.mxu0
      %v2034 = vadd.f32 0.0, %v2033
      %v2035 = vpop.f32.mrf.mxu0
      %2036 = vmatprep.mubr.f32.mxu0 0.0
      %2037 = vmatmul.mubr.f32.gmra.mxu0 %v1199
      %v2038 = vpop.f32.mrf.mxu0
      %v2039 = vadd.f32 0.0, %v2038
      %v2040 = vpop.f32.mrf.mxu0
      %2041 = vmatprep.mubr.f32.mxu0 0.0
      %2042 = vmatmul.mubr.f32.gmra.mxu0 %v1201
      %v2043 = vpop.f32.mrf.mxu0
      %v2044 = vadd.f32 0.0, %v2043
      %v2045 = vpop.f32.mrf.mxu0
      %2046 = vmatprep.mubr.f32.mxu0 0.0
      %2047 = vmatmul.mubr.f32.gmra.mxu0 %v1203
      %v2048 = vpop.f32.mrf.mxu0
      %v2049 = vadd.f32 0.0, %v2048
      %v2050 = vpop.f32.mrf.mxu0
      %2051 = vmatprep.mubr.f32.mxu0 0.0
      %2052 = vmatmul.mubr.f32.gmra.mxu0 %v1205
      %v2053 = vpop.f32.mrf.mxu0
      %v2054 = vadd.f32 0.0, %v2053
      %v2055 = vpop.f32.mrf.mxu0
      %2056 = vmatprep.mubr.f32.mxu0 0.0
      %2057 = vmatmul.mubr.f32.gmra.mxu0 %v1207
      %v2058 = vpop.f32.mrf.mxu0
      %v2059 = vadd.f32 0.0, %v2058
      %v2060 = vpop.f32.mrf.mxu0
      %2061 = vmatprep.mubr.f32.mxu0 0.0
      %2062 = vmatmul.mubr.f32.gmra.mxu0 %v1209
      %v2063 = vpop.f32.mrf.mxu0
      %v2064 = vadd.f32 0.0, %v2063
      %v2065 = vpop.f32.mrf.mxu0
      %2066 = vmatprep.mubr.f32.mxu0 0.0
      %2067 = vmatmul.mubr.f32.gmra.mxu0 %v1211
      %v2068 = vpop.f32.mrf.mxu0
      %v2069 = vadd.f32 0.0, %v2068
      %v2070 = vpop.f32.mrf.mxu0
      %2071 = vmatprep.mubr.f32.mxu0 0.0
      %2072 = vmatmul.mubr.f32.gmra.mxu0 %v1850
      %v2073 = vpop.f32.mrf.mxu0
      %v2074 = vadd.f32 0.0, %v2073
      %v2075 = vpop.f32.mrf.mxu0
      %2076 = vmatprep.mubr.f32.mxu0 0.0
      %2077 = vmatmul.mubr.f32.gmra.mxu0 %v1852
      %v2078 = vpop.f32.mrf.mxu0
      %v2079 = vadd.f32 0.0, %v2078
      %v2080 = vpop.f32.mrf.mxu0
      %2081 = vdwg.mxu0
      %v2082 = vadd.f32 %v1816, %v1924
      %v2083 = vadd.f32 %v1817, %v1929
      %v2084 = vadd.f32 %v1818, %v1934
      %v2085 = vadd.f32 %v1819, %v1939
      %v2086 = vadd.f32 %v1820, %v1944
      %v2087 = vadd.f32 %v1821, %v1949
      %v2088 = vadd.f32 %v1822, %v1954
      %v2089 = vadd.f32 %v1823, %v1959
      %v2090 = vadd.f32 %v1824, %v1964
      %v2091 = vadd.f32 %v1825, %v1969
      %v2092 = vadd.f32 %v1826, %v1974
      %v2093 = vadd.f32 %v1827, %v1979
      %v2094 = vadd.f32 %v1828, %v1984
      %v2095 = vadd.f32 %v1829, %v1989
      %v2096 = vadd.f32 %v1830, %v1994
      %v2097 = vadd.f32 %v1831, %v1999
      %v2098 = vadd.f32 %v1832, %v2004
      %v2099 = vadd.f32 %v1833, %v2009
      %v2100 = vadd.f32 %v1834, %v2014
      %v2101 = vadd.f32 %v1835, %v2019
      %v2102 = vadd.f32 %v1836, %v2024
      %v2103 = vadd.f32 %v1837, %v2029
      %v2104 = vadd.f32 %v1838, %v2034
      %v2105 = vadd.f32 %v1839, %v2039
      %v2106 = vadd.f32 %v1840, %v2044
      %v2107 = vadd.f32 %v1841, %v2049
      %v2108 = vadd.f32 %v1842, %v2054
      %v2109 = vadd.f32 %v1843, %v2059
      %v2110 = vadd.f32 %v1844, %v2064
      %v2111 = vadd.f32 %v1845, %v2069
      %v2112 = vadd.f32 %v1846, %v2074
      %v2113 = vadd.f32 %v1847, %v2079
      %s2114 = scalar_lea.vmem %s2, 16
      %v2115 = vld [vmem:[%s2114] sm:$0xf]
      %v2117 = vsel %vm599, %v2115, 0
      %2119 = vmatprep.subr.mxu0 0.0
      %2120 = vmatpush1.msra.mxu0 0.0
      %2121 = vmatprep.subr.mxu0 0.0
      %2122 = vmatpush1.msra.mxu0 0.0
      %2123 = vmatprep.subr.mxu0 0.0
      %2124 = vmatpush1.msra.mxu0 0.0
      %2125 = vmatprep.subr.mxu0 0.0
      %2126 = vmatpush1.msra.mxu0 0.0
      %2127 = vmatprep.subr.mxu0 0.0
      %2128 = vmatpush1.msra.mxu0 0.0
      %2129 = vmatprep.subr.mxu0 0.0
      %2130 = vmatpush1.msra.mxu0 0.0
      %2131 = vmatprep.subr.mxu0 0.0
      %2132 = vmatpush1.msra.mxu0 0.0
      %2133 = vmatprep.subr.mxu0 0.0
      %2134 = vmatpush1.msra.mxu0 0.0
      %2135 = vmatprep.subr.mxu0 0.0
      %2136 = vmatpush1.msra.mxu0 0.0
      %2137 = vmatprep.subr.mxu0 0.0
      %2138 = vmatpush1.msra.mxu0 0.0
      %2139 = vmatprep.subr.mxu0 0.0
      %2140 = vmatpush1.msra.mxu0 0.0
      %2141 = vmatprep.subr.mxu0 0.0
      %2142 = vmatpush1.msra.mxu0 0.0
      %2143 = vmatprep.subr.mxu0 0.0
      %2144 = vmatpush1.msra.mxu0 0.0
      %2145 = vmatprep.subr.mxu0 0.0
      %2146 = vmatpush1.msra.mxu0 0.0
      %2147 = vmatprep.subr.mxu0 0.0
      %2148 = vmatpush1.msra.mxu0 0.0
      %2149 = vmatprep.subr.mxu0 0.0
      %2150 = vmatpush1.msra.mxu0 %v2117
      %2151 = vmatprep.subr.mxu0 0.0
      %2152 = vmatpush2.msra.mxu0 0.0
      %2153 = vmatprep.subr.mxu0 0.0
      %2154 = vmatpush2.msra.mxu0 0.0
      %2155 = vmatprep.subr.mxu0 0.0
      %2156 = vmatpush2.msra.mxu0 0.0
      %2157 = vmatprep.subr.mxu0 0.0
      %2158 = vmatpush2.msra.mxu0 0.0
      %2159 = vmatprep.subr.mxu0 0.0
      %2160 = vmatpush2.msra.mxu0 0.0
      %2161 = vmatprep.subr.mxu0 0.0
      %2162 = vmatpush2.msra.mxu0 0.0
      %2163 = vmatprep.subr.mxu0 0.0
      %2164 = vmatpush2.msra.mxu0 0.0
      %2165 = vmatprep.subr.mxu0 0.0
      %2166 = vmatpush2.msra.mxu0 0.0
      %2167 = vmatprep.subr.mxu0 0.0
      %2168 = vmatpush2.msra.mxu0 0.0
      %2169 = vmatprep.subr.mxu0 0.0
      %2170 = vmatpush2.msra.mxu0 0.0
      %2171 = vmatprep.subr.mxu0 0.0
      %2172 = vmatpush2.msra.mxu0 0.0
      %2173 = vmatprep.subr.mxu0 0.0
      %2174 = vmatpush2.msra.mxu0 0.0
      %2175 = vmatprep.subr.mxu0 0.0
      %2176 = vmatpush2.msra.mxu0 0.0
      %2177 = vmatprep.subr.mxu0 0.0
      %2178 = vmatpush2.msra.mxu0 0.0
      %2179 = vmatprep.subr.mxu0 0.0
      %2180 = vmatpush2.msra.mxu0 0.0
      %2181 = vmatprep.subr.mxu0 0.0
      %2182 = vmatpush2.msra.mxu0 0.0
      %2183 = vmatprep.mubr.f32.mxu0 0.0
      %2184 = vmatmul.mubr.f32.gmra.mxu0 %v535
      %v2185 = vpop.f32.mrf.mxu0
      %v2186 = vadd.f32 0.0, %v2185
      %v2187 = vpop.f32.mrf.mxu0
      %2188 = vmatprep.mubr.f32.mxu0 0.0
      %2189 = vmatmul.mubr.f32.gmra.mxu0 %v537
      %v2190 = vpop.f32.mrf.mxu0
      %v2191 = vadd.f32 0.0, %v2190
      %v2192 = vpop.f32.mrf.mxu0
      %2193 = vmatprep.mubr.f32.mxu0 0.0
      %2194 = vmatmul.mubr.f32.gmra.mxu0 %v539
      %v2195 = vpop.f32.mrf.mxu0
      %v2196 = vadd.f32 0.0, %v2195
      %v2197 = vpop.f32.mrf.mxu0
      %2198 = vmatprep.mubr.f32.mxu0 0.0
      %2199 = vmatmul.mubr.f32.gmra.mxu0 %v541
      %v2200 = vpop.f32.mrf.mxu0
      %v2201 = vadd.f32 0.0, %v2200
      %v2202 = vpop.f32.mrf.mxu0
      %2203 = vmatprep.mubr.f32.mxu0 0.0
      %2204 = vmatmul.mubr.f32.gmra.mxu0 %v543
      %v2205 = vpop.f32.mrf.mxu0
      %v2206 = vadd.f32 0.0, %v2205
      %v2207 = vpop.f32.mrf.mxu0
      %2208 = vmatprep.mubr.f32.mxu0 0.0
      %2209 = vmatmul.mubr.f32.gmra.mxu0 %v545
      %v2210 = vpop.f32.mrf.mxu0
      %v2211 = vadd.f32 0.0, %v2210
      %v2212 = vpop.f32.mrf.mxu0
      %2213 = vmatprep.mubr.f32.mxu0 0.0
      %2214 = vmatmul.mubr.f32.gmra.mxu0 %v547
      %v2215 = vpop.f32.mrf.mxu0
      %v2216 = vadd.f32 0.0, %v2215
      %v2217 = vpop.f32.mrf.mxu0
      %2218 = vmatprep.mubr.f32.mxu0 0.0
      %2219 = vmatmul.mubr.f32.gmra.mxu0 %v549
      %v2220 = vpop.f32.mrf.mxu0
      %v2221 = vadd.f32 0.0, %v2220
      %v2222 = vpop.f32.mrf.mxu0
      %2223 = vmatprep.mubr.f32.mxu0 0.0
      %2224 = vmatmul.mubr.f32.gmra.mxu0 %v551
      %v2225 = vpop.f32.mrf.mxu0
      %v2226 = vadd.f32 0.0, %v2225
      %v2227 = vpop.f32.mrf.mxu0
      %2228 = vmatprep.mubr.f32.mxu0 0.0
      %2229 = vmatmul.mubr.f32.gmra.mxu0 %v553
      %v2230 = vpop.f32.mrf.mxu0
      %v2231 = vadd.f32 0.0, %v2230
      %v2232 = vpop.f32.mrf.mxu0
      %2233 = vmatprep.mubr.f32.mxu0 0.0
      %2234 = vmatmul.mubr.f32.gmra.mxu0 %v555
      %v2235 = vpop.f32.mrf.mxu0
      %v2236 = vadd.f32 0.0, %v2235
      %v2237 = vpop.f32.mrf.mxu0
      %2238 = vmatprep.mubr.f32.mxu0 0.0
      %2239 = vmatmul.mubr.f32.gmra.mxu0 %v557
      %v2240 = vpop.f32.mrf.mxu0
      %v2241 = vadd.f32 0.0, %v2240
      %v2242 = vpop.f32.mrf.mxu0
      %2243 = vmatprep.mubr.f32.mxu0 0.0
      %2244 = vmatmul.mubr.f32.gmra.mxu0 %v559
      %v2245 = vpop.f32.mrf.mxu0
      %v2246 = vadd.f32 0.0, %v2245
      %v2247 = vpop.f32.mrf.mxu0
      %2248 = vmatprep.mubr.f32.mxu0 0.0
      %2249 = vmatmul.mubr.f32.gmra.mxu0 %v561
      %v2250 = vpop.f32.mrf.mxu0
      %v2251 = vadd.f32 0.0, %v2250
      %v2252 = vpop.f32.mrf.mxu0
      %2253 = vmatprep.mubr.f32.mxu0 0.0
      %2254 = vmatmul.mubr.f32.gmra.mxu0 %v563
      %v2255 = vpop.f32.mrf.mxu0
      %v2256 = vadd.f32 0.0, %v2255
      %v2257 = vpop.f32.mrf.mxu0
      %2258 = vmatprep.mubr.f32.mxu0 0.0
      %2259 = vmatmul.mubr.f32.gmra.mxu0 %v565
      %v2260 = vpop.f32.mrf.mxu0
      %v2261 = vadd.f32 0.0, %v2260
      %v2262 = vpop.f32.mrf.mxu0
      %2263 = vmatprep.mubr.f32.mxu0 0.0
      %2264 = vmatmul.mubr.f32.gmra.mxu0 %v567
      %v2265 = vpop.f32.mrf.mxu0
      %v2266 = vadd.f32 0.0, %v2265
      %v2267 = vpop.f32.mrf.mxu0
      %2268 = vmatprep.mubr.f32.mxu0 0.0
      %2269 = vmatmul.mubr.f32.gmra.mxu0 %v569
      %v2270 = vpop.f32.mrf.mxu0
      %v2271 = vadd.f32 0.0, %v2270
      %v2272 = vpop.f32.mrf.mxu0
      %2273 = vmatprep.mubr.f32.mxu0 0.0
      %2274 = vmatmul.mubr.f32.gmra.mxu0 %v571
      %v2275 = vpop.f32.mrf.mxu0
      %v2276 = vadd.f32 0.0, %v2275
      %v2277 = vpop.f32.mrf.mxu0
      %2278 = vmatprep.mubr.f32.mxu0 0.0
      %2279 = vmatmul.mubr.f32.gmra.mxu0 %v573
      %v2280 = vpop.f32.mrf.mxu0
      %v2281 = vadd.f32 0.0, %v2280
      %v2282 = vpop.f32.mrf.mxu0
      %2283 = vmatprep.mubr.f32.mxu0 0.0
      %2284 = vmatmul.mubr.f32.gmra.mxu0 %v575
      %v2285 = vpop.f32.mrf.mxu0
      %v2286 = vadd.f32 0.0, %v2285
      %v2287 = vpop.f32.mrf.mxu0
      %2288 = vmatprep.mubr.f32.mxu0 0.0
      %2289 = vmatmul.mubr.f32.gmra.mxu0 %v577
      %v2290 = vpop.f32.mrf.mxu0
      %v2291 = vadd.f32 0.0, %v2290
      %v2292 = vpop.f32.mrf.mxu0
      %2293 = vmatprep.mubr.f32.mxu0 0.0
      %2294 = vmatmul.mubr.f32.gmra.mxu0 %v579
      %v2295 = vpop.f32.mrf.mxu0
      %v2296 = vadd.f32 0.0, %v2295
      %v2297 = vpop.f32.mrf.mxu0
      %2298 = vmatprep.mubr.f32.mxu0 0.0
      %2299 = vmatmul.mubr.f32.gmra.mxu0 %v581
      %v2300 = vpop.f32.mrf.mxu0
      %v2301 = vadd.f32 0.0, %v2300
      %v2302 = vpop.f32.mrf.mxu0
      %2303 = vmatprep.mubr.f32.mxu0 0.0
      %2304 = vmatmul.mubr.f32.gmra.mxu0 %v583
      %v2305 = vpop.f32.mrf.mxu0
      %v2306 = vadd.f32 0.0, %v2305
      %v2307 = vpop.f32.mrf.mxu0
      %2308 = vmatprep.mubr.f32.mxu0 0.0
      %2309 = vmatmul.mubr.f32.gmra.mxu0 %v585
      %v2310 = vpop.f32.mrf.mxu0
      %v2311 = vadd.f32 0.0, %v2310
      %v2312 = vpop.f32.mrf.mxu0
      %2313 = vmatprep.mubr.f32.mxu0 0.0
      %2314 = vmatmul.mubr.f32.gmra.mxu0 %v587
      %v2315 = vpop.f32.mrf.mxu0
      %v2316 = vadd.f32 0.0, %v2315
      %v2317 = vpop.f32.mrf.mxu0
      %2318 = vmatprep.mubr.f32.mxu0 0.0
      %2319 = vmatmul.mubr.f32.gmra.mxu0 %v589
      %v2320 = vpop.f32.mrf.mxu0
      %v2321 = vadd.f32 0.0, %v2320
      %v2322 = vpop.f32.mrf.mxu0
      %2323 = vmatprep.mubr.f32.mxu0 0.0
      %2324 = vmatmul.mubr.f32.gmra.mxu0 %v591
      %v2325 = vpop.f32.mrf.mxu0
      %v2326 = vadd.f32 0.0, %v2325
      %v2327 = vpop.f32.mrf.mxu0
      %2328 = vmatprep.mubr.f32.mxu0 0.0
      %2329 = vmatmul.mubr.f32.gmra.mxu0 %v593
      %v2330 = vpop.f32.mrf.mxu0
      %v2331 = vadd.f32 0.0, %v2330
      %v2332 = vpop.f32.mrf.mxu0
      %2333 = vmatprep.mubr.f32.mxu0 0.0
      %2334 = vmatmul.mubr.f32.gmra.mxu0 %v595
      %v2335 = vpop.f32.mrf.mxu0
      %v2336 = vadd.f32 0.0, %v2335
      %v2337 = vpop.f32.mrf.mxu0
      %2338 = vmatprep.mubr.f32.mxu0 0.0
      %2339 = vmatmul.mubr.f32.gmra.mxu0 %v597
      %v2340 = vpop.f32.mrf.mxu0
      %v2341 = vadd.f32 0.0, %v2340
      %v2342 = vpop.f32.mrf.mxu0
      %2343 = vdwg.mxu0
      %v2344 = vadd.f32 %v2082, %v2186
      %v2345 = vadd.f32 %v2083, %v2191
      %v2346 = vadd.f32 %v2084, %v2196
      %v2347 = vadd.f32 %v2085, %v2201
      %v2348 = vadd.f32 %v2086, %v2206
      %v2349 = vadd.f32 %v2087, %v2211
      %v2350 = vadd.f32 %v2088, %v2216
      %v2351 = vadd.f32 %v2089, %v2221
      %v2352 = vadd.f32 %v2090, %v2226
      %v2353 = vadd.f32 %v2091, %v2231
      %v2354 = vadd.f32 %v2092, %v2236
      %v2355 = vadd.f32 %v2093, %v2241
      %v2356 = vadd.f32 %v2094, %v2246
      %v2357 = vadd.f32 %v2095, %v2251
      %v2358 = vadd.f32 %v2096, %v2256
      %v2359 = vadd.f32 %v2097, %v2261
      %v2360 = vadd.f32 %v2098, %v2266
      %v2361 = vadd.f32 %v2099, %v2271
      %v2362 = vadd.f32 %v2100, %v2276
      %v2363 = vadd.f32 %v2101, %v2281
      %v2364 = vadd.f32 %v2102, %v2286
      %v2365 = vadd.f32 %v2103, %v2291
      %v2366 = vadd.f32 %v2104, %v2296
      %v2367 = vadd.f32 %v2105, %v2301
      %v2368 = vadd.f32 %v2106, %v2306
      %v2369 = vadd.f32 %v2107, %v2311
      %v2370 = vadd.f32 %v2108, %v2316
      %v2371 = vadd.f32 %v2109, %v2321
      %v2372 = vadd.f32 %v2110, %v2326
      %v2373 = vadd.f32 %v2111, %v2331
      %v2374 = vadd.f32 %v2112, %v2336
      %v2375 = vadd.f32 %v2113, %v2341
      %v2376 = vrot.slane %v366, 2
      %v2377 = vrot.slane %v367, 2
      %v2378 = vsel %vm1441, %v2376, %v2377
      %v2379 = vrot.slane %v368, 2
      %v2380 = vsel %vm1441, %v2377, %v2379
      %s2381 = scalar_lea.vmem %s2, 20
      %v2382 = vld [vmem:[%s2381] sm:$0xf]
      %v2383 = vsel %vm534, %v2378, 0
      %v2385 = vsel %vm534, %v2380, 0
      %v2388 = vsel %vm599, %v2382, 0
      %2390 = vmatprep.subr.mxu0 0.0
      %2391 = vmatpush1.msra.mxu0 0.0
      %2392 = vmatprep.subr.mxu0 0.0
      %2393 = vmatpush1.msra.mxu0 0.0
      %2394 = vmatprep.subr.mxu0 0.0
      %2395 = vmatpush1.msra.mxu0 0.0
      %2396 = vmatprep.subr.mxu0 0.0
      %2397 = vmatpush1.msra.mxu0 0.0
      %2398 = vmatprep.subr.mxu0 0.0
      %2399 = vmatpush1.msra.mxu0 0.0
      %2400 = vmatprep.subr.mxu0 0.0
      %2401 = vmatpush1.msra.mxu0 0.0
      %2402 = vmatprep.subr.mxu0 0.0
      %2403 = vmatpush1.msra.mxu0 0.0
      %2404 = vmatprep.subr.mxu0 0.0
      %2405 = vmatpush1.msra.mxu0 0.0
      %2406 = vmatprep.subr.mxu0 0.0
      %2407 = vmatpush1.msra.mxu0 0.0
      %2408 = vmatprep.subr.mxu0 0.0
      %2409 = vmatpush1.msra.mxu0 0.0
      %2410 = vmatprep.subr.mxu0 0.0
      %2411 = vmatpush1.msra.mxu0 0.0
      %2412 = vmatprep.subr.mxu0 0.0
      %2413 = vmatpush1.msra.mxu0 0.0
      %2414 = vmatprep.subr.mxu0 0.0
      %2415 = vmatpush1.msra.mxu0 0.0
      %2416 = vmatprep.subr.mxu0 0.0
      %2417 = vmatpush1.msra.mxu0 0.0
      %2418 = vmatprep.subr.mxu0 0.0
      %2419 = vmatpush1.msra.mxu0 0.0
      %2420 = vmatprep.subr.mxu0 0.0
      %2421 = vmatpush1.msra.mxu0 %v2388
      %2422 = vmatprep.subr.mxu0 0.0
      %2423 = vmatpush2.msra.mxu0 0.0
      %2424 = vmatprep.subr.mxu0 0.0
      %2425 = vmatpush2.msra.mxu0 0.0
      %2426 = vmatprep.subr.mxu0 0.0
      %2427 = vmatpush2.msra.mxu0 0.0
      %2428 = vmatprep.subr.mxu0 0.0
      %2429 = vmatpush2.msra.mxu0 0.0
      %2430 = vmatprep.subr.mxu0 0.0
      %2431 = vmatpush2.msra.mxu0 0.0
      %2432 = vmatprep.subr.mxu0 0.0
      %2433 = vmatpush2.msra.mxu0 0.0
      %2434 = vmatprep.subr.mxu0 0.0
      %2435 = vmatpush2.msra.mxu0 0.0
      %2436 = vmatprep.subr.mxu0 0.0
      %2437 = vmatpush2.msra.mxu0 0.0
      %2438 = vmatprep.subr.mxu0 0.0
      %2439 = vmatpush2.msra.mxu0 0.0
      %2440 = vmatprep.subr.mxu0 0.0
      %2441 = vmatpush2.msra.mxu0 0.0
      %2442 = vmatprep.subr.mxu0 0.0
      %2443 = vmatpush2.msra.mxu0 0.0
      %2444 = vmatprep.subr.mxu0 0.0
      %2445 = vmatpush2.msra.mxu0 0.0
      %2446 = vmatprep.subr.mxu0 0.0
      %2447 = vmatpush2.msra.mxu0 0.0
      %2448 = vmatprep.subr.mxu0 0.0
      %2449 = vmatpush2.msra.mxu0 0.0
      %2450 = vmatprep.subr.mxu0 0.0
      %2451 = vmatpush2.msra.mxu0 0.0
      %2452 = vmatprep.subr.mxu0 0.0
      %2453 = vmatpush2.msra.mxu0 0.0
      %2454 = vmatprep.mubr.f32.mxu0 0.0
      %2455 = vmatmul.mubr.f32.gmra.mxu0 %v1528
      %v2456 = vpop.f32.mrf.mxu0
      %v2457 = vadd.f32 0.0, %v2456
      %v2458 = vpop.f32.mrf.mxu0
      %2459 = vmatprep.mubr.f32.mxu0 0.0
      %2460 = vmatmul.mubr.f32.gmra.mxu0 %v1530
      %v2461 = vpop.f32.mrf.mxu0
      %v2462 = vadd.f32 0.0, %v2461
      %v2463 = vpop.f32.mrf.mxu0
      %2464 = vmatprep.mubr.f32.mxu0 0.0
      %2465 = vmatmul.mubr.f32.gmra.mxu0 %v1532
      %v2466 = vpop.f32.mrf.mxu0
      %v2467 = vadd.f32 0.0, %v2466
      %v2468 = vpop.f32.mrf.mxu0
      %2469 = vmatprep.mubr.f32.mxu0 0.0
      %2470 = vmatmul.mubr.f32.gmra.mxu0 %v1534
      %v2471 = vpop.f32.mrf.mxu0
      %v2472 = vadd.f32 0.0, %v2471
      %v2473 = vpop.f32.mrf.mxu0
      %2474 = vmatprep.mubr.f32.mxu0 0.0
      %2475 = vmatmul.mubr.f32.gmra.mxu0 %v1536
      %v2476 = vpop.f32.mrf.mxu0
      %v2477 = vadd.f32 0.0, %v2476
      %v2478 = vpop.f32.mrf.mxu0
      %2479 = vmatprep.mubr.f32.mxu0 0.0
      %2480 = vmatmul.mubr.f32.gmra.mxu0 %v1538
      %v2481 = vpop.f32.mrf.mxu0
      %v2482 = vadd.f32 0.0, %v2481
      %v2483 = vpop.f32.mrf.mxu0
      %2484 = vmatprep.mubr.f32.mxu0 0.0
      %2485 = vmatmul.mubr.f32.gmra.mxu0 %v1540
      %v2486 = vpop.f32.mrf.mxu0
      %v2487 = vadd.f32 0.0, %v2486
      %v2488 = vpop.f32.mrf.mxu0
      %2489 = vmatprep.mubr.f32.mxu0 0.0
      %2490 = vmatmul.mubr.f32.gmra.mxu0 %v1542
      %v2491 = vpop.f32.mrf.mxu0
      %v2492 = vadd.f32 0.0, %v2491
      %v2493 = vpop.f32.mrf.mxu0
      %2494 = vmatprep.mubr.f32.mxu0 0.0
      %2495 = vmatmul.mubr.f32.gmra.mxu0 %v1544
      %v2496 = vpop.f32.mrf.mxu0
      %v2497 = vadd.f32 0.0, %v2496
      %v2498 = vpop.f32.mrf.mxu0
      %2499 = vmatprep.mubr.f32.mxu0 0.0
      %2500 = vmatmul.mubr.f32.gmra.mxu0 %v1546
      %v2501 = vpop.f32.mrf.mxu0
      %v2502 = vadd.f32 0.0, %v2501
      %v2503 = vpop.f32.mrf.mxu0
      %2504 = vmatprep.mubr.f32.mxu0 0.0
      %2505 = vmatmul.mubr.f32.gmra.mxu0 %v1548
      %v2506 = vpop.f32.mrf.mxu0
      %v2507 = vadd.f32 0.0, %v2506
      %v2508 = vpop.f32.mrf.mxu0
      %2509 = vmatprep.mubr.f32.mxu0 0.0
      %2510 = vmatmul.mubr.f32.gmra.mxu0 %v1550
      %v2511 = vpop.f32.mrf.mxu0
      %v2512 = vadd.f32 0.0, %v2511
      %v2513 = vpop.f32.mrf.mxu0
      %2514 = vmatprep.mubr.f32.mxu0 0.0
      %2515 = vmatmul.mubr.f32.gmra.mxu0 %v1552
      %v2516 = vpop.f32.mrf.mxu0
      %v2517 = vadd.f32 0.0, %v2516
      %v2518 = vpop.f32.mrf.mxu0
      %2519 = vmatprep.mubr.f32.mxu0 0.0
      %2520 = vmatmul.mubr.f32.gmra.mxu0 %v1554
      %v2521 = vpop.f32.mrf.mxu0
      %v2522 = vadd.f32 0.0, %v2521
      %v2523 = vpop.f32.mrf.mxu0
      %2524 = vmatprep.mubr.f32.mxu0 0.0
      %2525 = vmatmul.mubr.f32.gmra.mxu0 %v1556
      %v2526 = vpop.f32.mrf.mxu0
      %v2527 = vadd.f32 0.0, %v2526
      %v2528 = vpop.f32.mrf.mxu0
      %2529 = vmatprep.mubr.f32.mxu0 0.0
      %2530 = vmatmul.mubr.f32.gmra.mxu0 %v1558
      %v2531 = vpop.f32.mrf.mxu0
      %v2532 = vadd.f32 0.0, %v2531
      %v2533 = vpop.f32.mrf.mxu0
      %2534 = vmatprep.mubr.f32.mxu0 0.0
      %2535 = vmatmul.mubr.f32.gmra.mxu0 %v1560
      %v2536 = vpop.f32.mrf.mxu0
      %v2537 = vadd.f32 0.0, %v2536
      %v2538 = vpop.f32.mrf.mxu0
      %2539 = vmatprep.mubr.f32.mxu0 0.0
      %2540 = vmatmul.mubr.f32.gmra.mxu0 %v1562
      %v2541 = vpop.f32.mrf.mxu0
      %v2542 = vadd.f32 0.0, %v2541
      %v2543 = vpop.f32.mrf.mxu0
      %2544 = vmatprep.mubr.f32.mxu0 0.0
      %2545 = vmatmul.mubr.f32.gmra.mxu0 %v1564
      %v2546 = vpop.f32.mrf.mxu0
      %v2547 = vadd.f32 0.0, %v2546
      %v2548 = vpop.f32.mrf.mxu0
      %2549 = vmatprep.mubr.f32.mxu0 0.0
      %2550 = vmatmul.mubr.f32.gmra.mxu0 %v1566
      %v2551 = vpop.f32.mrf.mxu0
      %v2552 = vadd.f32 0.0, %v2551
      %v2553 = vpop.f32.mrf.mxu0
      %2554 = vmatprep.mubr.f32.mxu0 0.0
      %2555 = vmatmul.mubr.f32.gmra.mxu0 %v1568
      %v2556 = vpop.f32.mrf.mxu0
      %v2557 = vadd.f32 0.0, %v2556
      %v2558 = vpop.f32.mrf.mxu0
      %2559 = vmatprep.mubr.f32.mxu0 0.0
      %2560 = vmatmul.mubr.f32.gmra.mxu0 %v1570
      %v2561 = vpop.f32.mrf.mxu0
      %v2562 = vadd.f32 0.0, %v2561
      %v2563 = vpop.f32.mrf.mxu0
      %2564 = vmatprep.mubr.f32.mxu0 0.0
      %2565 = vmatmul.mubr.f32.gmra.mxu0 %v1572
      %v2566 = vpop.f32.mrf.mxu0
      %v2567 = vadd.f32 0.0, %v2566
      %v2568 = vpop.f32.mrf.mxu0
      %2569 = vmatprep.mubr.f32.mxu0 0.0
      %2570 = vmatmul.mubr.f32.gmra.mxu0 %v1574
      %v2571 = vpop.f32.mrf.mxu0
      %v2572 = vadd.f32 0.0, %v2571
      %v2573 = vpop.f32.mrf.mxu0
      %2574 = vmatprep.mubr.f32.mxu0 0.0
      %2575 = vmatmul.mubr.f32.gmra.mxu0 %v1576
      %v2576 = vpop.f32.mrf.mxu0
      %v2577 = vadd.f32 0.0, %v2576
      %v2578 = vpop.f32.mrf.mxu0
      %2579 = vmatprep.mubr.f32.mxu0 0.0
      %2580 = vmatmul.mubr.f32.gmra.mxu0 %v1578
      %v2581 = vpop.f32.mrf.mxu0
      %v2582 = vadd.f32 0.0, %v2581
      %v2583 = vpop.f32.mrf.mxu0
      %2584 = vmatprep.mubr.f32.mxu0 0.0
      %2585 = vmatmul.mubr.f32.gmra.mxu0 %v1580
      %v2586 = vpop.f32.mrf.mxu0
      %v2587 = vadd.f32 0.0, %v2586
      %v2588 = vpop.f32.mrf.mxu0
      %2589 = vmatprep.mubr.f32.mxu0 0.0
      %2590 = vmatmul.mubr.f32.gmra.mxu0 %v1582
      %v2591 = vpop.f32.mrf.mxu0
      %v2592 = vadd.f32 0.0, %v2591
      %v2593 = vpop.f32.mrf.mxu0
      %2594 = vmatprep.mubr.f32.mxu0 0.0
      %2595 = vmatmul.mubr.f32.gmra.mxu0 %v1584
      %v2596 = vpop.f32.mrf.mxu0
      %v2597 = vadd.f32 0.0, %v2596
      %v2598 = vpop.f32.mrf.mxu0
      %2599 = vmatprep.mubr.f32.mxu0 0.0
      %2600 = vmatmul.mubr.f32.gmra.mxu0 %v1586
      %v2601 = vpop.f32.mrf.mxu0
      %v2602 = vadd.f32 0.0, %v2601
      %v2603 = vpop.f32.mrf.mxu0
      %2604 = vmatprep.mubr.f32.mxu0 0.0
      %2605 = vmatmul.mubr.f32.gmra.mxu0 %v2383
      %v2606 = vpop.f32.mrf.mxu0
      %v2607 = vadd.f32 0.0, %v2606
      %v2608 = vpop.f32.mrf.mxu0
      %2609 = vmatprep.mubr.f32.mxu0 0.0
      %2610 = vmatmul.mubr.f32.gmra.mxu0 %v2385
      %v2611 = vpop.f32.mrf.mxu0
      %v2612 = vadd.f32 0.0, %v2611
      %v2613 = vpop.f32.mrf.mxu0
      %2614 = vdwg.mxu0
      %v2615 = vadd.f32 %v2344, %v2457
      %v2616 = vadd.f32 %v2345, %v2462
      %v2617 = vadd.f32 %v2346, %v2467
      %v2618 = vadd.f32 %v2347, %v2472
      %v2619 = vadd.f32 %v2348, %v2477
      %v2620 = vadd.f32 %v2349, %v2482
      %v2621 = vadd.f32 %v2350, %v2487
      %v2622 = vadd.f32 %v2351, %v2492
      %v2623 = vadd.f32 %v2352, %v2497
      %v2624 = vadd.f32 %v2353, %v2502
      %v2625 = vadd.f32 %v2354, %v2507
      %v2626 = vadd.f32 %v2355, %v2512
      %v2627 = vadd.f32 %v2356, %v2517
      %v2628 = vadd.f32 %v2357, %v2522
      %v2629 = vadd.f32 %v2358, %v2527
      %v2630 = vadd.f32 %v2359, %v2532
      %v2631 = vadd.f32 %v2360, %v2537
      %v2632 = vadd.f32 %v2361, %v2542
      %v2633 = vadd.f32 %v2362, %v2547
      %v2634 = vadd.f32 %v2363, %v2552
      %v2635 = vadd.f32 %v2364, %v2557
      %v2636 = vadd.f32 %v2365, %v2562
      %v2637 = vadd.f32 %v2366, %v2567
      %v2638 = vadd.f32 %v2367, %v2572
      %v2639 = vadd.f32 %v2368, %v2577
      %v2640 = vadd.f32 %v2369, %v2582
      %v2641 = vadd.f32 %v2370, %v2587
      %v2642 = vadd.f32 %v2371, %v2592
      %v2643 = vadd.f32 %v2372, %v2597
      %v2644 = vadd.f32 %v2373, %v2602
      %v2645 = vadd.f32 %v2374, %v2607
      %v2646 = vadd.f32 %v2375, %v2612
      %s2647 = scalar_lea.vmem %s2, 24
      %v2648 = vld [vmem:[%s2647] sm:$0xf]
      %v2650 = vsel %vm534, %v369, 0
      %v2653 = vsel %vm534, %v370, 0
      %v2656 = vsel %vm599, %v2648, 0
      %2658 = vmatprep.subr.mxu0 0.0
      %2659 = vmatpush1.msra.mxu0 0.0
      %2660 = vmatprep.subr.mxu0 0.0
      %2661 = vmatpush1.msra.mxu0 0.0
      %2662 = vmatprep.subr.mxu0 0.0
      %2663 = vmatpush1.msra.mxu0 0.0
      %2664 = vmatprep.subr.mxu0 0.0
      %2665 = vmatpush1.msra.mxu0 0.0
      %2666 = vmatprep.subr.mxu0 0.0
      %2667 = vmatpush1.msra.mxu0 0.0
      %2668 = vmatprep.subr.mxu0 0.0
      %2669 = vmatpush1.msra.mxu0 0.0
      %2670 = vmatprep.subr.mxu0 0.0
      %2671 = vmatpush1.msra.mxu0 0.0
      %2672 = vmatprep.subr.mxu0 0.0
      %2673 = vmatpush1.msra.mxu0 0.0
      %2674 = vmatprep.subr.mxu0 0.0
      %2675 = vmatpush1.msra.mxu0 0.0
      %2676 = vmatprep.subr.mxu0 0.0
      %2677 = vmatpush1.msra.mxu0 0.0
      %2678 = vmatprep.subr.mxu0 0.0
      %2679 = vmatpush1.msra.mxu0 0.0
      %2680 = vmatprep.subr.mxu0 0.0
      %2681 = vmatpush1.msra.mxu0 0.0
      %2682 = vmatprep.subr.mxu0 0.0
      %2683 = vmatpush1.msra.mxu0 0.0
      %2684 = vmatprep.subr.mxu0 0.0
      %2685 = vmatpush1.msra.mxu0 0.0
      %2686 = vmatprep.subr.mxu0 0.0
      %2687 = vmatpush1.msra.mxu0 0.0
      %2688 = vmatprep.subr.mxu0 0.0
      %2689 = vmatpush1.msra.mxu0 %v2656
      %2690 = vmatprep.subr.mxu0 0.0
      %2691 = vmatpush2.msra.mxu0 0.0
      %2692 = vmatprep.subr.mxu0 0.0
      %2693 = vmatpush2.msra.mxu0 0.0
      %2694 = vmatprep.subr.mxu0 0.0
      %2695 = vmatpush2.msra.mxu0 0.0
      %2696 = vmatprep.subr.mxu0 0.0
      %2697 = vmatpush2.msra.mxu0 0.0
      %2698 = vmatprep.subr.mxu0 0.0
      %2699 = vmatpush2.msra.mxu0 0.0
      %2700 = vmatprep.subr.mxu0 0.0
      %2701 = vmatpush2.msra.mxu0 0.0
      %2702 = vmatprep.subr.mxu0 0.0
      %2703 = vmatpush2.msra.mxu0 0.0
      %2704 = vmatprep.subr.mxu0 0.0
      %2705 = vmatpush2.msra.mxu0 0.0
      %2706 = vmatprep.subr.mxu0 0.0
      %2707 = vmatpush2.msra.mxu0 0.0
      %2708 = vmatprep.subr.mxu0 0.0
      %2709 = vmatpush2.msra.mxu0 0.0
      %2710 = vmatprep.subr.mxu0 0.0
      %2711 = vmatpush2.msra.mxu0 0.0
      %2712 = vmatprep.subr.mxu0 0.0
      %2713 = vmatpush2.msra.mxu0 0.0
      %2714 = vmatprep.subr.mxu0 0.0
      %2715 = vmatpush2.msra.mxu0 0.0
      %2716 = vmatprep.subr.mxu0 0.0
      %2717 = vmatpush2.msra.mxu0 0.0
      %2718 = vmatprep.subr.mxu0 0.0
      %2719 = vmatpush2.msra.mxu0 0.0
      %2720 = vmatprep.subr.mxu0 0.0
      %2721 = vmatpush2.msra.mxu0 0.0
      %2722 = vmatprep.mubr.f32.mxu0 0.0
      %2723 = vmatmul.mubr.f32.gmra.mxu0 %v1157
      %v2724 = vpop.f32.mrf.mxu0
      %v2725 = vadd.f32 0.0, %v2724
      %v2726 = vpop.f32.mrf.mxu0
      %2727 = vmatprep.mubr.f32.mxu0 0.0
      %2728 = vmatmul.mubr.f32.gmra.mxu0 %v1159
      %v2729 = vpop.f32.mrf.mxu0
      %v2730 = vadd.f32 0.0, %v2729
      %v2731 = vpop.f32.mrf.mxu0
      %2732 = vmatprep.mubr.f32.mxu0 0.0
      %2733 = vmatmul.mubr.f32.gmra.mxu0 %v1161
      %v2734 = vpop.f32.mrf.mxu0
      %v2735 = vadd.f32 0.0, %v2734
      %v2736 = vpop.f32.mrf.mxu0
      %2737 = vmatprep.mubr.f32.mxu0 0.0
      %2738 = vmatmul.mubr.f32.gmra.mxu0 %v1163
      %v2739 = vpop.f32.mrf.mxu0
      %v2740 = vadd.f32 0.0, %v2739
      %v2741 = vpop.f32.mrf.mxu0
      %2742 = vmatprep.mubr.f32.mxu0 0.0
      %2743 = vmatmul.mubr.f32.gmra.mxu0 %v1165
      %v2744 = vpop.f32.mrf.mxu0
      %v2745 = vadd.f32 0.0, %v2744
      %v2746 = vpop.f32.mrf.mxu0
      %2747 = vmatprep.mubr.f32.mxu0 0.0
      %2748 = vmatmul.mubr.f32.gmra.mxu0 %v1167
      %v2749 = vpop.f32.mrf.mxu0
      %v2750 = vadd.f32 0.0, %v2749
      %v2751 = vpop.f32.mrf.mxu0
      %2752 = vmatprep.mubr.f32.mxu0 0.0
      %2753 = vmatmul.mubr.f32.gmra.mxu0 %v1169
      %v2754 = vpop.f32.mrf.mxu0
      %v2755 = vadd.f32 0.0, %v2754
      %v2756 = vpop.f32.mrf.mxu0
      %2757 = vmatprep.mubr.f32.mxu0 0.0
      %2758 = vmatmul.mubr.f32.gmra.mxu0 %v1171
      %v2759 = vpop.f32.mrf.mxu0
      %v2760 = vadd.f32 0.0, %v2759
      %v2761 = vpop.f32.mrf.mxu0
      %2762 = vmatprep.mubr.f32.mxu0 0.0
      %2763 = vmatmul.mubr.f32.gmra.mxu0 %v1173
      %v2764 = vpop.f32.mrf.mxu0
      %v2765 = vadd.f32 0.0, %v2764
      %v2766 = vpop.f32.mrf.mxu0
      %2767 = vmatprep.mubr.f32.mxu0 0.0
      %2768 = vmatmul.mubr.f32.gmra.mxu0 %v1175
      %v2769 = vpop.f32.mrf.mxu0
      %v2770 = vadd.f32 0.0, %v2769
      %v2771 = vpop.f32.mrf.mxu0
      %2772 = vmatprep.mubr.f32.mxu0 0.0
      %2773 = vmatmul.mubr.f32.gmra.mxu0 %v1177
      %v2774 = vpop.f32.mrf.mxu0
      %v2775 = vadd.f32 0.0, %v2774
      %v2776 = vpop.f32.mrf.mxu0
      %2777 = vmatprep.mubr.f32.mxu0 0.0
      %2778 = vmatmul.mubr.f32.gmra.mxu0 %v1179
      %v2779 = vpop.f32.mrf.mxu0
      %v2780 = vadd.f32 0.0, %v2779
      %v2781 = vpop.f32.mrf.mxu0
      %2782 = vmatprep.mubr.f32.mxu0 0.0
      %2783 = vmatmul.mubr.f32.gmra.mxu0 %v1181
      %v2784 = vpop.f32.mrf.mxu0
      %v2785 = vadd.f32 0.0, %v2784
      %v2786 = vpop.f32.mrf.mxu0
      %2787 = vmatprep.mubr.f32.mxu0 0.0
      %2788 = vmatmul.mubr.f32.gmra.mxu0 %v1183
      %v2789 = vpop.f32.mrf.mxu0
      %v2790 = vadd.f32 0.0, %v2789
      %v2791 = vpop.f32.mrf.mxu0
      %2792 = vmatprep.mubr.f32.mxu0 0.0
      %2793 = vmatmul.mubr.f32.gmra.mxu0 %v1185
      %v2794 = vpop.f32.mrf.mxu0
      %v2795 = vadd.f32 0.0, %v2794
      %v2796 = vpop.f32.mrf.mxu0
      %2797 = vmatprep.mubr.f32.mxu0 0.0
      %2798 = vmatmul.mubr.f32.gmra.mxu0 %v1187
      %v2799 = vpop.f32.mrf.mxu0
      %v2800 = vadd.f32 0.0, %v2799
      %v2801 = vpop.f32.mrf.mxu0
      %2802 = vmatprep.mubr.f32.mxu0 0.0
      %2803 = vmatmul.mubr.f32.gmra.mxu0 %v1189
      %v2804 = vpop.f32.mrf.mxu0
      %v2805 = vadd.f32 0.0, %v2804
      %v2806 = vpop.f32.mrf.mxu0
      %2807 = vmatprep.mubr.f32.mxu0 0.0
      %2808 = vmatmul.mubr.f32.gmra.mxu0 %v1191
      %v2809 = vpop.f32.mrf.mxu0
      %v2810 = vadd.f32 0.0, %v2809
      %v2811 = vpop.f32.mrf.mxu0
      %2812 = vmatprep.mubr.f32.mxu0 0.0
      %2813 = vmatmul.mubr.f32.gmra.mxu0 %v1193
      %v2814 = vpop.f32.mrf.mxu0
      %v2815 = vadd.f32 0.0, %v2814
      %v2816 = vpop.f32.mrf.mxu0
      %2817 = vmatprep.mubr.f32.mxu0 0.0
      %2818 = vmatmul.mubr.f32.gmra.mxu0 %v1195
      %v2819 = vpop.f32.mrf.mxu0
      %v2820 = vadd.f32 0.0, %v2819
      %v2821 = vpop.f32.mrf.mxu0
      %2822 = vmatprep.mubr.f32.mxu0 0.0
      %2823 = vmatmul.mubr.f32.gmra.mxu0 %v1197
      %v2824 = vpop.f32.mrf.mxu0
      %v2825 = vadd.f32 0.0, %v2824
      %v2826 = vpop.f32.mrf.mxu0
      %2827 = vmatprep.mubr.f32.mxu0 0.0
      %2828 = vmatmul.mubr.f32.gmra.mxu0 %v1199
      %v2829 = vpop.f32.mrf.mxu0
      %v2830 = vadd.f32 0.0, %v2829
      %v2831 = vpop.f32.mrf.mxu0
      %2832 = vmatprep.mubr.f32.mxu0 0.0
      %2833 = vmatmul.mubr.f32.gmra.mxu0 %v1201
      %v2834 = vpop.f32.mrf.mxu0
      %v2835 = vadd.f32 0.0, %v2834
      %v2836 = vpop.f32.mrf.mxu0
      %2837 = vmatprep.mubr.f32.mxu0 0.0
      %2838 = vmatmul.mubr.f32.gmra.mxu0 %v1203
      %v2839 = vpop.f32.mrf.mxu0
      %v2840 = vadd.f32 0.0, %v2839
      %v2841 = vpop.f32.mrf.mxu0
      %2842 = vmatprep.mubr.f32.mxu0 0.0
      %2843 = vmatmul.mubr.f32.gmra.mxu0 %v1205
      %v2844 = vpop.f32.mrf.mxu0
      %v2845 = vadd.f32 0.0, %v2844
      %v2846 = vpop.f32.mrf.mxu0
      %2847 = vmatprep.mubr.f32.mxu0 0.0
      %2848 = vmatmul.mubr.f32.gmra.mxu0 %v1207
      %v2849 = vpop.f32.mrf.mxu0
      %v2850 = vadd.f32 0.0, %v2849
      %v2851 = vpop.f32.mrf.mxu0
      %2852 = vmatprep.mubr.f32.mxu0 0.0
      %2853 = vmatmul.mubr.f32.gmra.mxu0 %v1209
      %v2854 = vpop.f32.mrf.mxu0
      %v2855 = vadd.f32 0.0, %v2854
      %v2856 = vpop.f32.mrf.mxu0
      %2857 = vmatprep.mubr.f32.mxu0 0.0
      %2858 = vmatmul.mubr.f32.gmra.mxu0 %v1211
      %v2859 = vpop.f32.mrf.mxu0
      %v2860 = vadd.f32 0.0, %v2859
      %v2861 = vpop.f32.mrf.mxu0
      %2862 = vmatprep.mubr.f32.mxu0 0.0
      %2863 = vmatmul.mubr.f32.gmra.mxu0 %v1850
      %v2864 = vpop.f32.mrf.mxu0
      %v2865 = vadd.f32 0.0, %v2864
      %v2866 = vpop.f32.mrf.mxu0
      %2867 = vmatprep.mubr.f32.mxu0 0.0
      %2868 = vmatmul.mubr.f32.gmra.mxu0 %v1852
      %v2869 = vpop.f32.mrf.mxu0
      %v2870 = vadd.f32 0.0, %v2869
      %v2871 = vpop.f32.mrf.mxu0
      %2872 = vmatprep.mubr.f32.mxu0 0.0
      %2873 = vmatmul.mubr.f32.gmra.mxu0 %v2650
      %v2874 = vpop.f32.mrf.mxu0
      %v2875 = vadd.f32 0.0, %v2874
      %v2876 = vpop.f32.mrf.mxu0
      %2877 = vmatprep.mubr.f32.mxu0 0.0
      %2878 = vmatmul.mubr.f32.gmra.mxu0 %v2653
      %v2879 = vpop.f32.mrf.mxu0
      %v2880 = vadd.f32 0.0, %v2879
      %v2881 = vpop.f32.mrf.mxu0
      %2882 = vdwg.mxu0
      %v2883 = vadd.f32 %v2615, %v2725
      %v2884 = vadd.f32 %v2616, %v2730
      %v2885 = vadd.f32 %v2617, %v2735
      %v2886 = vadd.f32 %v2618, %v2740
      %v2887 = vadd.f32 %v2619, %v2745
      %v2888 = vadd.f32 %v2620, %v2750
      %v2889 = vadd.f32 %v2621, %v2755
      %v2890 = vadd.f32 %v2622, %v2760
      %v2891 = vadd.f32 %v2623, %v2765
      %v2892 = vadd.f32 %v2624, %v2770
      %v2893 = vadd.f32 %v2625, %v2775
      %v2894 = vadd.f32 %v2626, %v2780
      %v2895 = vadd.f32 %v2627, %v2785
      %v2896 = vadd.f32 %v2628, %v2790
      %v2897 = vadd.f32 %v2629, %v2795
      %v2898 = vadd.f32 %v2630, %v2800
      %v2899 = vadd.f32 %v2631, %v2805
      %v2900 = vadd.f32 %v2632, %v2810
      %v2901 = vadd.f32 %v2633, %v2815
      %v2902 = vadd.f32 %v2634, %v2820
      %v2903 = vadd.f32 %v2635, %v2825
      %v2904 = vadd.f32 %v2636, %v2830
      %v2905 = vadd.f32 %v2637, %v2835
      %v2906 = vadd.f32 %v2638, %v2840
      %v2907 = vadd.f32 %v2639, %v2845
      %v2908 = vadd.f32 %v2640, %v2850
      %v2909 = vadd.f32 %v2641, %v2855
      %v2910 = vadd.f32 %v2642, %v2860
      %v2911 = vadd.f32 %v2643, %v2865
      %v2912 = vadd.f32 %v2644, %v2870
      %v2913 = vadd.f32 %v2645, %v2875
      %v2914 = vadd.f32 %v2646, %v2880
      %v2916 = vrot.slane %v369, 1
      %v2917 = vrot.slane %v370, 1
      %v2918 = vsel %vm420, %v2916, %v2917
      %v2919 = vrot.slane %v371, 1
      %v2920 = vsel %vm420, %v2917, %v2919
      %s2921 = scalar_lea.vmem %s2, 28
      %v2922 = vld [vmem:[%s2921] sm:$0xf]
      %v2923 = vsel %vm534, %v2918, 0
      %v2925 = vsel %vm534, %v2920, 0
      %v2928 = vsel %vm599, %v2922, 0
      %2930 = vmatprep.subr.mxu0 0.0
      %2931 = vmatpush1.msra.mxu0 0.0
      %2932 = vmatprep.subr.mxu0 0.0
      %2933 = vmatpush1.msra.mxu0 0.0
      %2934 = vmatprep.subr.mxu0 0.0
      %2935 = vmatpush1.msra.mxu0 0.0
      %2936 = vmatprep.subr.mxu0 0.0
      %2937 = vmatpush1.msra.mxu0 0.0
      %2938 = vmatprep.subr.mxu0 0.0
      %2939 = vmatpush1.msra.mxu0 0.0
      %2940 = vmatprep.subr.mxu0 0.0
      %2941 = vmatpush1.msra.mxu0 0.0
      %2942 = vmatprep.subr.mxu0 0.0
      %2943 = vmatpush1.msra.mxu0 0.0
      %2944 = vmatprep.subr.mxu0 0.0
      %2945 = vmatpush1.msra.mxu0 0.0
      %2946 = vmatprep.subr.mxu0 0.0
      %2947 = vmatpush1.msra.mxu0 0.0
      %2948 = vmatprep.subr.mxu0 0.0
      %2949 = vmatpush1.msra.mxu0 0.0
      %2950 = vmatprep.subr.mxu0 0.0
      %2951 = vmatpush1.msra.mxu0 0.0
      %2952 = vmatprep.subr.mxu0 0.0
      %2953 = vmatpush1.msra.mxu0 0.0
      %2954 = vmatprep.subr.mxu0 0.0
      %2955 = vmatpush1.msra.mxu0 0.0
      %2956 = vmatprep.subr.mxu0 0.0
      %2957 = vmatpush1.msra.mxu0 0.0
      %2958 = vmatprep.subr.mxu0 0.0
      %2959 = vmatpush1.msra.mxu0 0.0
      %2960 = vmatprep.subr.mxu0 0.0
      %2961 = vmatpush1.msra.mxu0 %v2928
      %2962 = vmatprep.subr.mxu0 0.0
      %2963 = vmatpush2.msra.mxu0 0.0
      %2964 = vmatprep.subr.mxu0 0.0
      %2965 = vmatpush2.msra.mxu0 0.0
      %2966 = vmatprep.subr.mxu0 0.0
      %2967 = vmatpush2.msra.mxu0 0.0
      %2968 = vmatprep.subr.mxu0 0.0
      %2969 = vmatpush2.msra.mxu0 0.0
      %2970 = vmatprep.subr.mxu0 0.0
      %2971 = vmatpush2.msra.mxu0 0.0
      %2972 = vmatprep.subr.mxu0 0.0
      %2973 = vmatpush2.msra.mxu0 0.0
      %2974 = vmatprep.subr.mxu0 0.0
      %2975 = vmatpush2.msra.mxu0 0.0
      %2976 = vmatprep.subr.mxu0 0.0
      %2977 = vmatpush2.msra.mxu0 0.0
      %2978 = vmatprep.subr.mxu0 0.0
      %2979 = vmatpush2.msra.mxu0 0.0
      %2980 = vmatprep.subr.mxu0 0.0
      %2981 = vmatpush2.msra.mxu0 0.0
      %2982 = vmatprep.subr.mxu0 0.0
      %2983 = vmatpush2.msra.mxu0 0.0
      %2984 = vmatprep.subr.mxu0 0.0
      %2985 = vmatpush2.msra.mxu0 0.0
      %2986 = vmatprep.subr.mxu0 0.0
      %2987 = vmatpush2.msra.mxu0 0.0
      %2988 = vmatprep.subr.mxu0 0.0
      %2989 = vmatpush2.msra.mxu0 0.0
      %2990 = vmatprep.subr.mxu0 0.0
      %2991 = vmatpush2.msra.mxu0 0.0
      %2992 = vmatprep.subr.mxu0 0.0
      %2993 = vmatpush2.msra.mxu0 0.0
      %2994 = vmatprep.mubr.f32.mxu0 0.0
      %2995 = vmatmul.mubr.f32.gmra.mxu0 %v539
      %v2996 = vpop.f32.mrf.mxu0
      %v2997 = vadd.f32 0.0, %v2996
      %v2998 = vpop.f32.mrf.mxu0
      %2999 = vmatprep.mubr.f32.mxu0 0.0
      %3000 = vmatmul.mubr.f32.gmra.mxu0 %v541
      %v3001 = vpop.f32.mrf.mxu0
      %v3002 = vadd.f32 0.0, %v3001
      %v3003 = vpop.f32.mrf.mxu0
      %3004 = vmatprep.mubr.f32.mxu0 0.0
      %3005 = vmatmul.mubr.f32.gmra.mxu0 %v543
      %v3006 = vpop.f32.mrf.mxu0
      %v3007 = vadd.f32 0.0, %v3006
      %v3008 = vpop.f32.mrf.mxu0
      %3009 = vmatprep.mubr.f32.mxu0 0.0
      %3010 = vmatmul.mubr.f32.gmra.mxu0 %v545
      %v3011 = vpop.f32.mrf.mxu0
      %v3012 = vadd.f32 0.0, %v3011
      %v3013 = vpop.f32.mrf.mxu0
      %3014 = vmatprep.mubr.f32.mxu0 0.0
      %3015 = vmatmul.mubr.f32.gmra.mxu0 %v547
      %v3016 = vpop.f32.mrf.mxu0
      %v3017 = vadd.f32 0.0, %v3016
      %v3018 = vpop.f32.mrf.mxu0
      %3019 = vmatprep.mubr.f32.mxu0 0.0
      %3020 = vmatmul.mubr.f32.gmra.mxu0 %v549
      %v3021 = vpop.f32.mrf.mxu0
      %v3022 = vadd.f32 0.0, %v3021
      %v3023 = vpop.f32.mrf.mxu0
      %3024 = vmatprep.mubr.f32.mxu0 0.0
      %3025 = vmatmul.mubr.f32.gmra.mxu0 %v551
      %v3026 = vpop.f32.mrf.mxu0
      %v3027 = vadd.f32 0.0, %v3026
      %v3028 = vpop.f32.mrf.mxu0
      %3029 = vmatprep.mubr.f32.mxu0 0.0
      %3030 = vmatmul.mubr.f32.gmra.mxu0 %v553
      %v3031 = vpop.f32.mrf.mxu0
      %v3032 = vadd.f32 0.0, %v3031
      %v3033 = vpop.f32.mrf.mxu0
      %3034 = vmatprep.mubr.f32.mxu0 0.0
      %3035 = vmatmul.mubr.f32.gmra.mxu0 %v555
      %v3036 = vpop.f32.mrf.mxu0
      %v3037 = vadd.f32 0.0, %v3036
      %v3038 = vpop.f32.mrf.mxu0
      %3039 = vmatprep.mubr.f32.mxu0 0.0
      %3040 = vmatmul.mubr.f32.gmra.mxu0 %v557
      %v3041 = vpop.f32.mrf.mxu0
      %v3042 = vadd.f32 0.0, %v3041
      %v3043 = vpop.f32.mrf.mxu0
      %3044 = vmatprep.mubr.f32.mxu0 0.0
      %3045 = vmatmul.mubr.f32.gmra.mxu0 %v559
      %v3046 = vpop.f32.mrf.mxu0
      %v3047 = vadd.f32 0.0, %v3046
      %v3048 = vpop.f32.mrf.mxu0
      %3049 = vmatprep.mubr.f32.mxu0 0.0
      %3050 = vmatmul.mubr.f32.gmra.mxu0 %v561
      %v3051 = vpop.f32.mrf.mxu0
      %v3052 = vadd.f32 0.0, %v3051
      %v3053 = vpop.f32.mrf.mxu0
      %3054 = vmatprep.mubr.f32.mxu0 0.0
      %3055 = vmatmul.mubr.f32.gmra.mxu0 %v563
      %v3056 = vpop.f32.mrf.mxu0
      %v3057 = vadd.f32 0.0, %v3056
      %v3058 = vpop.f32.mrf.mxu0
      %3059 = vmatprep.mubr.f32.mxu0 0.0
      %3060 = vmatmul.mubr.f32.gmra.mxu0 %v565
      %v3061 = vpop.f32.mrf.mxu0
      %v3062 = vadd.f32 0.0, %v3061
      %v3063 = vpop.f32.mrf.mxu0
      %3064 = vmatprep.mubr.f32.mxu0 0.0
      %3065 = vmatmul.mubr.f32.gmra.mxu0 %v567
      %v3066 = vpop.f32.mrf.mxu0
      %v3067 = vadd.f32 0.0, %v3066
      %v3068 = vpop.f32.mrf.mxu0
      %3069 = vmatprep.mubr.f32.mxu0 0.0
      %3070 = vmatmul.mubr.f32.gmra.mxu0 %v569
      %v3071 = vpop.f32.mrf.mxu0
      %v3072 = vadd.f32 0.0, %v3071
      %v3073 = vpop.f32.mrf.mxu0
      %3074 = vmatprep.mubr.f32.mxu0 0.0
      %3075 = vmatmul.mubr.f32.gmra.mxu0 %v571
      %v3076 = vpop.f32.mrf.mxu0
      %v3077 = vadd.f32 0.0, %v3076
      %v3078 = vpop.f32.mrf.mxu0
      %3079 = vmatprep.mubr.f32.mxu0 0.0
      %3080 = vmatmul.mubr.f32.gmra.mxu0 %v573
      %v3081 = vpop.f32.mrf.mxu0
      %v3082 = vadd.f32 0.0, %v3081
      %v3083 = vpop.f32.mrf.mxu0
      %3084 = vmatprep.mubr.f32.mxu0 0.0
      %3085 = vmatmul.mubr.f32.gmra.mxu0 %v575
      %v3086 = vpop.f32.mrf.mxu0
      %v3087 = vadd.f32 0.0, %v3086
      %v3088 = vpop.f32.mrf.mxu0
      %3089 = vmatprep.mubr.f32.mxu0 0.0
      %3090 = vmatmul.mubr.f32.gmra.mxu0 %v577
      %v3091 = vpop.f32.mrf.mxu0
      %v3092 = vadd.f32 0.0, %v3091
      %v3093 = vpop.f32.mrf.mxu0
      %3094 = vmatprep.mubr.f32.mxu0 0.0
      %3095 = vmatmul.mubr.f32.gmra.mxu0 %v579
      %v3096 = vpop.f32.mrf.mxu0
      %v3097 = vadd.f32 0.0, %v3096
      %v3098 = vpop.f32.mrf.mxu0
      %3099 = vmatprep.mubr.f32.mxu0 0.0
      %3100 = vmatmul.mubr.f32.gmra.mxu0 %v581
      %v3101 = vpop.f32.mrf.mxu0
      %v3102 = vadd.f32 0.0, %v3101
      %v3103 = vpop.f32.mrf.mxu0
      %3104 = vmatprep.mubr.f32.mxu0 0.0
      %3105 = vmatmul.mubr.f32.gmra.mxu0 %v583
      %v3106 = vpop.f32.mrf.mxu0
      %v3107 = vadd.f32 0.0, %v3106
      %v3108 = vpop.f32.mrf.mxu0
      %3109 = vmatprep.mubr.f32.mxu0 0.0
      %3110 = vmatmul.mubr.f32.gmra.mxu0 %v585
      %v3111 = vpop.f32.mrf.mxu0
      %v3112 = vadd.f32 0.0, %v3111
      %v3113 = vpop.f32.mrf.mxu0
      %3114 = vmatprep.mubr.f32.mxu0 0.0
      %3115 = vmatmul.mubr.f32.gmra.mxu0 %v587
      %v3116 = vpop.f32.mrf.mxu0
      %v3117 = vadd.f32 0.0, %v3116
      %v3118 = vpop.f32.mrf.mxu0
      %3119 = vmatprep.mubr.f32.mxu0 0.0
      %3120 = vmatmul.mubr.f32.gmra.mxu0 %v589
      %v3121 = vpop.f32.mrf.mxu0
      %v3122 = vadd.f32 0.0, %v3121
      %v3123 = vpop.f32.mrf.mxu0
      %3124 = vmatprep.mubr.f32.mxu0 0.0
      %3125 = vmatmul.mubr.f32.gmra.mxu0 %v591
      %v3126 = vpop.f32.mrf.mxu0
      %v3127 = vadd.f32 0.0, %v3126
      %v3128 = vpop.f32.mrf.mxu0
      %3129 = vmatprep.mubr.f32.mxu0 0.0
      %3130 = vmatmul.mubr.f32.gmra.mxu0 %v593
      %v3131 = vpop.f32.mrf.mxu0
      %v3132 = vadd.f32 0.0, %v3131
      %v3133 = vpop.f32.mrf.mxu0
      %3134 = vmatprep.mubr.f32.mxu0 0.0
      %3135 = vmatmul.mubr.f32.gmra.mxu0 %v595
      %v3136 = vpop.f32.mrf.mxu0
      %v3137 = vadd.f32 0.0, %v3136
      %v3138 = vpop.f32.mrf.mxu0
      %3139 = vmatprep.mubr.f32.mxu0 0.0
      %3140 = vmatmul.mubr.f32.gmra.mxu0 %v597
      %v3141 = vpop.f32.mrf.mxu0
      %v3142 = vadd.f32 0.0, %v3141
      %v3143 = vpop.f32.mrf.mxu0
      %3144 = vmatprep.mubr.f32.mxu0 0.0
      %3145 = vmatmul.mubr.f32.gmra.mxu0 %v2923
      %v3146 = vpop.f32.mrf.mxu0
      %v3147 = vadd.f32 0.0, %v3146
      %v3148 = vpop.f32.mrf.mxu0
      %3149 = vmatprep.mubr.f32.mxu0 0.0
      %3150 = vmatmul.mubr.f32.gmra.mxu0 %v2925
      %v3151 = vpop.f32.mrf.mxu0
      %v3152 = vadd.f32 0.0, %v3151
      %v3153 = vpop.f32.mrf.mxu0
      %3154 = vdwg.mxu0
      %v3155 = vadd.f32 %v2883, %v2997
      %v3156 = vadd.f32 %v2884, %v3002
      %v3157 = vadd.f32 %v2885, %v3007
      %v3158 = vadd.f32 %v2886, %v3012
      %v3159 = vadd.f32 %v2887, %v3017
      %v3160 = vadd.f32 %v2888, %v3022
      %v3161 = vadd.f32 %v2889, %v3027
      %v3162 = vadd.f32 %v2890, %v3032
      %v3163 = vadd.f32 %v2891, %v3037
      %v3164 = vadd.f32 %v2892, %v3042
      %v3165 = vadd.f32 %v2893, %v3047
      %v3166 = vadd.f32 %v2894, %v3052
      %v3167 = vadd.f32 %v2895, %v3057
      %v3168 = vadd.f32 %v2896, %v3062
      %v3169 = vadd.f32 %v2897, %v3067
      %v3170 = vadd.f32 %v2898, %v3072
      %v3171 = vadd.f32 %v2899, %v3077
      %v3172 = vadd.f32 %v2900, %v3082
      %v3173 = vadd.f32 %v2901, %v3087
      %v3174 = vadd.f32 %v2902, %v3092
      %v3175 = vadd.f32 %v2903, %v3097
      %v3176 = vadd.f32 %v2904, %v3102
      %v3177 = vadd.f32 %v2905, %v3107
      %v3178 = vadd.f32 %v2906, %v3112
      %v3179 = vadd.f32 %v2907, %v3117
      %v3180 = vadd.f32 %v2908, %v3122
      %v3181 = vadd.f32 %v2909, %v3127
      %v3182 = vadd.f32 %v2910, %v3132
      %v3183 = vadd.f32 %v2911, %v3137
      %v3184 = vadd.f32 %v2912, %v3142
      %v3185 = vadd.f32 %v2913, %v3147
      %v3186 = vadd.f32 %v2914, %v3152
      %v3187 = vrot.slane %v369, 2
      %v3188 = vrot.slane %v370, 2
      %v3189 = vsel %vm1441, %v3187, %v3188
      %v3190 = vrot.slane %v371, 2
      %v3191 = vsel %vm1441, %v3188, %v3190
      %s3192 = scalar_lea.vmem %s2, 32
      %v3193 = vld [vmem:[%s3192] sm:$0xf]
      %v3194 = vsel %vm534, %v3189, 0
      %v3196 = vsel %vm534, %v3191, 0
      %v3199 = vsel %vm599, %v3193, 0
      %3201 = vmatprep.subr.mxu0 0.0
      %3202 = vmatpush1.msra.mxu0 0.0
      %3203 = vmatprep.subr.mxu0 0.0
      %3204 = vmatpush1.msra.mxu0 0.0
      %3205 = vmatprep.subr.mxu0 0.0
      %3206 = vmatpush1.msra.mxu0 0.0
      %3207 = vmatprep.subr.mxu0 0.0
      %3208 = vmatpush1.msra.mxu0 0.0
      %3209 = vmatprep.subr.mxu0 0.0
      %3210 = vmatpush1.msra.mxu0 0.0
      %3211 = vmatprep.subr.mxu0 0.0
      %3212 = vmatpush1.msra.mxu0 0.0
      %3213 = vmatprep.subr.mxu0 0.0
      %3214 = vmatpush1.msra.mxu0 0.0
      %3215 = vmatprep.subr.mxu0 0.0
      %3216 = vmatpush1.msra.mxu0 0.0
      %3217 = vmatprep.subr.mxu0 0.0
      %3218 = vmatpush1.msra.mxu0 0.0
      %3219 = vmatprep.subr.mxu0 0.0
      %3220 = vmatpush1.msra.mxu0 0.0
      %3221 = vmatprep.subr.mxu0 0.0
      %3222 = vmatpush1.msra.mxu0 0.0
      %3223 = vmatprep.subr.mxu0 0.0
      %3224 = vmatpush1.msra.mxu0 0.0
      %3225 = vmatprep.subr.mxu0 0.0
      %3226 = vmatpush1.msra.mxu0 0.0
      %3227 = vmatprep.subr.mxu0 0.0
      %3228 = vmatpush1.msra.mxu0 0.0
      %3229 = vmatprep.subr.mxu0 0.0
      %3230 = vmatpush1.msra.mxu0 0.0
      %3231 = vmatprep.subr.mxu0 0.0
      %3232 = vmatpush1.msra.mxu0 %v3199
      %3233 = vmatprep.subr.mxu0 0.0
      %3234 = vmatpush2.msra.mxu0 0.0
      %3235 = vmatprep.subr.mxu0 0.0
      %3236 = vmatpush2.msra.mxu0 0.0
      %3237 = vmatprep.subr.mxu0 0.0
      %3238 = vmatpush2.msra.mxu0 0.0
      %3239 = vmatprep.subr.mxu0 0.0
      %3240 = vmatpush2.msra.mxu0 0.0
      %3241 = vmatprep.subr.mxu0 0.0
      %3242 = vmatpush2.msra.mxu0 0.0
      %3243 = vmatprep.subr.mxu0 0.0
      %3244 = vmatpush2.msra.mxu0 0.0
      %3245 = vmatprep.subr.mxu0 0.0
      %3246 = vmatpush2.msra.mxu0 0.0
      %3247 = vmatprep.subr.mxu0 0.0
      %3248 = vmatpush2.msra.mxu0 0.0
      %3249 = vmatprep.subr.mxu0 0.0
      %3250 = vmatpush2.msra.mxu0 0.0
      %3251 = vmatprep.subr.mxu0 0.0
      %3252 = vmatpush2.msra.mxu0 0.0
      %3253 = vmatprep.subr.mxu0 0.0
      %3254 = vmatpush2.msra.mxu0 0.0
      %3255 = vmatprep.subr.mxu0 0.0
      %3256 = vmatpush2.msra.mxu0 0.0
      %3257 = vmatprep.subr.mxu0 0.0
      %3258 = vmatpush2.msra.mxu0 0.0
      %3259 = vmatprep.subr.mxu0 0.0
      %3260 = vmatpush2.msra.mxu0 0.0
      %3261 = vmatprep.subr.mxu0 0.0
      %3262 = vmatpush2.msra.mxu0 0.0
      %3263 = vmatprep.subr.mxu0 0.0
      %3264 = vmatpush2.msra.mxu0 0.0
      %3265 = vmatprep.mubr.f32.mxu0 0.0
      %3266 = vmatmul.mubr.f32.gmra.mxu0 %v1532
      %v3267 = vpop.f32.mrf.mxu0
      %v3268 = vadd.f32 0.0, %v3267
      %v3269 = vpop.f32.mrf.mxu0
      %3270 = vmatprep.mubr.f32.mxu0 0.0
      %3271 = vmatmul.mubr.f32.gmra.mxu0 %v1534
      %v3272 = vpop.f32.mrf.mxu0
      %v3273 = vadd.f32 0.0, %v3272
      %v3274 = vpop.f32.mrf.mxu0
      %3275 = vmatprep.mubr.f32.mxu0 0.0
      %3276 = vmatmul.mubr.f32.gmra.mxu0 %v1536
      %v3277 = vpop.f32.mrf.mxu0
      %v3278 = vadd.f32 0.0, %v3277
      %v3279 = vpop.f32.mrf.mxu0
      %3280 = vmatprep.mubr.f32.mxu0 0.0
      %3281 = vmatmul.mubr.f32.gmra.mxu0 %v1538
      %v3282 = vpop.f32.mrf.mxu0
      %v3283 = vadd.f32 0.0, %v3282
      %v3284 = vpop.f32.mrf.mxu0
      %3285 = vmatprep.mubr.f32.mxu0 0.0
      %3286 = vmatmul.mubr.f32.gmra.mxu0 %v1540
      %v3287 = vpop.f32.mrf.mxu0
      %v3288 = vadd.f32 0.0, %v3287
      %v3289 = vpop.f32.mrf.mxu0
      %3290 = vmatprep.mubr.f32.mxu0 0.0
      %3291 = vmatmul.mubr.f32.gmra.mxu0 %v1542
      %v3292 = vpop.f32.mrf.mxu0
      %v3293 = vadd.f32 0.0, %v3292
      %v3294 = vpop.f32.mrf.mxu0
      %3295 = vmatprep.mubr.f32.mxu0 0.0
      %3296 = vmatmul.mubr.f32.gmra.mxu0 %v1544
      %v3297 = vpop.f32.mrf.mxu0
      %v3298 = vadd.f32 0.0, %v3297
      %v3299 = vpop.f32.mrf.mxu0
      %3300 = vmatprep.mubr.f32.mxu0 0.0
      %3301 = vmatmul.mubr.f32.gmra.mxu0 %v1546
      %v3302 = vpop.f32.mrf.mxu0
      %v3303 = vadd.f32 0.0, %v3302
      %v3304 = vpop.f32.mrf.mxu0
      %3305 = vmatprep.mubr.f32.mxu0 0.0
      %3306 = vmatmul.mubr.f32.gmra.mxu0 %v1548
      %v3307 = vpop.f32.mrf.mxu0
      %v3308 = vadd.f32 0.0, %v3307
      %v3309 = vpop.f32.mrf.mxu0
      %3310 = vmatprep.mubr.f32.mxu0 0.0
      %3311 = vmatmul.mubr.f32.gmra.mxu0 %v1550
      %v3312 = vpop.f32.mrf.mxu0
      %v3313 = vadd.f32 0.0, %v3312
      %v3314 = vpop.f32.mrf.mxu0
      %3315 = vmatprep.mubr.f32.mxu0 0.0
      %3316 = vmatmul.mubr.f32.gmra.mxu0 %v1552
      %v3317 = vpop.f32.mrf.mxu0
      %v3318 = vadd.f32 0.0, %v3317
      %v3319 = vpop.f32.mrf.mxu0
      %3320 = vmatprep.mubr.f32.mxu0 0.0
      %3321 = vmatmul.mubr.f32.gmra.mxu0 %v1554
      %v3322 = vpop.f32.mrf.mxu0
      %v3323 = vadd.f32 0.0, %v3322
      %v3324 = vpop.f32.mrf.mxu0
      %3325 = vmatprep.mubr.f32.mxu0 0.0
      %3326 = vmatmul.mubr.f32.gmra.mxu0 %v1556
      %v3327 = vpop.f32.mrf.mxu0
      %v3328 = vadd.f32 0.0, %v3327
      %v3329 = vpop.f32.mrf.mxu0
      %3330 = vmatprep.mubr.f32.mxu0 0.0
      %3331 = vmatmul.mubr.f32.gmra.mxu0 %v1558
      %v3332 = vpop.f32.mrf.mxu0
      %v3333 = vadd.f32 0.0, %v3332
      %v3334 = vpop.f32.mrf.mxu0
      %3335 = vmatprep.mubr.f32.mxu0 0.0
      %3336 = vmatmul.mubr.f32.gmra.mxu0 %v1560
      %v3337 = vpop.f32.mrf.mxu0
      %v3338 = vadd.f32 0.0, %v3337
      %v3339 = vpop.f32.mrf.mxu0
      %3340 = vmatprep.mubr.f32.mxu0 0.0
      %3341 = vmatmul.mubr.f32.gmra.mxu0 %v1562
      %v3342 = vpop.f32.mrf.mxu0
      %v3343 = vadd.f32 0.0, %v3342
      %v3344 = vpop.f32.mrf.mxu0
      %3345 = vmatprep.mubr.f32.mxu0 0.0
      %3346 = vmatmul.mubr.f32.gmra.mxu0 %v1564
      %v3347 = vpop.f32.mrf.mxu0
      %v3348 = vadd.f32 0.0, %v3347
      %v3349 = vpop.f32.mrf.mxu0
      %3350 = vmatprep.mubr.f32.mxu0 0.0
      %3351 = vmatmul.mubr.f32.gmra.mxu0 %v1566
      %v3352 = vpop.f32.mrf.mxu0
      %v3353 = vadd.f32 0.0, %v3352
      %v3354 = vpop.f32.mrf.mxu0
      %3355 = vmatprep.mubr.f32.mxu0 0.0
      %3356 = vmatmul.mubr.f32.gmra.mxu0 %v1568
      %v3357 = vpop.f32.mrf.mxu0
      %v3358 = vadd.f32 0.0, %v3357
      %v3359 = vpop.f32.mrf.mxu0
      %3360 = vmatprep.mubr.f32.mxu0 0.0
      %3361 = vmatmul.mubr.f32.gmra.mxu0 %v1570
      %v3362 = vpop.f32.mrf.mxu0
      %v3363 = vadd.f32 0.0, %v3362
      %v3364 = vpop.f32.mrf.mxu0
      %3365 = vmatprep.mubr.f32.mxu0 0.0
      %3366 = vmatmul.mubr.f32.gmra.mxu0 %v1572
      %v3367 = vpop.f32.mrf.mxu0
      %v3368 = vadd.f32 0.0, %v3367
      %v3369 = vpop.f32.mrf.mxu0
      %3370 = vmatprep.mubr.f32.mxu0 0.0
      %3371 = vmatmul.mubr.f32.gmra.mxu0 %v1574
      %v3372 = vpop.f32.mrf.mxu0
      %v3373 = vadd.f32 0.0, %v3372
      %v3374 = vpop.f32.mrf.mxu0
      %3375 = vmatprep.mubr.f32.mxu0 0.0
      %3376 = vmatmul.mubr.f32.gmra.mxu0 %v1576
      %v3377 = vpop.f32.mrf.mxu0
      %v3378 = vadd.f32 0.0, %v3377
      %v3379 = vpop.f32.mrf.mxu0
      %3380 = vmatprep.mubr.f32.mxu0 0.0
      %3381 = vmatmul.mubr.f32.gmra.mxu0 %v1578
      %v3382 = vpop.f32.mrf.mxu0
      %v3383 = vadd.f32 0.0, %v3382
      %v3384 = vpop.f32.mrf.mxu0
      %3385 = vmatprep.mubr.f32.mxu0 0.0
      %3386 = vmatmul.mubr.f32.gmra.mxu0 %v1580
      %v3387 = vpop.f32.mrf.mxu0
      %v3388 = vadd.f32 0.0, %v3387
      %v3389 = vpop.f32.mrf.mxu0
      %3390 = vmatprep.mubr.f32.mxu0 0.0
      %3391 = vmatmul.mubr.f32.gmra.mxu0 %v1582
      %v3392 = vpop.f32.mrf.mxu0
      %v3393 = vadd.f32 0.0, %v3392
      %v3394 = vpop.f32.mrf.mxu0
      %3395 = vmatprep.mubr.f32.mxu0 0.0
      %3396 = vmatmul.mubr.f32.gmra.mxu0 %v1584
      %v3397 = vpop.f32.mrf.mxu0
      %v3398 = vadd.f32 0.0, %v3397
      %v3399 = vpop.f32.mrf.mxu0
      %3400 = vmatprep.mubr.f32.mxu0 0.0
      %3401 = vmatmul.mubr.f32.gmra.mxu0 %v1586
      %v3402 = vpop.f32.mrf.mxu0
      %v3403 = vadd.f32 0.0, %v3402
      %v3404 = vpop.f32.mrf.mxu0
      %3405 = vmatprep.mubr.f32.mxu0 0.0
      %3406 = vmatmul.mubr.f32.gmra.mxu0 %v2383
      %v3407 = vpop.f32.mrf.mxu0
      %v3408 = vadd.f32 0.0, %v3407
      %v3409 = vpop.f32.mrf.mxu0
      %3410 = vmatprep.mubr.f32.mxu0 0.0
      %3411 = vmatmul.mubr.f32.gmra.mxu0 %v2385
      %v3412 = vpop.f32.mrf.mxu0
      %v3413 = vadd.f32 0.0, %v3412
      %v3414 = vpop.f32.mrf.mxu0
      %3415 = vmatprep.mubr.f32.mxu0 0.0
      %3416 = vmatmul.mubr.f32.gmra.mxu0 %v3194
      %v3417 = vpop.f32.mrf.mxu0
      %v3418 = vadd.f32 0.0, %v3417
      %v3419 = vpop.f32.mrf.mxu0
      %3420 = vmatprep.mubr.f32.mxu0 0.0
      %3421 = vmatmul.mubr.f32.gmra.mxu0 %v3196
      %v3422 = vpop.f32.mrf.mxu0
      %v3423 = vadd.f32 0.0, %v3422
      %v3424 = vpop.f32.mrf.mxu0
      %3425 = vdwg.mxu0
      %v3426 = vadd.f32 %v3155, %v3268
      %v3427 = vadd.f32 %v3156, %v3273
      %v3428 = vadd.f32 %v3157, %v3278
      %v3429 = vadd.f32 %v3158, %v3283
      %v3430 = vadd.f32 %v3159, %v3288
      %v3431 = vadd.f32 %v3160, %v3293
      %v3432 = vadd.f32 %v3161, %v3298
      %v3433 = vadd.f32 %v3162, %v3303
      %v3434 = vadd.f32 %v3163, %v3308
      %v3435 = vadd.f32 %v3164, %v3313
      %v3436 = vadd.f32 %v3165, %v3318
      %v3437 = vadd.f32 %v3166, %v3323
      %v3438 = vadd.f32 %v3167, %v3328
      %v3439 = vadd.f32 %v3168, %v3333
      %v3440 = vadd.f32 %v3169, %v3338
      %v3441 = vadd.f32 %v3170, %v3343
      %v3442 = vadd.f32 %v3171, %v3348
      %v3443 = vadd.f32 %v3172, %v3353
      %v3444 = vadd.f32 %v3173, %v3358
      %v3445 = vadd.f32 %v3174, %v3363
      %v3446 = vadd.f32 %v3175, %v3368
      %v3447 = vadd.f32 %v3176, %v3373
      %v3448 = vadd.f32 %v3177, %v3378
      %v3449 = vadd.f32 %v3178, %v3383
      %v3450 = vadd.f32 %v3179, %v3388
      %v3451 = vadd.f32 %v3180, %v3393
      %v3452 = vadd.f32 %v3181, %v3398
      %v3453 = vadd.f32 %v3182, %v3403
      %v3454 = vadd.f32 %v3183, %v3408
      %v3455 = vadd.f32 %v3184, %v3413
      %v3456 = vadd.f32 %v3185, %v3418
      %v3457 = vadd.f32 %v3186, %v3423
      %v3458 = vld [vmem:[%s5] sm:$0x1]
      %v3460 = vlaneseq
      %v3461 = vshrl.u32 %v3460, 7
      %v3462 = vsub.s32 0, %v3461
      %v3463 = vrot.slane %v3458, %v3462
      %v3465 = vmul.f32 %v3426, %v3463
      %v3466 = vmul.f32 %v3427, %v3463
      %v3467 = vmul.f32 %v3428, %v3463
      %v3468 = vmul.f32 %v3429, %v3463
      %v3469 = vmul.f32 %v3430, %v3463
      %v3470 = vmul.f32 %v3431, %v3463
      %v3471 = vmul.f32 %v3432, %v3463
      %v3472 = vmul.f32 %v3433, %v3463
      %v3473 = vmul.f32 %v3434, %v3463
      %v3474 = vmul.f32 %v3435, %v3463
      %v3475 = vmul.f32 %v3436, %v3463
      %v3476 = vmul.f32 %v3437, %v3463
      %v3477 = vmul.f32 %v3438, %v3463
      %v3478 = vmul.f32 %v3439, %v3463
      %v3479 = vmul.f32 %v3440, %v3463
      %v3480 = vmul.f32 %v3441, %v3463
      %v3481 = vmul.f32 %v3442, %v3463
      %v3482 = vmul.f32 %v3443, %v3463
      %v3483 = vmul.f32 %v3444, %v3463
      %v3484 = vmul.f32 %v3445, %v3463
      %v3485 = vmul.f32 %v3446, %v3463
      %v3486 = vmul.f32 %v3447, %v3463
      %v3487 = vmul.f32 %v3448, %v3463
      %v3488 = vmul.f32 %v3449, %v3463
      %v3489 = vmul.f32 %v3450, %v3463
      %v3490 = vmul.f32 %v3451, %v3463
      %v3491 = vmul.f32 %v3452, %v3463
      %v3492 = vmul.f32 %v3453, %v3463
      %v3493 = vmul.f32 %v3454, %v3463
      %v3494 = vmul.f32 %v3455, %v3463
      %v3495 = vmul.f32 %v3456, %v3463
      %v3496 = vmul.f32 %v3457, %v3463
      %v3497 = vld [vmem:[%s6] sm:$0x1]
      %v3499 = vlaneseq
      %v3500 = vshrl.u32 %v3499, 7
      %v3501 = vsub.s32 0, %v3500
      %v3502 = vrot.slane %v3497, %v3501
      %v3504 = vadd.f32 %v3465, %v3502
      %v3505 = vadd.f32 %v3466, %v3502
      %v3506 = vadd.f32 %v3467, %v3502
      %v3507 = vadd.f32 %v3468, %v3502
      %v3508 = vadd.f32 %v3469, %v3502
      %v3509 = vadd.f32 %v3470, %v3502
      %v3510 = vadd.f32 %v3471, %v3502
      %v3511 = vadd.f32 %v3472, %v3502
      %v3512 = vadd.f32 %v3473, %v3502
      %v3513 = vadd.f32 %v3474, %v3502
      %v3514 = vadd.f32 %v3475, %v3502
      %v3515 = vadd.f32 %v3476, %v3502
      %v3516 = vadd.f32 %v3477, %v3502
      %v3517 = vadd.f32 %v3478, %v3502
      %v3518 = vadd.f32 %v3479, %v3502
      %v3519 = vadd.f32 %v3480, %v3502
      %v3520 = vadd.f32 %v3481, %v3502
      %v3521 = vadd.f32 %v3482, %v3502
      %v3522 = vadd.f32 %v3483, %v3502
      %v3523 = vadd.f32 %v3484, %v3502
      %v3524 = vadd.f32 %v3485, %v3502
      %v3525 = vadd.f32 %v3486, %v3502
      %v3526 = vadd.f32 %v3487, %v3502
      %v3527 = vadd.f32 %v3488, %v3502
      %v3528 = vadd.f32 %v3489, %v3502
      %v3529 = vadd.f32 %v3490, %v3502
      %v3530 = vadd.f32 %v3491, %v3502
      %v3531 = vadd.f32 %v3492, %v3502
      %v3532 = vadd.f32 %v3493, %v3502
      %v3533 = vadd.f32 %v3494, %v3502
      %v3534 = vadd.f32 %v3495, %v3502
      %v3535 = vadd.f32 %v3496, %v3502
      %vm3536 = vcmp.gt.f32.partialorder %v874, 0.0
      %vm3537 = vcmp.gt.f32.partialorder %v875, 0.0
      %vm3538 = vcmp.gt.f32.partialorder %v876, 0.0
      %vm3539 = vcmp.gt.f32.partialorder %v877, 0.0
      %vm3540 = vcmp.gt.f32.partialorder %v878, 0.0
      %vm3541 = vcmp.gt.f32.partialorder %v879, 0.0
      %vm3542 = vcmp.gt.f32.partialorder %v880, 0.0
      %vm3543 = vcmp.gt.f32.partialorder %v881, 0.0
      %vm3544 = vcmp.gt.f32.partialorder %v882, 0.0
      %vm3545 = vcmp.gt.f32.partialorder %v883, 0.0
      %vm3546 = vcmp.gt.f32.partialorder %v884, 0.0
      %vm3547 = vcmp.gt.f32.partialorder %v885, 0.0
      %vm3548 = vcmp.gt.f32.partialorder %v886, 0.0
      %vm3549 = vcmp.gt.f32.partialorder %v887, 0.0
      %vm3550 = vcmp.gt.f32.partialorder %v888, 0.0
      %vm3551 = vcmp.gt.f32.partialorder %v889, 0.0
      %vm3552 = vcmp.gt.f32.partialorder %v890, 0.0
      %vm3553 = vcmp.gt.f32.partialorder %v891, 0.0
      %vm3554 = vcmp.gt.f32.partialorder %v892, 0.0
      %vm3555 = vcmp.gt.f32.partialorder %v893, 0.0
      %vm3556 = vcmp.gt.f32.partialorder %v894, 0.0
      %vm3557 = vcmp.gt.f32.partialorder %v895, 0.0
      %vm3558 = vcmp.gt.f32.partialorder %v896, 0.0
      %vm3559 = vcmp.gt.f32.partialorder %v897, 0.0
      %vm3560 = vcmp.gt.f32.partialorder %v898, 0.0
      %vm3561 = vcmp.gt.f32.partialorder %v899, 0.0
      %vm3562 = vcmp.gt.f32.partialorder %v900, 0.0
      %vm3563 = vcmp.gt.f32.partialorder %v901, 0.0
      %vm3564 = vcmp.gt.f32.partialorder %v902, 0.0
      %vm3565 = vcmp.gt.f32.partialorder %v903, 0.0
      %vm3566 = vcmp.gt.f32.partialorder %v904, 0.0
      %vm3567 = vcmp.gt.f32.partialorder %v905, 0.0
      %v3568 = vmul.f32 %v874, 0.1
      %v3569 = vmul.f32 %v875, 0.1
      %v3570 = vmul.f32 %v876, 0.1
      %v3571 = vmul.f32 %v877, 0.1
      %v3572 = vmul.f32 %v878, 0.1
      %v3573 = vmul.f32 %v879, 0.1
      %v3574 = vmul.f32 %v880, 0.1
      %v3575 = vmul.f32 %v881, 0.1
      %v3576 = vmul.f32 %v882, 0.1
      %v3577 = vmul.f32 %v883, 0.1
      %v3578 = vmul.f32 %v884, 0.1
      %v3579 = vmul.f32 %v885, 0.1
      %v3580 = vmul.f32 %v886, 0.1
      %v3581 = vmul.f32 %v887, 0.1
      %v3582 = vmul.f32 %v888, 0.1
      %v3583 = vmul.f32 %v889, 0.1
      %v3584 = vmul.f32 %v890, 0.1
      %v3585 = vmul.f32 %v891, 0.1
      %v3586 = vmul.f32 %v892, 0.1
      %v3587 = vmul.f32 %v893, 0.1
      %v3588 = vmul.f32 %v894, 0.1
      %v3589 = vmul.f32 %v895, 0.1
      %v3590 = vmul.f32 %v896, 0.1
      %v3591 = vmul.f32 %v897, 0.1
      %v3592 = vmul.f32 %v898, 0.1
      %v3593 = vmul.f32 %v899, 0.1
      %v3594 = vmul.f32 %v900, 0.1
      %v3595 = vmul.f32 %v901, 0.1
      %v3596 = vmul.f32 %v902, 0.1
      %v3597 = vmul.f32 %v903, 0.1
      %v3598 = vmul.f32 %v904, 0.1
      %v3599 = vmul.f32 %v905, 0.1
      %v3600 = vsel %vm3536, %v874, %v3568
      %v3601 = vsel %vm3537, %v875, %v3569
      %v3602 = vsel %vm3538, %v876, %v3570
      %v3603 = vsel %vm3539, %v877, %v3571
      %v3604 = vsel %vm3540, %v878, %v3572
      %v3605 = vsel %vm3541, %v879, %v3573
      %v3606 = vsel %vm3542, %v880, %v3574
      %v3607 = vsel %vm3543, %v881, %v3575
      %v3608 = vsel %vm3544, %v882, %v3576
      %v3609 = vsel %vm3545, %v883, %v3577
      %v3610 = vsel %vm3546, %v884, %v3578
      %v3611 = vsel %vm3547, %v885, %v3579
      %v3612 = vsel %vm3548, %v886, %v3580
      %v3613 = vsel %vm3549, %v887, %v3581
      %v3614 = vsel %vm3550, %v888, %v3582
      %v3615 = vsel %vm3551, %v889, %v3583
      %v3616 = vsel %vm3552, %v890, %v3584
      %v3617 = vsel %vm3553, %v891, %v3585
      %v3618 = vsel %vm3554, %v892, %v3586
      %v3619 = vsel %vm3555, %v893, %v3587
      %v3620 = vsel %vm3556, %v894, %v3588
      %v3621 = vsel %vm3557, %v895, %v3589
      %v3622 = vsel %vm3558, %v896, %v3590
      %v3623 = vsel %vm3559, %v897, %v3591
      %v3624 = vsel %vm3560, %v898, %v3592
      %v3625 = vsel %vm3561, %v899, %v3593
      %v3626 = vsel %vm3562, %v900, %v3594
      %v3627 = vsel %vm3563, %v901, %v3595
      %v3628 = vsel %vm3564, %v902, %v3596
      %v3629 = vsel %vm3565, %v903, %v3597
      %v3630 = vsel %vm3566, %v904, %v3598
      %v3631 = vsel %vm3567, %v905, %v3599
      %vm3632 = vcmp.gt.f32.partialorder %v3504, 0.0
      %vm3633 = vcmp.gt.f32.partialorder %v3505, 0.0
      %vm3634 = vcmp.gt.f32.partialorder %v3506, 0.0
      %vm3635 = vcmp.gt.f32.partialorder %v3507, 0.0
      %vm3636 = vcmp.gt.f32.partialorder %v3508, 0.0
      %vm3637 = vcmp.gt.f32.partialorder %v3509, 0.0
      %vm3638 = vcmp.gt.f32.partialorder %v3510, 0.0
      %vm3639 = vcmp.gt.f32.partialorder %v3511, 0.0
      %vm3640 = vcmp.gt.f32.partialorder %v3512, 0.0
      %vm3641 = vcmp.gt.f32.partialorder %v3513, 0.0
      %vm3642 = vcmp.gt.f32.partialorder %v3514, 0.0
      %vm3643 = vcmp.gt.f32.partialorder %v3515, 0.0
      %vm3644 = vcmp.gt.f32.partialorder %v3516, 0.0
      %vm3645 = vcmp.gt.f32.partialorder %v3517, 0.0
      %vm3646 = vcmp.gt.f32.partialorder %v3518, 0.0
      %vm3647 = vcmp.gt.f32.partialorder %v3519, 0.0
      %vm3648 = vcmp.gt.f32.partialorder %v3520, 0.0
      %vm3649 = vcmp.gt.f32.partialorder %v3521, 0.0
      %vm3650 = vcmp.gt.f32.partialorder %v3522, 0.0
      %vm3651 = vcmp.gt.f32.partialorder %v3523, 0.0
      %vm3652 = vcmp.gt.f32.partialorder %v3524, 0.0
      %vm3653 = vcmp.gt.f32.partialorder %v3525, 0.0
      %vm3654 = vcmp.gt.f32.partialorder %v3526, 0.0
      %vm3655 = vcmp.gt.f32.partialorder %v3527, 0.0
      %vm3656 = vcmp.gt.f32.partialorder %v3528, 0.0
      %vm3657 = vcmp.gt.f32.partialorder %v3529, 0.0
      %vm3658 = vcmp.gt.f32.partialorder %v3530, 0.0
      %vm3659 = vcmp.gt.f32.partialorder %v3531, 0.0
      %vm3660 = vcmp.gt.f32.partialorder %v3532, 0.0
      %vm3661 = vcmp.gt.f32.partialorder %v3533, 0.0
      %vm3662 = vcmp.gt.f32.partialorder %v3534, 0.0
      %vm3663 = vcmp.gt.f32.partialorder %v3535, 0.0
      %v3664 = vmul.f32 %v3504, 0.1
      %v3665 = vmul.f32 %v3505, 0.1
      %v3666 = vmul.f32 %v3506, 0.1
      %v3667 = vmul.f32 %v3507, 0.1
      %v3668 = vmul.f32 %v3508, 0.1
      %v3669 = vmul.f32 %v3509, 0.1
      %v3670 = vmul.f32 %v3510, 0.1
      %v3671 = vmul.f32 %v3511, 0.1
      %v3672 = vmul.f32 %v3512, 0.1
      %v3673 = vmul.f32 %v3513, 0.1
      %v3674 = vmul.f32 %v3514, 0.1
      %v3675 = vmul.f32 %v3515, 0.1
      %v3676 = vmul.f32 %v3516, 0.1
      %v3677 = vmul.f32 %v3517, 0.1
      %v3678 = vmul.f32 %v3518, 0.1
      %v3679 = vmul.f32 %v3519, 0.1
      %v3680 = vmul.f32 %v3520, 0.1
      %v3681 = vmul.f32 %v3521, 0.1
      %v3682 = vmul.f32 %v3522, 0.1
      %v3683 = vmul.f32 %v3523, 0.1
      %v3684 = vmul.f32 %v3524, 0.1
      %v3685 = vmul.f32 %v3525, 0.1
      %v3686 = vmul.f32 %v3526, 0.1
      %v3687 = vmul.f32 %v3527, 0.1
      %v3688 = vmul.f32 %v3528, 0.1
      %v3689 = vmul.f32 %v3529, 0.1
      %v3690 = vmul.f32 %v3530, 0.1
      %v3691 = vmul.f32 %v3531, 0.1
      %v3692 = vmul.f32 %v3532, 0.1
      %v3693 = vmul.f32 %v3533, 0.1
      %v3694 = vmul.f32 %v3534, 0.1
      %v3695 = vmul.f32 %v3535, 0.1
      %v3696 = vsel %vm3632, %v3504, %v3664
      %v3697 = vsel %vm3633, %v3505, %v3665
      %v3698 = vsel %vm3634, %v3506, %v3666
      %v3699 = vsel %vm3635, %v3507, %v3667
      %v3700 = vsel %vm3636, %v3508, %v3668
      %v3701 = vsel %vm3637, %v3509, %v3669
      %v3702 = vsel %vm3638, %v3510, %v3670
      %v3703 = vsel %vm3639, %v3511, %v3671
      %v3704 = vsel %vm3640, %v3512, %v3672
      %v3705 = vsel %vm3641, %v3513, %v3673
      %v3706 = vsel %vm3642, %v3514, %v3674
      %v3707 = vsel %vm3643, %v3515, %v3675
      %v3708 = vsel %vm3644, %v3516, %v3676
      %v3709 = vsel %vm3645, %v3517, %v3677
      %v3710 = vsel %vm3646, %v3518, %v3678
      %v3711 = vsel %vm3647, %v3519, %v3679
      %v3712 = vsel %vm3648, %v3520, %v3680
      %v3713 = vsel %vm3649, %v3521, %v3681
      %v3714 = vsel %vm3650, %v3522, %v3682
      %v3715 = vsel %vm3651, %v3523, %v3683
      %v3716 = vsel %vm3652, %v3524, %v3684
      %v3717 = vsel %vm3653, %v3525, %v3685
      %v3718 = vsel %vm3654, %v3526, %v3686
      %v3719 = vsel %vm3655, %v3527, %v3687
      %v3720 = vsel %vm3656, %v3528, %v3688
      %v3721 = vsel %vm3657, %v3529, %v3689
      %v3722 = vsel %vm3658, %v3530, %v3690
      %v3723 = vsel %vm3659, %v3531, %v3691
      %v3724 = vsel %vm3660, %v3532, %v3692
      %v3725 = vsel %vm3661, %v3533, %v3693
      %v3726 = vsel %vm3662, %v3534, %v3694
      %v3727 = vsel %vm3663, %v3535, %v3695
      %3760 = vrot.lane.b32.xlu0 %v3696, 2
      %v3761 = vpop.permute.xlu0 %3760
      %3762 = vrot.lane.b32.xlu0 %v3697, 2
      %v3763 = vpop.permute.xlu0 %3762
      %3764 = vrot.lane.b32.xlu0 %v3698, 2
      %v3765 = vpop.permute.xlu0 %3764
      %3766 = vrot.lane.b32.xlu0 %v3699, 2
      %v3767 = vpop.permute.xlu0 %3766
      %3768 = vrot.lane.b32.xlu0 %v3700, 2
      %v3769 = vpop.permute.xlu0 %3768
      %3770 = vrot.lane.b32.xlu0 %v3701, 2
      %v3771 = vpop.permute.xlu0 %3770
      %3772 = vrot.lane.b32.xlu0 %v3702, 2
      %v3773 = vpop.permute.xlu0 %3772
      %3774 = vrot.lane.b32.xlu0 %v3703, 2
      %v3775 = vpop.permute.xlu0 %3774
      %3776 = vrot.lane.b32.xlu0 %v3704, 2
      %v3777 = vpop.permute.xlu0 %3776
      %3778 = vrot.lane.b32.xlu0 %v3705, 2
      %v3779 = vpop.permute.xlu0 %3778
      %3780 = vrot.lane.b32.xlu0 %v3706, 2
      %v3781 = vpop.permute.xlu0 %3780
      %3782 = vrot.lane.b32.xlu0 %v3707, 2
      %v3783 = vpop.permute.xlu0 %3782
      %3784 = vrot.lane.b32.xlu0 %v3708, 2
      %v3785 = vpop.permute.xlu0 %3784
      %3786 = vrot.lane.b32.xlu0 %v3709, 2
      %v3787 = vpop.permute.xlu0 %3786
      %3788 = vrot.lane.b32.xlu0 %v3710, 2
      %v3789 = vpop.permute.xlu0 %3788
      %3790 = vrot.lane.b32.xlu0 %v3711, 2
      %v3791 = vpop.permute.xlu0 %3790
      %3792 = vrot.lane.b32.xlu0 %v3712, 2
      %v3793 = vpop.permute.xlu0 %3792
      %3794 = vrot.lane.b32.xlu0 %v3713, 2
      %v3795 = vpop.permute.xlu0 %3794
      %3796 = vrot.lane.b32.xlu0 %v3714, 2
      %v3797 = vpop.permute.xlu0 %3796
      %3798 = vrot.lane.b32.xlu0 %v3715, 2
      %v3799 = vpop.permute.xlu0 %3798
      %3800 = vrot.lane.b32.xlu0 %v3716, 2
      %v3801 = vpop.permute.xlu0 %3800
      %3802 = vrot.lane.b32.xlu0 %v3717, 2
      %v3803 = vpop.permute.xlu0 %3802
      %3804 = vrot.lane.b32.xlu0 %v3718, 2
      %v3805 = vpop.permute.xlu0 %3804
      %3806 = vrot.lane.b32.xlu0 %v3719, 2
      %v3807 = vpop.permute.xlu0 %3806
      %3808 = vrot.lane.b32.xlu0 %v3720, 2
      %v3809 = vpop.permute.xlu0 %3808
      %3810 = vrot.lane.b32.xlu0 %v3721, 2
      %v3811 = vpop.permute.xlu0 %3810
      %3812 = vrot.lane.b32.xlu0 %v3722, 2
      %v3813 = vpop.permute.xlu0 %3812
      %3814 = vrot.lane.b32.xlu0 %v3723, 2
      %v3815 = vpop.permute.xlu0 %3814
      %3816 = vrot.lane.b32.xlu0 %v3724, 2
      %v3817 = vpop.permute.xlu0 %3816
      %3818 = vrot.lane.b32.xlu0 %v3725, 2
      %v3819 = vpop.permute.xlu0 %3818
      %3820 = vrot.lane.b32.xlu0 %v3726, 2
      %v3821 = vpop.permute.xlu0 %3820
      %3822 = vrot.lane.b32.xlu0 %v3727, 2
      %v3823 = vpop.permute.xlu0 %3822
      %vm3856 = vcmask 15360
      %v3857 = vsel %vm3856, %v3600, %v3761
      %v3858 = vsel %vm3856, %v3601, %v3763
      %v3859 = vsel %vm3856, %v3602, %v3765
      %v3860 = vsel %vm3856, %v3603, %v3767
      %v3861 = vsel %vm3856, %v3604, %v3769
      %v3862 = vsel %vm3856, %v3605, %v3771
      %v3863 = vsel %vm3856, %v3606, %v3773
      %v3864 = vsel %vm3856, %v3607, %v3775
      %v3865 = vsel %vm3856, %v3608, %v3777
      %v3866 = vsel %vm3856, %v3609, %v3779
      %v3867 = vsel %vm3856, %v3610, %v3781
      %v3868 = vsel %vm3856, %v3611, %v3783
      %v3869 = vsel %vm3856, %v3612, %v3785
      %v3870 = vsel %vm3856, %v3613, %v3787
      %v3871 = vsel %vm3856, %v3614, %v3789
      %v3872 = vsel %vm3856, %v3615, %v3791
      %v3873 = vsel %vm3856, %v3616, %v3793
      %v3874 = vsel %vm3856, %v3617, %v3795
      %v3875 = vsel %vm3856, %v3618, %v3797
      %v3876 = vsel %vm3856, %v3619, %v3799
      %v3877 = vsel %vm3856, %v3620, %v3801
      %v3878 = vsel %vm3856, %v3621, %v3803
      %v3879 = vsel %vm3856, %v3622, %v3805
      %v3880 = vsel %vm3856, %v3623, %v3807
      %v3881 = vsel %vm3856, %v3624, %v3809
      %v3882 = vsel %vm3856, %v3625, %v3811
      %v3883 = vsel %vm3856, %v3626, %v3813
      %v3884 = vsel %vm3856, %v3627, %v3815
      %v3885 = vsel %vm3856, %v3628, %v3817
      %v3886 = vsel %vm3856, %v3629, %v3819
      %v3887 = vsel %vm3856, %v3630, %v3821
      %v3888 = vsel %vm3856, %v3631, %v3823
      %v3889 = vadd.f32 %v3857, %v423
      %v3890 = vadd.f32 %v3858, %v425
      %v3891 = vadd.f32 %v3859, %v428
      %v3892 = vadd.f32 %v3860, %v430
      %v3893 = vadd.f32 %v3861, %v433
      %v3894 = vadd.f32 %v3862, %v435
      %v3895 = vadd.f32 %v3863, %v438
      %v3896 = vadd.f32 %v3864, %v440
      %v3897 = vadd.f32 %v3865, %v443
      %v3898 = vadd.f32 %v3866, %v445
      %v3899 = vadd.f32 %v3867, %v448
      %v3900 = vadd.f32 %v3868, %v450
      %v3901 = vadd.f32 %v3869, %v453
      %v3902 = vadd.f32 %v3870, %v455
      %v3903 = vadd.f32 %v3871, %v458
      %v3904 = vadd.f32 %v3872, %v460
      %v3905 = vadd.f32 %v3873, %v463
      %v3906 = vadd.f32 %v3874, %v465
      %v3907 = vadd.f32 %v3875, %v468
      %v3908 = vadd.f32 %v3876, %v470
      %v3909 = vadd.f32 %v3877, %v473
      %v3910 = vadd.f32 %v3878, %v475
      %v3911 = vadd.f32 %v3879, %v478
      %v3912 = vadd.f32 %v3880, %v480
      %v3913 = vadd.f32 %v3881, %v483
      %v3914 = vadd.f32 %v3882, %v485
      %v3915 = vadd.f32 %v3883, %v488
      %v3916 = vadd.f32 %v3884, %v490
      %v3917 = vadd.f32 %v3885, %v493
      %v3918 = vadd.f32 %v3886, %v495
      %v3919 = vadd.f32 %v3887, %v498
      %v3920 = vadd.f32 %v3888, %v500
      %3921 = vst.msk [vmem:[%s316] sm:$0xff] %vm534, %v3889
      %3922 = vst.msk [vmem:[%s316 + $0x8] sm:$0xff] %vm534, %v3890
      %3923 = vst.msk [vmem:[%s316 + $0x10] sm:$0xff] %vm534, %v3891
      %3924 = vst.msk [vmem:[%s316 + $0x18] sm:$0xff] %vm534, %v3892
      %3925 = vst.msk [vmem:[%s316 + $0x20] sm:$0xff] %vm534, %v3893
      %3926 = vst.msk [vmem:[%s316 + $0x28] sm:$0xff] %vm534, %v3894
      %3927 = vst.msk [vmem:[%s316 + $0x30] sm:$0xff] %vm534, %v3895
      %3928 = vst.msk [vmem:[%s316 + $0x38] sm:$0xff] %vm534, %v3896
      %3929 = vst.msk [vmem:[%s316 + $0x40] sm:$0xff] %vm534, %v3897
      %3930 = vst.msk [vmem:[%s316 + $0x48] sm:$0xff] %vm534, %v3898
      %3931 = vst.msk [vmem:[%s316 + $0x50] sm:$0xff] %vm534, %v3899
      %3932 = vst.msk [vmem:[%s316 + $0x58] sm:$0xff] %vm534, %v3900
      %3933 = vst.msk [vmem:[%s316 + $0x60] sm:$0xff] %vm534, %v3901
      %3934 = vst.msk [vmem:[%s316 + $0x68] sm:$0xff] %vm534, %v3902
      %3935 = vst.msk [vmem:[%s316 + $0x70] sm:$0xff] %vm534, %v3903
      %3936 = vst.msk [vmem:[%s316 + $0x78] sm:$0xff] %vm534, %v3904
      %3937 = vst.msk [vmem:[%s316 + $0x80] sm:$0xff] %vm534, %v3905
      %3938 = vst.msk [vmem:[%s316 + $0x88] sm:$0xff] %vm534, %v3906
      %3939 = vst.msk [vmem:[%s316 + $0x90] sm:$0xff] %vm534, %v3907
      %3940 = vst.msk [vmem:[%s316 + $0x98] sm:$0xff] %vm534, %v3908
      %3941 = vst.msk [vmem:[%s316 + $0xa0] sm:$0xff] %vm534, %v3909
      %3942 = vst.msk [vmem:[%s316 + $0xa8] sm:$0xff] %vm534, %v3910
      %3943 = vst.msk [vmem:[%s316 + $0xb0] sm:$0xff] %vm534, %v3911
      %3944 = vst.msk [vmem:[%s316 + $0xb8] sm:$0xff] %vm534, %v3912
      %3945 = vst.msk [vmem:[%s316 + $0xc0] sm:$0xff] %vm534, %v3913
      %3946 = vst.msk [vmem:[%s316 + $0xc8] sm:$0xff] %vm534, %v3914
      %3947 = vst.msk [vmem:[%s316 + $0xd0] sm:$0xff] %vm534, %v3915
      %3948 = vst.msk [vmem:[%s316 + $0xd8] sm:$0xff] %vm534, %v3916
      %3949 = vst.msk [vmem:[%s316 + $0xe0] sm:$0xff] %vm534, %v3917
      %3950 = vst.msk [vmem:[%s316 + $0xe8] sm:$0xff] %vm534, %v3918
      %3951 = vst.msk [vmem:[%s316 + $0xf0] sm:$0xff] %vm534, %v3919
      %3952 = vst.msk [vmem:[%s316 + $0xf8] sm:$0xff] %vm534, %v3920
      %s3953 = smul.u32 16, %s23
      %p3954 = scmp.lt.s32.totalorder %s22, 1
      %s3955 = scalar_select %p3954, %s22, 1
      %p3956 = scmp.lt.s32.totalorder %s3953, 15
      %s3957 = scalar_select %p3956, %s3953, 15
      %s3958 = smul.addr %s3957, 2
      %s3959 = smul.addr %s3955, 32
      %s3960 = sadd.s32 %s3958, %s3959
      %s3961 = smul.addr %s3960, 8
      %s3962 = scalar_lea.vmem %s7, %s3961
      // Predicated region
      $region49: #{tpu_custom_call.1} parent=47 // pred_check
        %p3963 = pneg %p204
      $region50: #{tpu_custom_call.1} parent=47 // pred_check_branch
        %3965 = sbr.rel (%p3963) target = $region52
      $region51: #{tpu_custom_call.1} parent=47 // pred_region
        %s3966 = smul.u32 16, %s23
      $region52: #{tpu_custom_call.1} parent=47 // pred_fallthru
        _
    $region48: #{tpu_custom_call.1} parent=5 // pred_fallthru
      _
    %p3967 = scmp.le.s32.totalorder 2, %s13
    // Predicated region
    $region53: #{tpu_custom_call.1} parent=5 // pred_check
      %p3968 = pneg %p3967
    $region54: #{tpu_custom_call.1} parent=5 // pred_check_branch
      %3970 = sbr.rel (%p3968) target = $region56
    $region55: #{tpu_custom_call.1} parent=5 // pred_region
      %s3971 = ssub.s32 %s13, 2
      // Predicated region
      $region57: #{tpu_custom_call.1} parent=55 // pred_check
        %p3972 = pneg %p210
      $region58: #{tpu_custom_call.1} parent=55 // pred_check_branch
        %3974 = sbr.rel (%p3972) target = $region60
      $region59: #{tpu_custom_call.1} parent=55 // pred_region
        %s3975 = smul.u32 16, %s25
        %p3976 = scmp.lt.s32.totalorder %s24, 1
        %s3977 = scalar_select %p3976, %s24, 1
        %p3978 = scmp.lt.s32.totalorder %s3975, 15
        %s3979 = scalar_select %p3978, %s3975, 15
        %s3980 = smul.addr %s3979, 2
        %s3981 = smul.addr %s3977, 32
        %s3982 = sadd.s32 %s3980, %s3981
        %s3983 = smul.addr %s3982, 8
        %s3984 = scalar_lea.vmem %s7, %s3983
      $region60: #{tpu_custom_call.1} parent=55 // pred_fallthru
        _
    $region56: #{tpu_custom_call.1} parent=5 // pred_fallthru
      _
  $region6: #{tpu_custom_call.1} parent=0 // loop_footer
    %s17 = sadd.s32 1, %s13
  $region7: #{tpu_custom_call.1} parent=0 // loop_footer_branch
    %12 = sbr.rel target = $region3
  $region8: #{tpu_custom_call.1} parent=0 // loop_exit
    _

</llo_original>
